<compile_context>
chip_gen: v5e
topology: v5e:2x2
jax: 0.10.0
libtpu: 0.0.40
codegen_flags: <defaults>
</compile_context>

<pallas_src>
import functools

import jax
import jax.numpy as jnp
from jax import lax
from jax.experimental import pallas as pl
from jax.experimental.pallas import tpu as pltpu

_VMEM_LIMIT = 32 * 1024 * 1024


# ---------------------------------------------------------------------------
# Kernel 1: fused Q/K/V projection  (B, T, C) @ (C, 3C) -> three (B, T, C)
# ---------------------------------------------------------------------------
def _qkv_proj_kernel(x_ref, w_ref, q_ref, k_ref, v_ref):
    c = q_ref.shape[-1]
    x = x_ref[0].astype(w_ref.dtype)            # cast in-kernel (no extra XLA pass)
    acc = jnp.dot(x, w_ref[...], preferred_element_type=jnp.float32)  # (tm, 3C)
    q_ref[0] = acc[:, :c].astype(q_ref.dtype)
    k_ref[0] = acc[:, c:2 * c].astype(k_ref.dtype)
    v_ref[0] = acc[:, 2 * c:].astype(v_ref.dtype)


def _qkv_proj(x, w_qkv, seq_tile, out_dtype):
    B, T, C = x.shape
    C3 = w_qkv.shape[1]
    nt = T // seq_tile
    out_sds = jax.ShapeDtypeStruct((B, T, C), out_dtype)
    flops = 2 * B * T * C * C3
    bytes_accessed = (B * T * C * x.dtype.itemsize
                      + w_qkv.size * w_qkv.dtype.itemsize
                      + 3 * B * T * C * jnp.dtype(out_dtype).itemsize)
    return pl.pallas_call(
        _qkv_proj_kernel,
        out_shape=(out_sds, out_sds, out_sds),
        grid_spec=pltpu.PrefetchScalarGridSpec(
            num_scalar_prefetch=0,
            grid=(B, nt),
            in_specs=[
                pl.BlockSpec((1, seq_tile, C), lambda b, t: (b, t, 0)),
                pl.BlockSpec((C, C3), lambda b, t: (0, 0)),   # weight resident
            ],
            out_specs=[
                pl.BlockSpec((1, seq_tile, C), lambda b, t: (b, t, 0)),
                pl.BlockSpec((1, seq_tile, C), lambda b, t: (b, t, 0)),
                pl.BlockSpec((1, seq_tile, C), lambda b, t: (b, t, 0)),
            ],
        ),
        compiler_params=pltpu.CompilerParams(
            dimension_semantics=("parallel", "parallel"),
            vmem_limit_bytes=_VMEM_LIMIT,
        ),
        cost_estimate=pl.CostEstimate(flops=flops, transcendentals=0,
                                      bytes_accessed=bytes_accessed),
    )(x, w_qkv)


# ---------------------------------------------------------------------------
# Kernel 2: causal flash attention on (B, T, C); heads via static lane slices.
# Grid enumerates only the lower-triangular (q-tile, kv-tile) pairs.
# ---------------------------------------------------------------------------
def _flash_kernel(i_tbl_ref, j_tbl_ref, q_ref, k_ref, v_ref, o_ref,
                  m_scr, l_scr, acc_scr, *, num_heads, head_size, approx_recip):
    s_idx = pl.program_id(1)
    i = i_tbl_ref[s_idx]           # q-tile index (row of the triangle)
    j = j_tbl_ref[s_idx]           # kv-tile index (0..i)

    tq = q_ref.shape[1]
    tk = k_ref.shape[1]

    @pl.when(j == 0)               # first kv step of every q-tile row
    def _init():
        m_scr[...] = jnp.full(m_scr.shape, -jnp.inf, dtype=jnp.float32)
        l_scr[...] = jnp.zeros(l_scr.shape, dtype=jnp.float32)
        acc_scr[...] = jnp.zeros(acc_scr.shape, dtype=jnp.float32)

    def accumulate(masked):
        if masked:                 # causal mask only needed on the diagonal tile
            row = lax.broadcasted_iota(jnp.int32, (tq, tk), 0)
            col = lax.broadcasted_iota(jnp.int32, (tq, tk), 1)
            keep = col <= row
        for h in range(num_heads):                       # unrolled at trace time
            sl = pl.ds(h * head_size, head_size)
            q_h = q_ref[0, :, sl]                        # (tq, hs)
            k_h = k_ref[0, :, sl]                        # (tk, hs)
            # scores = Q_h @ K_h^T  (contract last dims; scale folded into Wq)
            s_h = lax.dot_general(q_h, k_h, (((1,), (1,)), ((), ())),
                                  preferred_element_type=jnp.float32)  # (tq, tk)
            if masked:
                s_h = jnp.where(keep, s_h, -jnp.inf)
            m_prev = m_scr[h]                            # (tq, 1) f32
            m_new = jnp.maximum(m_prev, jnp.max(s_h, axis=-1, keepdims=True))
            alpha = jnp.exp(m_prev - m_new)
            p = jnp.exp(s_h - m_new)                     # f32 exp (safe on v5e too)
            l_scr[h] = alpha * l_scr[h] + jnp.sum(p, axis=-1, keepdims=True)
            pv = jnp.dot(p.astype(v_ref.dtype), v_ref[0, :, sl],
                         preferred_element_type=jnp.float32)           # (tq, hs)
            acc_scr[:, sl] = alpha * acc_scr[:, sl] + pv
            m_scr[h] = m_new

    @pl.when(j < i)                # strictly below the diagonal: no mask needed
    def _off_diag():
        accumulate(masked=False)

    @pl.when(j == i)               # diagonal tile: mask + finalize this q-tile
    def _diag():
        accumulate(masked=True)
        for h in range(num_heads):
            sl = pl.ds(h * head_size, head_size)
            inv_l = pl.reciprocal(l_scr[h], approx=approx_recip)
            acc_scr[:, sl] = acc_scr[:, sl] * inv_l
        o_ref[0] = acc_scr[...].astype(o_ref.dtype)      # one lane-dense store


def _flash_attention(q, k, v, *, num_heads, head_size, seq_tile=256,
                     approx_recip=True):
    B, T, C = q.shape
    tq = min(seq_tile, T)
    assert T % tq == 0, "sequence must be divisible by the tile size"
    nq = T // tq
    tk = tq

    # Lower-triangular (i, j) enumeration (row-major: (0,0),(1,0),(1,1),...).
    tri = [(i, j) for i in range(nq) for j in range(i + 1)]
    n_tri = len(tri)
    i_tbl = jnp.asarray([p[0] for p in tri], dtype=jnp.int32)
    j_tbl = jnp.asarray([p[1] for p in tri], dtype=jnp.int32)

    kernel = functools.partial(_flash_kernel, num_heads=num_heads,
                               head_size=head_size, approx_recip=approx_recip)

    itemsize = jnp.dtype(q.dtype).itemsize
    flops = 4 * B * n_tri * num_heads * tq * tk * head_size
    transcendentals = B * n_tri * num_heads * tq * tk
    bytes_accessed = (B * n_tri * (tq + 2 * tk) * C * itemsize
                      + B * T * C * itemsize)

    return pl.pallas_call(
        kernel,
        out_shape=jax.ShapeDtypeStruct((B, T, C), q.dtype),
        grid_spec=pltpu.PrefetchScalarGridSpec(
            num_scalar_prefetch=2,
            grid=(B, n_tri),
            in_specs=[
                pl.BlockSpec((1, tq, C), lambda b, s, it, jt: (b, it[s], 0)),
                pl.BlockSpec((1, tk, C), lambda b, s, it, jt: (b, jt[s], 0)),
                pl.BlockSpec((1, tk, C), lambda b, s, it, jt: (b, jt[s], 0)),
            ],
            out_specs=pl.BlockSpec((1, tq, C), lambda b, s, it, jt: (b, it[s], 0)),
            scratch_shapes=[
                pltpu.VMEM((num_heads, tq, 1), jnp.float32),   # running max
                pltpu.VMEM((num_heads, tq, 1), jnp.float32),   # running denom
                pltpu.VMEM((tq, C), jnp.float32),              # lane-dense acc
            ],
        ),
        compiler_params=pltpu.CompilerParams(
            dimension_semantics=("parallel", "arbitrary"),
            vmem_limit_bytes=_VMEM_LIMIT,
        ),
        cost_estimate=pl.CostEstimate(flops=flops, transcendentals=transcendentals,
                                      bytes_accessed=bytes_accessed),
    )(i_tbl, j_tbl, q, k, v)


# ---------------------------------------------------------------------------
# Kernel 3: output projection + bias  (B*T, C) @ (C, C) + b -> (B*T, C)
# ---------------------------------------------------------------------------
def _out_proj_kernel(a_ref, w_ref, b_ref, o_ref):
    a = a_ref[...].astype(w_ref.dtype)
    acc = jnp.dot(a, w_ref[...], preferred_element_type=jnp.float32)
    o_ref[...] = (acc + b_ref[...]).astype(o_ref.dtype)   # bias in the epilogue


def _out_proj(att2d, w_proj, bias, m_tile, out_dtype):
    M, C = att2d.shape
    m_tile = min(m_tile, M)
    assert M % m_tile == 0
    flops = 2 * M * C * C
    bytes_accessed = (M * C * att2d.dtype.itemsize
                      + C * C * w_proj.dtype.itemsize
                      + M * C * jnp.dtype(out_dtype).itemsize)
    return pl.pallas_call(
        _out_proj_kernel,
        out_shape=jax.ShapeDtypeStruct((M, C), out_dtype),
        grid_spec=pltpu.PrefetchScalarGridSpec(
            num_scalar_prefetch=0,
            grid=(M // m_tile,),
            in_specs=[
                pl.BlockSpec((m_tile, C), lambda m: (m, 0)),
                pl.BlockSpec((C, C), lambda m: (0, 0)),
                pl.BlockSpec((1, C), lambda m: (0, 0)),
            ],
            out_specs=pl.BlockSpec((m_tile, C), lambda m: (m, 0)),
        ),
        compiler_params=pltpu.CompilerParams(
            dimension_semantics=("parallel",),
            vmem_limit_bytes=_VMEM_LIMIT,
        ),
        cost_estimate=pl.CostEstimate(flops=flops, transcendentals=0,
                                      bytes_accessed=bytes_accessed),
    )(att2d, w_proj, bias)


# ---------------------------------------------------------------------------
# Top-level wrapper (only free reshapes + one-time weight prep outside kernels)
# ---------------------------------------------------------------------------
def multi_head_attention(x, wq, wk, wv, wp, bp, *, compute_dtype=jnp.bfloat16,
                         seq_tile=256, proj_m_tile=512, out_dtype=None):
    """x: (B, T, C); wq/wk/wv: (H, C, hs); wp: (H, hs, C); bp: (C,)."""
    B, T, C = x.shape
    H, _, hs = wq.shape
    assert H * hs == C
    seq_tile = min(seq_tile, T)
    assert T % seq_tile == 0
    if out_dtype is None:
        out_dtype = x.dtype

    # Fold 1/sqrt(hs) into Wq (one-time weight op; zero per-token VPU cost).
    scale = float(hs) ** -0.5
    wq_full = (wq * scale).transpose(1, 0, 2).reshape(C, C)   # cols h*hs:(h+1)*hs = head h
    wk_full = wk.transpose(1, 0, 2).reshape(C, C)
    wv_full = wv.transpose(1, 0, 2).reshape(C, C)
    wp_full = wp.reshape(C, C)                                # rows h*hs:(h+1)*hs = head h
    w_qkv = jnp.concatenate([wq_full, wk_full, wv_full], axis=1)

    cdt = jnp.dtype(compute_dtype)
    use_approx = cdt == jnp.dtype(jnp.bfloat16)

    # 1) fused QKV projection -> three (B, T, C) tensors (head h lives in
    #    columns h*hs:(h+1)*hs), no XLA split/transpose afterwards.
    q, k, v = _qkv_proj(x, w_qkv.astype(cdt), seq_tile, cdt)

    # 2) causal flash attention, output already in concat-heads (B, T, C) layout.
    att = _flash_attention(q, k, v, num_heads=H, head_size=hs,
                           seq_tile=seq_tile, approx_recip=use_approx)

    # 3) output projection + bias on a flattened (B*T, C) M axis.
    att2d = att.reshape(B * T, C)                 # free row-major collapse
    bias = bp.reshape(1, C).astype(jnp.float32)
    out2d = _out_proj(att2d, wp_full.astype(cdt), bias, proj_m_tile, out_dtype)
    return out2d.reshape(B, T, C)


# ---------------------------------------------------------------------------
# Plain-JAX reference mirroring the PyTorch forward (eval mode)
# ---------------------------------------------------------------------------
def _reference(x, wq, wk, wv, wp, bp):
    B, T, C = x.shape
    H, _, hs = wq.shape
    mask = jnp.tril(jnp.ones((T, T), dtype=bool))
    outs = []
    for h in range(H):
        q = x @ wq[h]
        k = x @ wk[h]
        v = x @ wv[h]
        wei = (q @ jnp.swapaxes(k, -2, -1)) * (hs ** -0.5)
        wei = jnp.where(mask[None], wei, -jnp.inf)
        wei = jax.nn.softmax(wei, axis=-1)
        outs.append(wei @ v)
    cat = jnp.concatenate(outs, axis=-1)                       # (B, T, C)
    wp_full = jnp.concatenate([wp[h] for h in range(H)], axis=0)
    return cat @ wp_full + bp


if __name__ == "__main__":
    # Shapes consistent with the module: n_embd = 384, block_size = 256,
    # typical split num_heads=6 x head_size=64. Small batch.
    B, T = 2, 256
    num_heads, head_size = 6, 64
    n_embd = num_heads * head_size  # 384

    key = jax.random.PRNGKey(0)
    kx, kq, kk, kv, kp, kb = jax.random.split(key, 6)
    x = jax.random.normal(kx, (B, T, n_embd), dtype=jnp.float32)

    bound = 1.0 / (n_embd ** 0.5)   # nn.Linear-style uniform init bound
    wq = jax.random.uniform(kq, (num_heads, n_embd, head_size), jnp.float32, -bound, bound)
    wk = jax.random.uniform(kk, (num_heads, n_embd, head_size), jnp.float32, -bound, bound)
    wv = jax.random.uniform(kv, (num_heads, n_embd, head_size), jnp.float32, -bound, bound)
    wp = jax.random.uniform(kp, (num_heads, head_size, n_embd), jnp.float32, -bound, bound)
    bp = jax.random.uniform(kb, (n_embd,), jnp.float32, -bound, bound)

    ref = _reference(x, wq, wk, wv, wp, bp)

    # f32 path: primary correctness check (tight tolerance, exact reciprocal).
    out_f32 = jax.block_until_ready(
        multi_head_attention(x, wq, wk, wv, wp, bp, compute_dtype=jnp.float32))
    assert out_f32.shape == (B, T, n_embd)
    assert jnp.allclose(out_f32, ref, atol=2e-3, rtol=2e-3), "f32 kernel mismatch"

    # bf16 MXU path: recommended fast path (f32 accumulation), looser tolerance.
    out_bf16 = jax.block_until_ready(
        multi_head_attention(x, wq, wk, wv, wp, bp, compute_dtype=jnp.bfloat16))
    assert out_bf16.shape == (B, T, n_embd)
    assert jnp.allclose(out_bf16, ref, atol=5e-2, rtol=5e-2), "bf16 kernel mismatch"

    print("KERNEL_OK")
</pallas_src>

<mosaic_0001>
module attributes {stable_mosaic.version = 11 : i64} {
  func.func @_qkv_proj_kernel(%arg0: i32, %arg1: i32, %arg2: memref<1x256x384xf32, #tpu.memory_space<vmem>>, %arg3: memref<384x1152xf32, #tpu.memory_space<vmem>>, %arg4: memref<1x256x384xf32, #tpu.memory_space<vmem>>, %arg5: memref<1x256x384xf32, #tpu.memory_space<vmem>>, %arg6: memref<1x256x384xf32, #tpu.memory_space<vmem>>) attributes {dimension_semantics = [#tpu.dimension_semantics<parallel>, #tpu.dimension_semantics<parallel>], iteration_bounds = array<i64: 2, 1>, scalar_prefetch = 0 : i64, scratch_operands = 0 : i64, tpu.core_type = #tpu.core_type<tc>, window_params = [{transform_indices = @transform_0, window_bounds = array<i64: 1, 256, 384>}, {pipeline_mode = #tpu.pipeline_mode<synchronous>, transform_indices = @transform_1, window_bounds = array<i64: 384, 1152>}, {transform_indices = @transform_2, window_bounds = array<i64: 1, 256, 384>}, {transform_indices = @transform_3, window_bounds = array<i64: 1, 256, 384>}, {transform_indices = @transform_4, window_bounds = array<i64: 1, 256, 384>}]} {
    %c0 = arith.constant 0 : index
    %c0_0 = arith.constant 0 : index
    %c0_1 = arith.constant 0 : index
    %0 = vector.load %arg2[%c0, %c0_0, %c0_1] : memref<1x256x384xf32, #tpu.memory_space<vmem>>, vector<1x256x384xf32>
    %1 = vector.shape_cast %0 : vector<1x256x384xf32> to vector<256x384xf32>
    %c0_2 = arith.constant 0 : index
    %c0_3 = arith.constant 0 : index
    %2 = vector.load %arg3[%c0_2, %c0_3] : memref<384x1152xf32, #tpu.memory_space<vmem>>, vector<384x1152xf32>
    %cst = arith.constant dense<0.000000e+00> : vector<256x1152xf32>
    %3 = tpu.matmul %1, %2, %cst {dimension_numbers = #tpu.dot_dimension_numbers<[1], [0], [0], [1], [0, 0, 1, 1], [], []>} : vector<256x384xf32>, vector<384x1152xf32>, vector<256x1152xf32> -> vector<256x1152xf32>
    %4 = vector.extract_strided_slice %3 {offsets = [0, 0], sizes = [256, 384], strides = [1, 1]} : vector<256x1152xf32> to vector<256x384xf32>
    %c0_4 = arith.constant 0 : index
    %c0_5 = arith.constant 0 : index
    %c0_6 = arith.constant 0 : index
    %5 = vector.load %arg4[%c0_4, %c0_5, %c0_6] : memref<1x256x384xf32, #tpu.memory_space<vmem>>, vector<1x256x384xf32>
    %6 = vector.shape_cast %5 : vector<1x256x384xf32> to vector<256x384xf32>
    %7 = vector.shape_cast %4 : vector<256x384xf32> to vector<1x256x384xf32>
    tpu.vector_store %arg4[%c0_4, %c0_5, %c0_6], %7 {strides = array<i32>} : memref<1x256x384xf32, #tpu.memory_space<vmem>>, vector<1x256x384xf32>,
    %8 = vector.extract_strided_slice %3 {offsets = [0, 384], sizes = [256, 384], strides = [1, 1]} : vector<256x1152xf32> to vector<256x384xf32>
    %c0_7 = arith.constant 0 : index
    %c0_8 = arith.constant 0 : index
    %c0_9 = arith.constant 0 : index
    %9 = vector.load %arg5[%c0_7, %c0_8, %c0_9] : memref<1x256x384xf32, #tpu.memory_space<vmem>>, vector<1x256x384xf32>
    %10 = vector.shape_cast %9 : vector<1x256x384xf32> to vector<256x384xf32>
    %11 = vector.shape_cast %8 : vector<256x384xf32> to vector<1x256x384xf32>
    tpu.vector_store %arg5[%c0_7, %c0_8, %c0_9], %11 {strides = array<i32>} : memref<1x256x384xf32, #tpu.memory_space<vmem>>, vector<1x256x384xf32>,
    %12 = vector.extract_strided_slice %3 {offsets = [0, 768], sizes = [256, 384], strides = [1, 1]} : vector<256x1152xf32> to vector<256x384xf32>
    %c0_10 = arith.constant 0 : index
    %c0_11 = arith.constant 0 : index
    %c0_12 = arith.constant 0 : index
    %13 = vector.load %arg6[%c0_10, %c0_11, %c0_12] : memref<1x256x384xf32, #tpu.memory_space<vmem>>, vector<1x256x384xf32>
    %14 = vector.shape_cast %13 : vector<1x256x384xf32> to vector<256x384xf32>
    %15 = vector.shape_cast %12 : vector<256x384xf32> to vector<1x256x384xf32>
    tpu.vector_store %arg6[%c0_10, %c0_11, %c0_12], %15 {strides = array<i32>} : memref<1x256x384xf32, #tpu.memory_space<vmem>>, vector<1x256x384xf32>,
    return
  }
  func.func @transform_0(%arg0: i32, %arg1: i32) -> (i32, i32, i32) {
    %c0_i32 = arith.constant 0 : i32
    %c0_i32_0 = arith.constant 0 : i32
    return %arg0, %arg1, %c0_i32 : i32, i32, i32
  }
  func.func @transform_1(%arg0: i32, %arg1: i32) -> (i32, i32) {
    %c0_i32 = arith.constant 0 : i32
    %c0_i32_0 = arith.constant 0 : i32
    %c0_i32_1 = arith.constant 0 : i32
    return %c0_i32, %c0_i32_0 : i32, i32
  }
  func.func @transform_2(%arg0: i32, %arg1: i32) -> (i32, i32, i32) {
    %c0_i32 = arith.constant 0 : i32
    %c0_i32_0 = arith.constant 0 : i32
    return %arg0, %arg1, %c0_i32 : i32, i32, i32
  }
  func.func @transform_3(%arg0: i32, %arg1: i32) -> (i32, i32, i32) {
    %c0_i32 = arith.constant 0 : i32
    %c0_i32_0 = arith.constant 0 : i32
    return %arg0, %arg1, %c0_i32 : i32, i32, i32
  }
  func.func @transform_4(%arg0: i32, %arg1: i32) -> (i32, i32, i32) {
    %c0_i32 = arith.constant 0 : i32
    %c0_i32_0 = arith.constant 0 : i32
    return %arg0, %arg1, %c0_i32 : i32, i32, i32
  }
}

</mosaic_0001>

<llo_original>
// kernel: tpu_custom_call.1
$region0: #{tpu_custom_call.1}
  #allocation0 [shape = 'u32[]', space=smem, size = 0x4, offset = 0x4, fixed_abs, tag = 'smem constant byte address 0x4 - core index']
  #allocation1 [shape = 'u32[72,128]{1,0:T(1,128)}', space=vmem, size = 0x9000, scoped, tag = 'internal scratch']
  %s0 = inlined_call_operand.hbm [shape: f32[2,256,384], index: 0, kind: input, shape index: {}]
  %s1 = inlined_call_operand.hbm [shape: f32[384,1152], index: 1, kind: input, shape index: {}]
  %s2 = inlined_call_operand.hbm [shape: f32[2,256,384], index: 2, kind: output, shape index: {0}]
  %s3 = inlined_call_operand.hbm [shape: f32[2,256,384], index: 3, kind: output, shape index: {1}]
  %s4 = inlined_call_operand.hbm [shape: f32[2,256,384], index: 4, kind: output, shape index: {2}]
  %5 = xla_tuple %s2, %s3, %s4
  %s6 = sld [smem:[#allocation0]]
  $region65: #{tpu_custom_call.1} parent=0
    _
  %s8 = ssub.s32 1, %s6
  %s9 = scalar_select 0, %s8, %s6
  $region1: #{tpu_custom_call.1} parent=0
    #allocation2 [shape = 'u8[786432]{0}', space=vmem, size = 0xc0000, scoped, tag = 'input window, operand 0']
    #allocation3 [shape = 's32[2]{0}', space=sflag, size = 0x8, scoped, tag = 'scoped memory for tpu_custom_call.1']
    #allocation4 [shape = 's32[2]{0}', space=sflag, size = 0x8, scoped, tag = 'scoped memory for tpu_custom_call.1']
    #allocation5 [shape = 'u8[1769472]{0}', space=vmem, size = 0x1b0000, scoped, tag = 'input window, operand 1, single buffered']
    #allocation6 [shape = 's32[1]{0}', space=sflag, size = 0x4, scoped, tag = 'scoped memory for tpu_custom_call.1']
    #allocation7 [shape = 'u8[786432]{0}', space=vmem, size = 0xc0000, scoped, tag = 'output window, operand 0']
    #allocation8 [shape = 'u8[786432]{0}', space=vmem, size = 0xc0000, scoped, tag = 'output window, operand 1']
    #allocation9 [shape = 's32[2]{0}', space=sflag, size = 0x8, scoped, tag = 'scoped memory for tpu_custom_call.1']
    #allocation10 [shape = 'u8[786432]{0}', space=vmem, size = 0xc0000, scoped, tag = 'output window, operand 2']
    %10 = vsyncpa [#allocation3], 0
    %s11 = scalar_lea.sflag [#allocation3], 1
    %12 = vsyncpa %s11, 0
    %13 = vsyncpa [#allocation6], 0
    %14 = vsyncpa [#allocation4], 0
    %s15 = scalar_lea.sflag [#allocation4], 1
    %16 = vsyncpa %s15, 0
    %17 = vsyncpa [#allocation9], 0
    %s18 = scalar_lea.sflag [#allocation9], 1
    %19 = vsyncpa %s18, 0
    loop: start=0, step=1, limit=4
    $region2: #{tpu_custom_call.1} parent=1 // loop_pre_header
      _
    $region3: #{tpu_custom_call.1} parent=1 // loop_header
      %s21 = sphi 0, %s25
      %p22 = scmp.ge.s32.totalorder %s21, 4
      %s28 = sphi 0, %s40
      %s29 = sphi 0, %s36
      %s30 = sphi 0, %s28
      %s31 = sphi 0, %s29
      %s32 = sphi 0, %s30
      %s33 = sphi 0, %s31
      %s45 = sphi 0, %s47
      %s48 = sphi 0, %s45
      %s49 = sphi 0, %s48
      %s65 = sphi 0, %s49
      %s69 = sphi 0, %s69
      %s71 = sphi 0, %s69
      %s72 = sphi 0, %s71
      %s86 = sphi 0, %s72
      %s94 = sphi 0, %s96
      %s97 = sphi 0, %s94
      %s98 = sphi 0, %s97
      %s114 = sphi 0, %s98
      %s122 = sphi 0, %s124
      %s125 = sphi 0, %s122
      %s126 = sphi 0, %s125
      %s142 = sphi 0, %s126
      %s150 = sphi 0, %s152
      %s153 = sphi 0, %s150
      %s154 = sphi 0, %s153
      %s170 = sphi 0, %s154
    $region4: #{tpu_custom_call.1} parent=1 // loop_header_branch
      %24 = sbr.rel (%p22) target = $region8
    $region5: #{tpu_custom_call.1} parent=1 // loop_body
      %s26 = ssub.s32 %s21, 1
      %s27 = ssub.s32 %s21, 2
      %s34 = sadd.s32 1, %s29
      %p35 = scmp.ge.s32.totalorder %s34, 1
      %s36 = scalar_select %p35, 0, %s34
      %s37 = sadd.s32 1, %s28
      %s38 = scalar_select %p35, %s37, %s28
      %p39 = scmp.ge.s32.totalorder %s38, 2
      %s40 = scalar_select %p39, 0, %s38
      %s41 = ssub.s32 %s28, %s40
      %s42 = ssub.s32 %s29, %s36
      %s43 = sor.u32 %s41, %s42
      %p44 = scmp.eq.s32.totalorder %s43, 0
      %s46 = sadd.s32 %s45, 1
      %s47 = scalar_select %p44, %s45, %s46
      %p50 = pneg %p44
      %p51 = scmp.eq.s32.totalorder %s21, 1
      %p52 = por %p50, %p51
      %p53 = scmp.ne.s32.totalorder %s45, %s48
      %p54 = scmp.eq.s32.totalorder %s21, 0
      %p55 = por %p53, %p54
      %p56 = scmp.ne.s32.totalorder %s45, %s48
      %p57 = scmp.eq.s32.totalorder %s26, 1
      %p58 = por %p56, %p57
      %p59 = scmp.ne.s32.totalorder %s48, %s49
      %p60 = scmp.eq.s32.totalorder %s26, 0
      %p61 = por %p59, %p60
      %p62 = scmp.ne.s32.totalorder %s48, %s49
      %p63 = scmp.eq.s32.totalorder %s27, 1
      %p64 = por %p62, %p63
      %p66 = scmp.ne.s32.totalorder %s49, %s65
      %p67 = scmp.eq.s32.totalorder %s27, 0
      %p68 = por %p66, %p67
      %s70 = sadd.s32 %s69, 1
      %p73 = scmp.eq.s32.totalorder %s21, 1
      %p74 = scmp.ne.s32.totalorder %s69, %s71
      %p75 = scmp.eq.s32.totalorder %s21, 0
      %p76 = por %p74, %p75
      %p77 = scmp.ne.s32.totalorder %s69, %s71
      %p78 = scmp.eq.s32.totalorder %s26, 1
      %p79 = por %p77, %p78
      %p80 = scmp.ne.s32.totalorder %s71, %s72
      %p81 = scmp.eq.s32.totalorder %s26, 0
      %p82 = por %p80, %p81
      %p83 = scmp.ne.s32.totalorder %s71, %s72
      %p84 = scmp.eq.s32.totalorder %s27, 1
      %p85 = por %p83, %p84
      %p87 = scmp.ne.s32.totalorder %s72, %s86
      %p88 = scmp.eq.s32.totalorder %s27, 0
      %p89 = por %p87, %p88
      %s90 = ssub.s32 %s28, %s40
      %s91 = ssub.s32 %s29, %s36
      %s92 = sor.u32 %s90, %s91
      %p93 = scmp.eq.s32.totalorder %s92, 0
      %s95 = sadd.s32 %s94, 1
      %s96 = scalar_select %p93, %s94, %s95
      %p99 = pneg %p93
      %p100 = scmp.eq.s32.totalorder %s21, 1
      %p101 = por %p99, %p100
      %p102 = scmp.ne.s32.totalorder %s94, %s97
      %p103 = scmp.eq.s32.totalorder %s21, 0
      %p104 = por %p102, %p103
      %p105 = scmp.ne.s32.totalorder %s94, %s97
      %p106 = scmp.eq.s32.totalorder %s26, 1
      %p107 = por %p105, %p106
      %p108 = scmp.ne.s32.totalorder %s97, %s98
      %p109 = scmp.eq.s32.totalorder %s26, 0
      %p110 = por %p108, %p109
      %p111 = scmp.ne.s32.totalorder %s97, %s98
      %p112 = scmp.eq.s32.totalorder %s27, 1
      %p113 = por %p111, %p112
      %p115 = scmp.ne.s32.totalorder %s98, %s114
      %p116 = scmp.eq.s32.totalorder %s27, 0
      %p117 = por %p115, %p116
      %s118 = ssub.s32 %s28, %s40
      %s119 = ssub.s32 %s29, %s36
      %s120 = sor.u32 %s118, %s119
      %p121 = scmp.eq.s32.totalorder %s120, 0
      %s123 = sadd.s32 %s122, 1
      %s124 = scalar_select %p121, %s122, %s123
      %p127 = pneg %p121
      %p128 = scmp.eq.s32.totalorder %s21, 1
      %p129 = por %p127, %p128
      %p130 = scmp.ne.s32.totalorder %s122, %s125
      %p131 = scmp.eq.s32.totalorder %s21, 0
      %p132 = por %p130, %p131
      %p133 = scmp.ne.s32.totalorder %s122, %s125
      %p134 = scmp.eq.s32.totalorder %s26, 1
      %p135 = por %p133, %p134
      %p136 = scmp.ne.s32.totalorder %s125, %s126
      %p137 = scmp.eq.s32.totalorder %s26, 0
      %p138 = por %p136, %p137
      %p139 = scmp.ne.s32.totalorder %s125, %s126
      %p140 = scmp.eq.s32.totalorder %s27, 1
      %p141 = por %p139, %p140
      %p143 = scmp.ne.s32.totalorder %s126, %s142
      %p144 = scmp.eq.s32.totalorder %s27, 0
      %p145 = por %p143, %p144
      %s146 = ssub.s32 %s28, %s40
      %s147 = ssub.s32 %s29, %s36
      %s148 = sor.u32 %s146, %s147
      %p149 = scmp.eq.s32.totalorder %s148, 0
      %s151 = sadd.s32 %s150, 1
      %s152 = scalar_select %p149, %s150, %s151
      %p155 = pneg %p149
      %p156 = scmp.eq.s32.totalorder %s21, 1
      %p157 = por %p155, %p156
      %p158 = scmp.ne.s32.totalorder %s150, %s153
      %p159 = scmp.eq.s32.totalorder %s21, 0
      %p160 = por %p158, %p159
      %p161 = scmp.ne.s32.totalorder %s150, %s153
      %p162 = scmp.eq.s32.totalorder %s26, 1
      %p163 = por %p161, %p162
      %p164 = scmp.ne.s32.totalorder %s153, %s154
      %p165 = scmp.eq.s32.totalorder %s26, 0
      %p166 = por %p164, %p165
      %p167 = scmp.ne.s32.totalorder %s153, %s154
      %p168 = scmp.eq.s32.totalorder %s27, 1
      %p169 = por %p167, %p168
      %p171 = scmp.ne.s32.totalorder %s154, %s170
      %p172 = scmp.eq.s32.totalorder %s27, 0
      %p173 = por %p171, %p172
      %p174 = scmp.le.s32.totalorder 1, %s21
      %p175 = scmp.lt.s32.totalorder %s21, 3
      %p176 = pnand %p174, %p175
      %p177 = pneg %p176
      // Predicated region
      $region9: #{tpu_custom_call.1} parent=5 // pred_check
        _
      $region10: #{tpu_custom_call.1} parent=5 // pred_check_branch
        %179 = sbr.rel (%p176) target = $region12
      $region11: #{tpu_custom_call.1} parent=5 // pred_region
        %s180 = ssub.s32 %s21, 1
        // Predicated region
        $region13: #{tpu_custom_call.1} parent=11 // pred_check
          %p181 = pneg %p82
        $region14: #{tpu_custom_call.1} parent=11 // pred_check_branch
          %183 = sbr.rel (%p181) target = $region16
        $region15: #{tpu_custom_call.1} parent=11 // pred_region
          %185 = vsyncadd [#allocation6], 0
          %s186 = sshll.u32 %s1, 4
          %s187 = int_to_ptr.hbm [resolvable:$true] %s186
          %s188 = sshll.u32 [#allocation5], 4
          %s189 = int_to_ptr.vmem [resolvable:$true] %s188
          %194 = dma.hbm_to_vmem [thread:$0]  %s187, 55296, %s189, [#allocation6], 1152, 1152, 72
        $region16: #{tpu_custom_call.1} parent=11 // pred_fallthru
          _
      $region12: #{tpu_custom_call.1} parent=5 // pred_fallthru
        _
      %p195 = scmp.lt.s32.totalorder %s21, 2
      // Predicated region
      $region17: #{tpu_custom_call.1} parent=5 // pred_check
        %p196 = pneg %p195
      $region18: #{tpu_custom_call.1} parent=5 // pred_check_branch
        %198 = sbr.rel (%p196) target = $region20
      $region19: #{tpu_custom_call.1} parent=5 // pred_region
        // Predicated region
        $region21: #{tpu_custom_call.1} parent=19 // pred_check
          %p199 = pneg %p55
        $region22: #{tpu_custom_call.1} parent=19 // pred_check_branch
          %201 = sbr.rel (%p199) target = $region24
        $region23: #{tpu_custom_call.1} parent=19 // pred_region
          %s202 = sand.u32 %s45, 1
          %s203 = scalar_lea.sflag [#allocation3], %s202
          %s204 = sand.u32 %s45, 1
          %s205 = smul.addr %s204, 768
          %s206 = scalar_lea.vmem [#allocation2], %s205
          %s207 = smul.u32 32, %s29
          %209 = vsyncadd %s203, 0
          %s210 = smul.addr %s207, 3
          %s211 = smul.addr %s28, 96
          %s212 = sadd.s32 %s210, %s211
          %s213 = smul.addr %s212, 8
          %s214 = scalar_lea.hbm %s0, %s213
          %s215 = sshll.u32 %s214, 4
          %s216 = int_to_ptr.hbm [resolvable:$true] %s215
          %s217 = sshll.u32 %s206, 4
          %s218 = int_to_ptr.vmem [resolvable:$true] %s217
          %223 = dma.hbm_to_vmem [thread:$0]  %s216, 12288, %s218, %s203, 384, 384, 24
        $region24: #{tpu_custom_call.1} parent=19 // pred_fallthru
          _
      $region20: #{tpu_custom_call.1} parent=5 // pred_fallthru
        _
      %p224 = scmp.le.s32.totalorder 1, %s21
      %p225 = scmp.lt.s32.totalorder %s21, 3
      %p226 = pnand %p224, %p225
      %p227 = pneg %p226
      // Predicated region
      $region25: #{tpu_custom_call.1} parent=5 // pred_check
        _
      $region26: #{tpu_custom_call.1} parent=5 // pred_check_branch
        %229 = sbr.rel (%p226) target = $region28
      $region27: #{tpu_custom_call.1} parent=5 // pred_region
        %s230 = ssub.s32 %s21, 1
        %s231 = sand.u32 %s48, 1
        %s232 = scalar_lea.sflag [#allocation3], %s231
        %s233 = sand.u32 %s48, 1
        %s234 = smul.addr %s233, 768
        %s235 = scalar_lea.vmem [#allocation2], %s234
        // Predicated region
        $region29: #{tpu_custom_call.1} parent=27 // pred_check
          %p236 = pneg %p61
        $region30: #{tpu_custom_call.1} parent=27 // pred_check_branch
          %238 = sbr.rel (%p236) target = $region32
        $region31: #{tpu_custom_call.1} parent=27 // pred_region
          %240 = dma.done %s232, 12288
        $region32: #{tpu_custom_call.1} parent=27 // pred_fallthru
          _
        // Predicated region
        $region33: #{tpu_custom_call.1} parent=27 // pred_check
          %p241 = pneg %p82
        $region34: #{tpu_custom_call.1} parent=27 // pred_check_branch
          %243 = sbr.rel (%p241) target = $region36
        $region35: #{tpu_custom_call.1} parent=27 // pred_region
          %245 = dma.done [#allocation6], 55296
        $region36: #{tpu_custom_call.1} parent=27 // pred_fallthru
          _
        %s246 = sand.u32 %s48, 1
        %s247 = scalar_lea.sflag [#allocation3], %s246
        %s248 = sand.u32 %s48, 1
        %s249 = smul.addr %s248, 768
        %s250 = scalar_lea.vmem [#allocation2], %s249
        %p251 = pneg %p61
        %p252 = pneg %p58
        %p253 = pneg %p82
        %p254 = pneg %p79
        %p255 = pneg %p110
        %p256 = pneg %p107
        %s257 = sand.u32 %s97, 1
        %s258 = scalar_lea.sflag [#allocation4], %s257
        %s259 = sand.u32 %s97, 1
        %s260 = smul.addr %s259, 768
        %s261 = scalar_lea.vmem [#allocation7], %s260
        %p262 = pneg %p138
        %p263 = pneg %p135
        %s264 = sand.u32 %s26, 1
        %s265 = scalar_lea.sflag [#allocation9], %s264
        %s266 = sand.u32 %s125, 1
        %s267 = smul.addr %s266, 768
        %s268 = scalar_lea.vmem [#allocation8], %s267
        %p269 = pneg %p166
        %p270 = pneg %p163
        %s271 = sand.u32 %s26, 1
        %s272 = scalar_lea.sflag [#allocation9], %s271
        %s273 = sand.u32 %s153, 1
        %s274 = smul.addr %s273, 768
        %s275 = scalar_lea.vmem [#allocation10], %s274
        %s276 = smul.u32 32, %s31
        %s277 = smul.u32 32, %s31
        %s278 = smul.u32 32, %s31
        %s279 = smul.u32 32, %s31
        %v280 = vld [vmem:[%s235] sm:$0xff]
        %v281 = vld [vmem:[%s235 + $0x8] sm:$0xff]
        %v282 = vld [vmem:[%s235 + $0x10] sm:$0xff]
        %v283 = vld [vmem:[%s235 + $0x18] sm:$0xff]
        %v284 = vld [vmem:[%s235 + $0x20] sm:$0xff]
        %v285 = vld [vmem:[%s235 + $0x28] sm:$0xff]
        %v286 = vld [vmem:[%s235 + $0x30] sm:$0xff]
        %v287 = vld [vmem:[%s235 + $0x38] sm:$0xff]
        %v288 = vld [vmem:[%s235 + $0x40] sm:$0xff]
        %v289 = vld [vmem:[%s235 + $0x48] sm:$0xff]
        %v290 = vld [vmem:[%s235 + $0x50] sm:$0xff]
        %v291 = vld [vmem:[%s235 + $0x58] sm:$0xff]
        %v292 = vld [vmem:[%s235 + $0x60] sm:$0xff]
        %v293 = vld [vmem:[%s235 + $0x68] sm:$0xff]
        %v294 = vld [vmem:[%s235 + $0x70] sm:$0xff]
        %v295 = vld [vmem:[%s235 + $0x78] sm:$0xff]
        %v296 = vld [vmem:[%s235 + $0x80] sm:$0xff]
        %v297 = vld [vmem:[%s235 + $0x88] sm:$0xff]
        %v298 = vld [vmem:[%s235 + $0x90] sm:$0xff]
        %v299 = vld [vmem:[%s235 + $0x98] sm:$0xff]
        %v300 = vld [vmem:[%s235 + $0xa0] sm:$0xff]
        %v301 = vld [vmem:[%s235 + $0xa8] sm:$0xff]
        %v302 = vld [vmem:[%s235 + $0xb0] sm:$0xff]
        %v303 = vld [vmem:[%s235 + $0xb8] sm:$0xff]
        %v304 = vld [vmem:[%s235 + $0xc0] sm:$0xff]
        %v305 = vld [vmem:[%s235 + $0xc8] sm:$0xff]
        %v306 = vld [vmem:[%s235 + $0xd0] sm:$0xff]
        %v307 = vld [vmem:[%s235 + $0xd8] sm:$0xff]
        %v308 = vld [vmem:[%s235 + $0xe0] sm:$0xff]
        %v309 = vld [vmem:[%s235 + $0xe8] sm:$0xff]
        %v310 = vld [vmem:[%s235 + $0xf0] sm:$0xff]
        %v311 = vld [vmem:[%s235 + $0xf8] sm:$0xff]
        %v312 = vld [vmem:[%s235 + $0x100] sm:$0xff]
        %v313 = vld [vmem:[%s235 + $0x108] sm:$0xff]
        %v314 = vld [vmem:[%s235 + $0x110] sm:$0xff]
        %v315 = vld [vmem:[%s235 + $0x118] sm:$0xff]
        %v316 = vld [vmem:[%s235 + $0x120] sm:$0xff]
        %v317 = vld [vmem:[%s235 + $0x128] sm:$0xff]
        %v318 = vld [vmem:[%s235 + $0x130] sm:$0xff]
        %v319 = vld [vmem:[%s235 + $0x138] sm:$0xff]
        %v320 = vld [vmem:[%s235 + $0x140] sm:$0xff]
        %v321 = vld [vmem:[%s235 + $0x148] sm:$0xff]
        %v322 = vld [vmem:[%s235 + $0x150] sm:$0xff]
        %v323 = vld [vmem:[%s235 + $0x158] sm:$0xff]
        %v324 = vld [vmem:[%s235 + $0x160] sm:$0xff]
        %v325 = vld [vmem:[%s235 + $0x168] sm:$0xff]
        %v326 = vld [vmem:[%s235 + $0x170] sm:$0xff]
        %v327 = vld [vmem:[%s235 + $0x178] sm:$0xff]
        %v328 = vld [vmem:[%s235 + $0x180] sm:$0xff]
        %v329 = vld [vmem:[%s235 + $0x188] sm:$0xff]
        %v330 = vld [vmem:[%s235 + $0x190] sm:$0xff]
        %v331 = vld [vmem:[%s235 + $0x198] sm:$0xff]
        %v332 = vld [vmem:[%s235 + $0x1a0] sm:$0xff]
        %v333 = vld [vmem:[%s235 + $0x1a8] sm:$0xff]
        %v334 = vld [vmem:[%s235 + $0x1b0] sm:$0xff]
        %v335 = vld [vmem:[%s235 + $0x1b8] sm:$0xff]
        %v336 = vld [vmem:[%s235 + $0x1c0] sm:$0xff]
        %v337 = vld [vmem:[%s235 + $0x1c8] sm:$0xff]
        %v338 = vld [vmem:[%s235 + $0x1d0] sm:$0xff]
        %v339 = vld [vmem:[%s235 + $0x1d8] sm:$0xff]
        %v340 = vld [vmem:[%s235 + $0x1e0] sm:$0xff]
        %v341 = vld [vmem:[%s235 + $0x1e8] sm:$0xff]
        %v342 = vld [vmem:[%s235 + $0x1f0] sm:$0xff]
        %v343 = vld [vmem:[%s235 + $0x1f8] sm:$0xff]
        %v344 = vld [vmem:[%s235 + $0x200] sm:$0xff]
        %v345 = vld [vmem:[%s235 + $0x208] sm:$0xff]
        %v346 = vld [vmem:[%s235 + $0x210] sm:$0xff]
        %v347 = vld [vmem:[%s235 + $0x218] sm:$0xff]
        %v348 = vld [vmem:[%s235 + $0x220] sm:$0xff]
        %v349 = vld [vmem:[%s235 + $0x228] sm:$0xff]
        %v350 = vld [vmem:[%s235 + $0x230] sm:$0xff]
        %v351 = vld [vmem:[%s235 + $0x238] sm:$0xff]
        %v352 = vld [vmem:[%s235 + $0x240] sm:$0xff]
        %v353 = vld [vmem:[%s235 + $0x248] sm:$0xff]
        %v354 = vld [vmem:[%s235 + $0x250] sm:$0xff]
        %v355 = vld [vmem:[%s235 + $0x258] sm:$0xff]
        %v356 = vld [vmem:[%s235 + $0x260] sm:$0xff]
        %v357 = vld [vmem:[%s235 + $0x268] sm:$0xff]
        %v358 = vld [vmem:[%s235 + $0x270] sm:$0xff]
        %v359 = vld [vmem:[%s235 + $0x278] sm:$0xff]
        %v360 = vld [vmem:[%s235 + $0x280] sm:$0xff]
        %v361 = vld [vmem:[%s235 + $0x288] sm:$0xff]
        %v362 = vld [vmem:[%s235 + $0x290] sm:$0xff]
        %v363 = vld [vmem:[%s235 + $0x298] sm:$0xff]
        %v364 = vld [vmem:[%s235 + $0x2a0] sm:$0xff]
        %v365 = vld [vmem:[%s235 + $0x2a8] sm:$0xff]
        %v366 = vld [vmem:[%s235 + $0x2b0] sm:$0xff]
        %v367 = vld [vmem:[%s235 + $0x2b8] sm:$0xff]
        %v368 = vld [vmem:[%s235 + $0x2c0] sm:$0xff]
        %v369 = vld [vmem:[%s235 + $0x2c8] sm:$0xff]
        %v370 = vld [vmem:[%s235 + $0x2d0] sm:$0xff]
        %v371 = vld [vmem:[%s235 + $0x2d8] sm:$0xff]
        %v372 = vld [vmem:[%s235 + $0x2e0] sm:$0xff]
        %v373 = vld [vmem:[%s235 + $0x2e8] sm:$0xff]
        %v374 = vld [vmem:[%s235 + $0x2f0] sm:$0xff]
        %v375 = vld [vmem:[%s235 + $0x2f8] sm:$0xff]
        %v376 = vld [vmem:[#allocation5] sm:$0xff]
        %v377 = vld [vmem:[#allocation5 + $0x8] sm:$0xff]
        %v378 = vld [vmem:[#allocation5 + $0x10] sm:$0xff]
        %v379 = vld [vmem:[#allocation5 + $0x18] sm:$0xff]
        %v380 = vld [vmem:[#allocation5 + $0x20] sm:$0xff]
        %v381 = vld [vmem:[#allocation5 + $0x28] sm:$0xff]
        %v382 = vld [vmem:[#allocation5 + $0x30] sm:$0xff]
        %v383 = vld [vmem:[#allocation5 + $0x38] sm:$0xff]
        %v384 = vld [vmem:[#allocation5 + $0x40] sm:$0xff]
        %v385 = vld [vmem:[#allocation5 + $0x48] sm:$0xff]
        %v386 = vld [vmem:[#allocation5 + $0x50] sm:$0xff]
        %v387 = vld [vmem:[#allocation5 + $0x58] sm:$0xff]
        %v388 = vld [vmem:[#allocation5 + $0x60] sm:$0xff]
        %v389 = vld [vmem:[#allocation5 + $0x68] sm:$0xff]
        %v390 = vld [vmem:[#allocation5 + $0x70] sm:$0xff]
        %v391 = vld [vmem:[#allocation5 + $0x78] sm:$0xff]
        %v392 = vld [vmem:[#allocation5 + $0x80] sm:$0xff]
        %v393 = vld [vmem:[#allocation5 + $0x88] sm:$0xff]
        %v394 = vld [vmem:[#allocation5 + $0x90] sm:$0xff]
        %v395 = vld [vmem:[#allocation5 + $0x98] sm:$0xff]
        %v396 = vld [vmem:[#allocation5 + $0xa0] sm:$0xff]
        %v397 = vld [vmem:[#allocation5 + $0xa8] sm:$0xff]
        %v398 = vld [vmem:[#allocation5 + $0xb0] sm:$0xff]
        %v399 = vld [vmem:[#allocation5 + $0xb8] sm:$0xff]
        %v400 = vld [vmem:[#allocation5 + $0xc0] sm:$0xff]
        %v401 = vld [vmem:[#allocation5 + $0xc8] sm:$0xff]
        %v402 = vld [vmem:[#allocation5 + $0xd0] sm:$0xff]
        %v403 = vld [vmem:[#allocation5 + $0xd8] sm:$0xff]
        %v404 = vld [vmem:[#allocation5 + $0xe0] sm:$0xff]
        %v405 = vld [vmem:[#allocation5 + $0xe8] sm:$0xff]
        %v406 = vld [vmem:[#allocation5 + $0xf0] sm:$0xff]
        %v407 = vld [vmem:[#allocation5 + $0xf8] sm:$0xff]
        %v408 = vld [vmem:[#allocation5 + $0x100] sm:$0xff]
        %v409 = vld [vmem:[#allocation5 + $0x108] sm:$0xff]
        %v410 = vld [vmem:[#allocation5 + $0x110] sm:$0xff]
        %v411 = vld [vmem:[#allocation5 + $0x118] sm:$0xff]
        %v412 = vld [vmem:[#allocation5 + $0x120] sm:$0xff]
        %v413 = vld [vmem:[#allocation5 + $0x128] sm:$0xff]
        %v414 = vld [vmem:[#allocation5 + $0x130] sm:$0xff]
        %v415 = vld [vmem:[#allocation5 + $0x138] sm:$0xff]
        %v416 = vld [vmem:[#allocation5 + $0x140] sm:$0xff]
        %v417 = vld [vmem:[#allocation5 + $0x148] sm:$0xff]
        %v418 = vld [vmem:[#allocation5 + $0x150] sm:$0xff]
        %v419 = vld [vmem:[#allocation5 + $0x158] sm:$0xff]
        %v420 = vld [vmem:[#allocation5 + $0x160] sm:$0xff]
        %v421 = vld [vmem:[#allocation5 + $0x168] sm:$0xff]
        %v422 = vld [vmem:[#allocation5 + $0x170] sm:$0xff]
        %v423 = vld [vmem:[#allocation5 + $0x178] sm:$0xff]
        %v424 = vld [vmem:[#allocation5 + $0x180] sm:$0xff]
        %v425 = vld [vmem:[#allocation5 + $0x188] sm:$0xff]
        %v426 = vld [vmem:[#allocation5 + $0x190] sm:$0xff]
        %v427 = vld [vmem:[#allocation5 + $0x198] sm:$0xff]
        %v428 = vld [vmem:[#allocation5 + $0x1a0] sm:$0xff]
        %v429 = vld [vmem:[#allocation5 + $0x1a8] sm:$0xff]
        %v430 = vld [vmem:[#allocation5 + $0x1b0] sm:$0xff]
        %v431 = vld [vmem:[#allocation5 + $0x1b8] sm:$0xff]
        %v432 = vld [vmem:[#allocation5 + $0x1c0] sm:$0xff]
        %v433 = vld [vmem:[#allocation5 + $0x1c8] sm:$0xff]
        %v434 = vld [vmem:[#allocation5 + $0x1d0] sm:$0xff]
        %v435 = vld [vmem:[#allocation5 + $0x1d8] sm:$0xff]
        %v436 = vld [vmem:[#allocation5 + $0x1e0] sm:$0xff]
        %v437 = vld [vmem:[#allocation5 + $0x1e8] sm:$0xff]
        %v438 = vld [vmem:[#allocation5 + $0x1f0] sm:$0xff]
        %v439 = vld [vmem:[#allocation5 + $0x1f8] sm:$0xff]
        %v440 = vld [vmem:[#allocation5 + $0x200] sm:$0xff]
        %v441 = vld [vmem:[#allocation5 + $0x208] sm:$0xff]
        %v442 = vld [vmem:[#allocation5 + $0x210] sm:$0xff]
        %v443 = vld [vmem:[#allocation5 + $0x218] sm:$0xff]
        %v444 = vld [vmem:[#allocation5 + $0x220] sm:$0xff]
        %v445 = vld [vmem:[#allocation5 + $0x228] sm:$0xff]
        %v446 = vld [vmem:[#allocation5 + $0x230] sm:$0xff]
        %v447 = vld [vmem:[#allocation5 + $0x238] sm:$0xff]
        %v448 = vld [vmem:[#allocation5 + $0x240] sm:$0xff]
        %v449 = vld [vmem:[#allocation5 + $0x248] sm:$0xff]
        %v450 = vld [vmem:[#allocation5 + $0x250] sm:$0xff]
        %v451 = vld [vmem:[#allocation5 + $0x258] sm:$0xff]
        %v452 = vld [vmem:[#allocation5 + $0x260] sm:$0xff]
        %v453 = vld [vmem:[#allocation5 + $0x268] sm:$0xff]
        %v454 = vld [vmem:[#allocation5 + $0x270] sm:$0xff]
        %v455 = vld [vmem:[#allocation5 + $0x278] sm:$0xff]
        %v456 = vld [vmem:[#allocation5 + $0x280] sm:$0xff]
        %v457 = vld [vmem:[#allocation5 + $0x288] sm:$0xff]
        %v458 = vld [vmem:[#allocation5 + $0x290] sm:$0xff]
        %v459 = vld [vmem:[#allocation5 + $0x298] sm:$0xff]
        %v460 = vld [vmem:[#allocation5 + $0x2a0] sm:$0xff]
        %v461 = vld [vmem:[#allocation5 + $0x2a8] sm:$0xff]
        %v462 = vld [vmem:[#allocation5 + $0x2b0] sm:$0xff]
        %v463 = vld [vmem:[#allocation5 + $0x2b8] sm:$0xff]
        %v464 = vld [vmem:[#allocation5 + $0x2c0] sm:$0xff]
        %v465 = vld [vmem:[#allocation5 + $0x2c8] sm:$0xff]
        %v466 = vld [vmem:[#allocation5 + $0x2d0] sm:$0xff]
        %v467 = vld [vmem:[#allocation5 + $0x2d8] sm:$0xff]
        %v468 = vld [vmem:[#allocation5 + $0x2e0] sm:$0xff]
        %v469 = vld [vmem:[#allocation5 + $0x2e8] sm:$0xff]
        %v470 = vld [vmem:[#allocation5 + $0x2f0] sm:$0xff]
        %v471 = vld [vmem:[#allocation5 + $0x2f8] sm:$0xff]
        %v472 = vld [vmem:[#allocation5 + $0x300] sm:$0xff]
        %v473 = vld [vmem:[#allocation5 + $0x308] sm:$0xff]
        %v474 = vld [vmem:[#allocation5 + $0x310] sm:$0xff]
        %v475 = vld [vmem:[#allocation5 + $0x318] sm:$0xff]
        %v476 = vld [vmem:[#allocation5 + $0x320] sm:$0xff]
        %v477 = vld [vmem:[#allocation5 + $0x328] sm:$0xff]
        %v478 = vld [vmem:[#allocation5 + $0x330] sm:$0xff]
        %v479 = vld [vmem:[#allocation5 + $0x338] sm:$0xff]
        %v480 = vld [vmem:[#allocation5 + $0x340] sm:$0xff]
        %v481 = vld [vmem:[#allocation5 + $0x348] sm:$0xff]
        %v482 = vld [vmem:[#allocation5 + $0x350] sm:$0xff]
        %v483 = vld [vmem:[#allocation5 + $0x358] sm:$0xff]
        %v484 = vld [vmem:[#allocation5 + $0x360] sm:$0xff]
        %v485 = vld [vmem:[#allocation5 + $0x368] sm:$0xff]
        %v486 = vld [vmem:[#allocation5 + $0x370] sm:$0xff]
        %v487 = vld [vmem:[#allocation5 + $0x378] sm:$0xff]
        %v488 = vld [vmem:[#allocation5 + $0x380] sm:$0xff]
        %v489 = vld [vmem:[#allocation5 + $0x388] sm:$0xff]
        %v490 = vld [vmem:[#allocation5 + $0x390] sm:$0xff]
        %v491 = vld [vmem:[#allocation5 + $0x398] sm:$0xff]
        %v492 = vld [vmem:[#allocation5 + $0x3a0] sm:$0xff]
        %v493 = vld [vmem:[#allocation5 + $0x3a8] sm:$0xff]
        %v494 = vld [vmem:[#allocation5 + $0x3b0] sm:$0xff]
        %v495 = vld [vmem:[#allocation5 + $0x3b8] sm:$0xff]
        %v496 = vld [vmem:[#allocation5 + $0x3c0] sm:$0xff]
        %v497 = vld [vmem:[#allocation5 + $0x3c8] sm:$0xff]
        %v498 = vld [vmem:[#allocation5 + $0x3d0] sm:$0xff]
        %v499 = vld [vmem:[#allocation5 + $0x3d8] sm:$0xff]
        %v500 = vld [vmem:[#allocation5 + $0x3e0] sm:$0xff]
        %v501 = vld [vmem:[#allocation5 + $0x3e8] sm:$0xff]
        %v502 = vld [vmem:[#allocation5 + $0x3f0] sm:$0xff]
        %v503 = vld [vmem:[#allocation5 + $0x3f8] sm:$0xff]
        %v504 = vld [vmem:[#allocation5 + $0x400] sm:$0xff]
        %v505 = vld [vmem:[#allocation5 + $0x408] sm:$0xff]
        %v506 = vld [vmem:[#allocation5 + $0x410] sm:$0xff]
        %v507 = vld [vmem:[#allocation5 + $0x418] sm:$0xff]
        %v508 = vld [vmem:[#allocation5 + $0x420] sm:$0xff]
        %v509 = vld [vmem:[#allocation5 + $0x428] sm:$0xff]
        %v510 = vld [vmem:[#allocation5 + $0x430] sm:$0xff]
        %v511 = vld [vmem:[#allocation5 + $0x438] sm:$0xff]
        %v512 = vld [vmem:[#allocation5 + $0x440] sm:$0xff]
        %v513 = vld [vmem:[#allocation5 + $0x448] sm:$0xff]
        %v514 = vld [vmem:[#allocation5 + $0x450] sm:$0xff]
        %v515 = vld [vmem:[#allocation5 + $0x458] sm:$0xff]
        %v516 = vld [vmem:[#allocation5 + $0x460] sm:$0xff]
        %v517 = vld [vmem:[#allocation5 + $0x468] sm:$0xff]
        %v518 = vld [vmem:[#allocation5 + $0x470] sm:$0xff]
        %v519 = vld [vmem:[#allocation5 + $0x478] sm:$0xff]
        %v520 = vld [vmem:[#allocation5 + $0x480] sm:$0xff]
        %v521 = vld [vmem:[#allocation5 + $0x488] sm:$0xff]
        %v522 = vld [vmem:[#allocation5 + $0x490] sm:$0xff]
        %v523 = vld [vmem:[#allocation5 + $0x498] sm:$0xff]
        %v524 = vld [vmem:[#allocation5 + $0x4a0] sm:$0xff]
        %v525 = vld [vmem:[#allocation5 + $0x4a8] sm:$0xff]
        %v526 = vld [vmem:[#allocation5 + $0x4b0] sm:$0xff]
        %v527 = vld [vmem:[#allocation5 + $0x4b8] sm:$0xff]
        %v528 = vld [vmem:[#allocation5 + $0x4c0] sm:$0xff]
        %v529 = vld [vmem:[#allocation5 + $0x4c8] sm:$0xff]
        %v530 = vld [vmem:[#allocation5 + $0x4d0] sm:$0xff]
        %v531 = vld [vmem:[#allocation5 + $0x4d8] sm:$0xff]
        %v532 = vld [vmem:[#allocation5 + $0x4e0] sm:$0xff]
        %v533 = vld [vmem:[#allocation5 + $0x4e8] sm:$0xff]
        %v534 = vld [vmem:[#allocation5 + $0x4f0] sm:$0xff]
        %v535 = vld [vmem:[#allocation5 + $0x4f8] sm:$0xff]
        %v536 = vld [vmem:[#allocation5 + $0x500] sm:$0xff]
        %v537 = vld [vmem:[#allocation5 + $0x508] sm:$0xff]
        %v538 = vld [vmem:[#allocation5 + $0x510] sm:$0xff]
        %v539 = vld [vmem:[#allocation5 + $0x518] sm:$0xff]
        %v540 = vld [vmem:[#allocation5 + $0x520] sm:$0xff]
        %v541 = vld [vmem:[#allocation5 + $0x528] sm:$0xff]
        %v542 = vld [vmem:[#allocation5 + $0x530] sm:$0xff]
        %v543 = vld [vmem:[#allocation5 + $0x538] sm:$0xff]
        %v544 = vld [vmem:[#allocation5 + $0x540] sm:$0xff]
        %v545 = vld [vmem:[#allocation5 + $0x548] sm:$0xff]
        %v546 = vld [vmem:[#allocation5 + $0x550] sm:$0xff]
        %v547 = vld [vmem:[#allocation5 + $0x558] sm:$0xff]
        %v548 = vld [vmem:[#allocation5 + $0x560] sm:$0xff]
        %v549 = vld [vmem:[#allocation5 + $0x568] sm:$0xff]
        %v550 = vld [vmem:[#allocation5 + $0x570] sm:$0xff]
        %v551 = vld [vmem:[#allocation5 + $0x578] sm:$0xff]
        %v552 = vld [vmem:[#allocation5 + $0x580] sm:$0xff]
        %v553 = vld [vmem:[#allocation5 + $0x588] sm:$0xff]
        %v554 = vld [vmem:[#allocation5 + $0x590] sm:$0xff]
        %v555 = vld [vmem:[#allocation5 + $0x598] sm:$0xff]
        %v556 = vld [vmem:[#allocation5 + $0x5a0] sm:$0xff]
        %v557 = vld [vmem:[#allocation5 + $0x5a8] sm:$0xff]
        %v558 = vld [vmem:[#allocation5 + $0x5b0] sm:$0xff]
        %v559 = vld [vmem:[#allocation5 + $0x5b8] sm:$0xff]
        %v560 = vld [vmem:[#allocation5 + $0x5c0] sm:$0xff]
        %v561 = vld [vmem:[#allocation5 + $0x5c8] sm:$0xff]
        %v562 = vld [vmem:[#allocation5 + $0x5d0] sm:$0xff]
        %v563 = vld [vmem:[#allocation5 + $0x5d8] sm:$0xff]
        %v564 = vld [vmem:[#allocation5 + $0x5e0] sm:$0xff]
        %v565 = vld [vmem:[#allocation5 + $0x5e8] sm:$0xff]
        %v566 = vld [vmem:[#allocation5 + $0x5f0] sm:$0xff]
        %v567 = vld [vmem:[#allocation5 + $0x5f8] sm:$0xff]
        %v568 = vld [vmem:[#allocation5 + $0x600] sm:$0xff]
        %v569 = vld [vmem:[#allocation5 + $0x608] sm:$0xff]
        %v570 = vld [vmem:[#allocation5 + $0x610] sm:$0xff]
        %v571 = vld [vmem:[#allocation5 + $0x618] sm:$0xff]
        %v572 = vld [vmem:[#allocation5 + $0x620] sm:$0xff]
        %v573 = vld [vmem:[#allocation5 + $0x628] sm:$0xff]
        %v574 = vld [vmem:[#allocation5 + $0x630] sm:$0xff]
        %v575 = vld [vmem:[#allocation5 + $0x638] sm:$0xff]
        %v576 = vld [vmem:[#allocation5 + $0x640] sm:$0xff]
        %v577 = vld [vmem:[#allocation5 + $0x648] sm:$0xff]
        %v578 = vld [vmem:[#allocation5 + $0x650] sm:$0xff]
        %v579 = vld [vmem:[#allocation5 + $0x658] sm:$0xff]
        %v580 = vld [vmem:[#allocation5 + $0x660] sm:$0xff]
        %v581 = vld [vmem:[#allocation5 + $0x668] sm:$0xff]
        %v582 = vld [vmem:[#allocation5 + $0x670] sm:$0xff]
        %v583 = vld [vmem:[#allocation5 + $0x678] sm:$0xff]
        %v584 = vld [vmem:[#allocation5 + $0x680] sm:$0xff]
        %v585 = vld [vmem:[#allocation5 + $0x688] sm:$0xff]
        %v586 = vld [vmem:[#allocation5 + $0x690] sm:$0xff]
        %v587 = vld [vmem:[#allocation5 + $0x698] sm:$0xff]
        %v588 = vld [vmem:[#allocation5 + $0x6a0] sm:$0xff]
        %v589 = vld [vmem:[#allocation5 + $0x6a8] sm:$0xff]
        %v590 = vld [vmem:[#allocation5 + $0x6b0] sm:$0xff]
        %v591 = vld [vmem:[#allocation5 + $0x6b8] sm:$0xff]
        %v592 = vld [vmem:[#allocation5 + $0x6c0] sm:$0xff]
        %v593 = vld [vmem:[#allocation5 + $0x6c8] sm:$0xff]
        %v594 = vld [vmem:[#allocation5 + $0x6d0] sm:$0xff]
        %v595 = vld [vmem:[#allocation5 + $0x6d8] sm:$0xff]
        %v596 = vld [vmem:[#allocation5 + $0x6e0] sm:$0xff]
        %v597 = vld [vmem:[#allocation5 + $0x6e8] sm:$0xff]
        %v598 = vld [vmem:[#allocation5 + $0x6f0] sm:$0xff]
        %v599 = vld [vmem:[#allocation5 + $0x6f8] sm:$0xff]
        %v600 = vld [vmem:[#allocation5 + $0x700] sm:$0xff]
        %v601 = vld [vmem:[#allocation5 + $0x708] sm:$0xff]
        %v602 = vld [vmem:[#allocation5 + $0x710] sm:$0xff]
        %v603 = vld [vmem:[#allocation5 + $0x718] sm:$0xff]
        %v604 = vld [vmem:[#allocation5 + $0x720] sm:$0xff]
        %v605 = vld [vmem:[#allocation5 + $0x728] sm:$0xff]
        %v606 = vld [vmem:[#allocation5 + $0x730] sm:$0xff]
        %v607 = vld [vmem:[#allocation5 + $0x738] sm:$0xff]
        %v608 = vld [vmem:[#allocation5 + $0x740] sm:$0xff]
        %v609 = vld [vmem:[#allocation5 + $0x748] sm:$0xff]
        %v610 = vld [vmem:[#allocation5 + $0x750] sm:$0xff]
        %v611 = vld [vmem:[#allocation5 + $0x758] sm:$0xff]
        %v612 = vld [vmem:[#allocation5 + $0x760] sm:$0xff]
        %v613 = vld [vmem:[#allocation5 + $0x768] sm:$0xff]
        %v614 = vld [vmem:[#allocation5 + $0x770] sm:$0xff]
        %v615 = vld [vmem:[#allocation5 + $0x778] sm:$0xff]
        %v616 = vld [vmem:[#allocation5 + $0x780] sm:$0xff]
        %v617 = vld [vmem:[#allocation5 + $0x788] sm:$0xff]
        %v618 = vld [vmem:[#allocation5 + $0x790] sm:$0xff]
        %v619 = vld [vmem:[#allocation5 + $0x798] sm:$0xff]
        %v620 = vld [vmem:[#allocation5 + $0x7a0] sm:$0xff]
        %v621 = vld [vmem:[#allocation5 + $0x7a8] sm:$0xff]
        %v622 = vld [vmem:[#allocation5 + $0x7b0] sm:$0xff]
        %v623 = vld [vmem:[#allocation5 + $0x7b8] sm:$0xff]
        %v624 = vld [vmem:[#allocation5 + $0x7c0] sm:$0xff]
        %v625 = vld [vmem:[#allocation5 + $0x7c8] sm:$0xff]
        %v626 = vld [vmem:[#allocation5 + $0x7d0] sm:$0xff]
        %v627 = vld [vmem:[#allocation5 + $0x7d8] sm:$0xff]
        %v628 = vld [vmem:[#allocation5 + $0x7e0] sm:$0xff]
        %v629 = vld [vmem:[#allocation5 + $0x7e8] sm:$0xff]
        %v630 = vld [vmem:[#allocation5 + $0x7f0] sm:$0xff]
        %v631 = vld [vmem:[#allocation5 + $0x7f8] sm:$0xff]
        %v632 = vld [vmem:[#allocation5 + $0x800] sm:$0xff]
        %v633 = vld [vmem:[#allocation5 + $0x808] sm:$0xff]
        %v634 = vld [vmem:[#allocation5 + $0x810] sm:$0xff]
        %v635 = vld [vmem:[#allocation5 + $0x818] sm:$0xff]
        %v636 = vld [vmem:[#allocation5 + $0x820] sm:$0xff]
        %v637 = vld [vmem:[#allocation5 + $0x828] sm:$0xff]
        %v638 = vld [vmem:[#allocation5 + $0x830] sm:$0xff]
        %v639 = vld [vmem:[#allocation5 + $0x838] sm:$0xff]
        %v640 = vld [vmem:[#allocation5 + $0x840] sm:$0xff]
        %v641 = vld [vmem:[#allocation5 + $0x848] sm:$0xff]
        %v642 = vld [vmem:[#allocation5 + $0x850] sm:$0xff]
        %v643 = vld [vmem:[#allocation5 + $0x858] sm:$0xff]
        %v644 = vld [vmem:[#allocation5 + $0x860] sm:$0xff]
        %v645 = vld [vmem:[#allocation5 + $0x868] sm:$0xff]
        %v646 = vld [vmem:[#allocation5 + $0x870] sm:$0xff]
        %v647 = vld [vmem:[#allocation5 + $0x878] sm:$0xff]
        %v648 = vld [vmem:[#allocation5 + $0x880] sm:$0xff]
        %v649 = vld [vmem:[#allocation5 + $0x888] sm:$0xff]
        %v650 = vld [vmem:[#allocation5 + $0x890] sm:$0xff]
        %v651 = vld [vmem:[#allocation5 + $0x898] sm:$0xff]
        %v652 = vld [vmem:[#allocation5 + $0x8a0] sm:$0xff]
        %v653 = vld [vmem:[#allocation5 + $0x8a8] sm:$0xff]
        %v654 = vld [vmem:[#allocation5 + $0x8b0] sm:$0xff]
        %v655 = vld [vmem:[#allocation5 + $0x8b8] sm:$0xff]
        %v656 = vld [vmem:[#allocation5 + $0x8c0] sm:$0xff]
        %v657 = vld [vmem:[#allocation5 + $0x8c8] sm:$0xff]
        %v658 = vld [vmem:[#allocation5 + $0x8d0] sm:$0xff]
        %v659 = vld [vmem:[#allocation5 + $0x8d8] sm:$0xff]
        %v660 = vld [vmem:[#allocation5 + $0x8e0] sm:$0xff]
        %v661 = vld [vmem:[#allocation5 + $0x8e8] sm:$0xff]
        %v662 = vld [vmem:[#allocation5 + $0x8f0] sm:$0xff]
        %v663 = vld [vmem:[#allocation5 + $0x8f8] sm:$0xff]
        %v664 = vld [vmem:[#allocation5 + $0x900] sm:$0xff]
        %v665 = vld [vmem:[#allocation5 + $0x908] sm:$0xff]
        %v666 = vld [vmem:[#allocation5 + $0x910] sm:$0xff]
        %v667 = vld [vmem:[#allocation5 + $0x918] sm:$0xff]
        %v668 = vld [vmem:[#allocation5 + $0x920] sm:$0xff]
        %v669 = vld [vmem:[#allocation5 + $0x928] sm:$0xff]
        %v670 = vld [vmem:[#allocation5 + $0x930] sm:$0xff]
        %v671 = vld [vmem:[#allocation5 + $0x938] sm:$0xff]
        %v672 = vld [vmem:[#allocation5 + $0x940] sm:$0xff]
        %v673 = vld [vmem:[#allocation5 + $0x948] sm:$0xff]
        %v674 = vld [vmem:[#allocation5 + $0x950] sm:$0xff]
        %v675 = vld [vmem:[#allocation5 + $0x958] sm:$0xff]
        %v676 = vld [vmem:[#allocation5 + $0x960] sm:$0xff]
        %v677 = vld [vmem:[#allocation5 + $0x968] sm:$0xff]
        %v678 = vld [vmem:[#allocation5 + $0x970] sm:$0xff]
        %v679 = vld [vmem:[#allocation5 + $0x978] sm:$0xff]
        %v680 = vld [vmem:[#allocation5 + $0x980] sm:$0xff]
        %v681 = vld [vmem:[#allocation5 + $0x988] sm:$0xff]
        %v682 = vld [vmem:[#allocation5 + $0x990] sm:$0xff]
        %v683 = vld [vmem:[#allocation5 + $0x998] sm:$0xff]
        %v684 = vld [vmem:[#allocation5 + $0x9a0] sm:$0xff]
        %v685 = vld [vmem:[#allocation5 + $0x9a8] sm:$0xff]
        %v686 = vld [vmem:[#allocation5 + $0x9b0] sm:$0xff]
        %v687 = vld [vmem:[#allocation5 + $0x9b8] sm:$0xff]
        %v688 = vld [vmem:[#allocation5 + $0x9c0] sm:$0xff]
        %v689 = vld [vmem:[#allocation5 + $0x9c8] sm:$0xff]
        %v690 = vld [vmem:[#allocation5 + $0x9d0] sm:$0xff]
        %v691 = vld [vmem:[#allocation5 + $0x9d8] sm:$0xff]
        %v692 = vld [vmem:[#allocation5 + $0x9e0] sm:$0xff]
        %v693 = vld [vmem:[#allocation5 + $0x9e8] sm:$0xff]
        %v694 = vld [vmem:[#allocation5 + $0x9f0] sm:$0xff]
        %v695 = vld [vmem:[#allocation5 + $0x9f8] sm:$0xff]
        %v696 = vld [vmem:[#allocation5 + $0xa00] sm:$0xff]
        %v697 = vld [vmem:[#allocation5 + $0xa08] sm:$0xff]
        %v698 = vld [vmem:[#allocation5 + $0xa10] sm:$0xff]
        %v699 = vld [vmem:[#allocation5 + $0xa18] sm:$0xff]
        %v700 = vld [vmem:[#allocation5 + $0xa20] sm:$0xff]
        %v701 = vld [vmem:[#allocation5 + $0xa28] sm:$0xff]
        %v702 = vld [vmem:[#allocation5 + $0xa30] sm:$0xff]
        %v703 = vld [vmem:[#allocation5 + $0xa38] sm:$0xff]
        %v704 = vld [vmem:[#allocation5 + $0xa40] sm:$0xff]
        %v705 = vld [vmem:[#allocation5 + $0xa48] sm:$0xff]
        %v706 = vld [vmem:[#allocation5 + $0xa50] sm:$0xff]
        %v707 = vld [vmem:[#allocation5 + $0xa58] sm:$0xff]
        %v708 = vld [vmem:[#allocation5 + $0xa60] sm:$0xff]
        %v709 = vld [vmem:[#allocation5 + $0xa68] sm:$0xff]
        %v710 = vld [vmem:[#allocation5 + $0xa70] sm:$0xff]
        %v711 = vld [vmem:[#allocation5 + $0xa78] sm:$0xff]
        %v712 = vld [vmem:[#allocation5 + $0xa80] sm:$0xff]
        %v713 = vld [vmem:[#allocation5 + $0xa88] sm:$0xff]
        %v714 = vld [vmem:[#allocation5 + $0xa90] sm:$0xff]
        %v715 = vld [vmem:[#allocation5 + $0xa98] sm:$0xff]
        %v716 = vld [vmem:[#allocation5 + $0xaa0] sm:$0xff]
        %v717 = vld [vmem:[#allocation5 + $0xaa8] sm:$0xff]
        %v718 = vld [vmem:[#allocation5 + $0xab0] sm:$0xff]
        %v719 = vld [vmem:[#allocation5 + $0xab8] sm:$0xff]
        %v720 = vld [vmem:[#allocation5 + $0xac0] sm:$0xff]
        %v721 = vld [vmem:[#allocation5 + $0xac8] sm:$0xff]
        %v722 = vld [vmem:[#allocation5 + $0xad0] sm:$0xff]
        %v723 = vld [vmem:[#allocation5 + $0xad8] sm:$0xff]
        %v724 = vld [vmem:[#allocation5 + $0xae0] sm:$0xff]
        %v725 = vld [vmem:[#allocation5 + $0xae8] sm:$0xff]
        %v726 = vld [vmem:[#allocation5 + $0xaf0] sm:$0xff]
        %v727 = vld [vmem:[#allocation5 + $0xaf8] sm:$0xff]
        %v728 = vld [vmem:[#allocation5 + $0xb00] sm:$0xff]
        %v729 = vld [vmem:[#allocation5 + $0xb08] sm:$0xff]
        %v730 = vld [vmem:[#allocation5 + $0xb10] sm:$0xff]
        %v731 = vld [vmem:[#allocation5 + $0xb18] sm:$0xff]
        %v732 = vld [vmem:[#allocation5 + $0xb20] sm:$0xff]
        %v733 = vld [vmem:[#allocation5 + $0xb28] sm:$0xff]
        %v734 = vld [vmem:[#allocation5 + $0xb30] sm:$0xff]
        %v735 = vld [vmem:[#allocation5 + $0xb38] sm:$0xff]
        %v736 = vld [vmem:[#allocation5 + $0xb40] sm:$0xff]
        %v737 = vld [vmem:[#allocation5 + $0xb48] sm:$0xff]
        %v738 = vld [vmem:[#allocation5 + $0xb50] sm:$0xff]
        %v739 = vld [vmem:[#allocation5 + $0xb58] sm:$0xff]
        %v740 = vld [vmem:[#allocation5 + $0xb60] sm:$0xff]
        %v741 = vld [vmem:[#allocation5 + $0xb68] sm:$0xff]
        %v742 = vld [vmem:[#allocation5 + $0xb70] sm:$0xff]
        %v743 = vld [vmem:[#allocation5 + $0xb78] sm:$0xff]
        %v744 = vld [vmem:[#allocation5 + $0xb80] sm:$0xff]
        %v745 = vld [vmem:[#allocation5 + $0xb88] sm:$0xff]
        %v746 = vld [vmem:[#allocation5 + $0xb90] sm:$0xff]
        %v747 = vld [vmem:[#allocation5 + $0xb98] sm:$0xff]
        %v748 = vld [vmem:[#allocation5 + $0xba0] sm:$0xff]
        %v749 = vld [vmem:[#allocation5 + $0xba8] sm:$0xff]
        %v750 = vld [vmem:[#allocation5 + $0xbb0] sm:$0xff]
        %v751 = vld [vmem:[#allocation5 + $0xbb8] sm:$0xff]
        %v752 = vld [vmem:[#allocation5 + $0xbc0] sm:$0xff]
        %v753 = vld [vmem:[#allocation5 + $0xbc8] sm:$0xff]
        %v754 = vld [vmem:[#allocation5 + $0xbd0] sm:$0xff]
        %v755 = vld [vmem:[#allocation5 + $0xbd8] sm:$0xff]
        %v756 = vld [vmem:[#allocation5 + $0xbe0] sm:$0xff]
        %v757 = vld [vmem:[#allocation5 + $0xbe8] sm:$0xff]
        %v758 = vld [vmem:[#allocation5 + $0xbf0] sm:$0xff]
        %v759 = vld [vmem:[#allocation5 + $0xbf8] sm:$0xff]
        %v760 = vld [vmem:[#allocation5 + $0xc00] sm:$0xff]
        %v761 = vld [vmem:[#allocation5 + $0xc08] sm:$0xff]
        %v762 = vld [vmem:[#allocation5 + $0xc10] sm:$0xff]
        %v763 = vld [vmem:[#allocation5 + $0xc18] sm:$0xff]
        %v764 = vld [vmem:[#allocation5 + $0xc20] sm:$0xff]
        %v765 = vld [vmem:[#allocation5 + $0xc28] sm:$0xff]
        %v766 = vld [vmem:[#allocation5 + $0xc30] sm:$0xff]
        %v767 = vld [vmem:[#allocation5 + $0xc38] sm:$0xff]
        %v768 = vld [vmem:[#allocation5 + $0xc40] sm:$0xff]
        %v769 = vld [vmem:[#allocation5 + $0xc48] sm:$0xff]
        %v770 = vld [vmem:[#allocation5 + $0xc50] sm:$0xff]
        %v771 = vld [vmem:[#allocation5 + $0xc58] sm:$0xff]
        %v772 = vld [vmem:[#allocation5 + $0xc60] sm:$0xff]
        %v773 = vld [vmem:[#allocation5 + $0xc68] sm:$0xff]
        %v774 = vld [vmem:[#allocation5 + $0xc70] sm:$0xff]
        %v775 = vld [vmem:[#allocation5 + $0xc78] sm:$0xff]
        %v776 = vld [vmem:[#allocation5 + $0xc80] sm:$0xff]
        %v777 = vld [vmem:[#allocation5 + $0xc88] sm:$0xff]
        %v778 = vld [vmem:[#allocation5 + $0xc90] sm:$0xff]
        %v779 = vld [vmem:[#allocation5 + $0xc98] sm:$0xff]
        %v780 = vld [vmem:[#allocation5 + $0xca0] sm:$0xff]
        %v781 = vld [vmem:[#allocation5 + $0xca8] sm:$0xff]
        %v782 = vld [vmem:[#allocation5 + $0xcb0] sm:$0xff]
        %v783 = vld [vmem:[#allocation5 + $0xcb8] sm:$0xff]
        %v784 = vld [vmem:[#allocation5 + $0xcc0] sm:$0xff]
        %v785 = vld [vmem:[#allocation5 + $0xcc8] sm:$0xff]
        %v786 = vld [vmem:[#allocation5 + $0xcd0] sm:$0xff]
        %v787 = vld [vmem:[#allocation5 + $0xcd8] sm:$0xff]
        %v788 = vld [vmem:[#allocation5 + $0xce0] sm:$0xff]
        %v789 = vld [vmem:[#allocation5 + $0xce8] sm:$0xff]
        %v790 = vld [vmem:[#allocation5 + $0xcf0] sm:$0xff]
        %v791 = vld [vmem:[#allocation5 + $0xcf8] sm:$0xff]
        %v792 = vld [vmem:[#allocation5 + $0xd00] sm:$0xff]
        %v793 = vld [vmem:[#allocation5 + $0xd08] sm:$0xff]
        %v794 = vld [vmem:[#allocation5 + $0xd10] sm:$0xff]
        %v795 = vld [vmem:[#allocation5 + $0xd18] sm:$0xff]
        %v796 = vld [vmem:[#allocation5 + $0xd20] sm:$0xff]
        %v797 = vld [vmem:[#allocation5 + $0xd28] sm:$0xff]
        %v798 = vld [vmem:[#allocation5 + $0xd30] sm:$0xff]
        %v799 = vld [vmem:[#allocation5 + $0xd38] sm:$0xff]
        %v800 = vld [vmem:[#allocation5 + $0xd40] sm:$0xff]
        %v801 = vld [vmem:[#allocation5 + $0xd48] sm:$0xff]
        %v802 = vld [vmem:[#allocation5 + $0xd50] sm:$0xff]
        %v803 = vld [vmem:[#allocation5 + $0xd58] sm:$0xff]
        %v804 = vld [vmem:[#allocation5 + $0xd60] sm:$0xff]
        %v805 = vld [vmem:[#allocation5 + $0xd68] sm:$0xff]
        %v806 = vld [vmem:[#allocation5 + $0xd70] sm:$0xff]
        %v807 = vld [vmem:[#allocation5 + $0xd78] sm:$0xff]
        %808 = vmatpush.msra.mxu0 %v511
        %809 = vmatpush.msra.mxu0 %v502
        %810 = vmatpush.msra.mxu0 %v493
        %811 = vmatpush.msra.mxu0 %v484
        %812 = vmatpush.msra.mxu0 %v475
        %813 = vmatpush.msra.mxu0 %v466
        %814 = vmatpush.msra.mxu0 %v457
        %815 = vmatpush.msra.mxu0 %v448
        %816 = vmatpush.msra.mxu0 %v439
        %817 = vmatpush.msra.mxu0 %v430
        %818 = vmatpush.msra.mxu0 %v421
        %819 = vmatpush.msra.mxu0 %v412
        %820 = vmatpush.msra.mxu0 %v403
        %821 = vmatpush.msra.mxu0 %v394
        %822 = vmatpush.msra.mxu0 %v385
        %823 = vmatpush.msra.mxu0 %v376
        %824 = vmatmul.f32.gmra.mxu0 %v280
        %v825 = vpop.f32.mrf.mxu0
        %v826 = vadd.f32 0.0, %v825
        %827 = vmatmul.f32.gmra.mxu0 %v283
        %v828 = vpop.f32.mrf.mxu0
        %v829 = vadd.f32 0.0, %v828
        %830 = vmatmul.f32.gmra.mxu0 %v286
        %v831 = vpop.f32.mrf.mxu0
        %v832 = vadd.f32 0.0, %v831
        %833 = vmatmul.f32.gmra.mxu0 %v289
        %v834 = vpop.f32.mrf.mxu0
        %v835 = vadd.f32 0.0, %v834
        %836 = vmatmul.f32.gmra.mxu0 %v292
        %v837 = vpop.f32.mrf.mxu0
        %v838 = vadd.f32 0.0, %v837
        %839 = vmatmul.f32.gmra.mxu0 %v295
        %v840 = vpop.f32.mrf.mxu0
        %v841 = vadd.f32 0.0, %v840
        %842 = vmatmul.f32.gmra.mxu0 %v298
        %v843 = vpop.f32.mrf.mxu0
        %v844 = vadd.f32 0.0, %v843
        %845 = vmatmul.f32.gmra.mxu0 %v301
        %v846 = vpop.f32.mrf.mxu0
        %v847 = vadd.f32 0.0, %v846
        %848 = vmatmul.f32.gmra.mxu0 %v304
        %v849 = vpop.f32.mrf.mxu0
        %v850 = vadd.f32 0.0, %v849
        %851 = vmatmul.f32.gmra.mxu0 %v307
        %v852 = vpop.f32.mrf.mxu0
        %v853 = vadd.f32 0.0, %v852
        %854 = vmatmul.f32.gmra.mxu0 %v310
        %v855 = vpop.f32.mrf.mxu0
        %v856 = vadd.f32 0.0, %v855
        %857 = vmatmul.f32.gmra.mxu0 %v313
        %v858 = vpop.f32.mrf.mxu0
        %v859 = vadd.f32 0.0, %v858
        %860 = vmatmul.f32.gmra.mxu0 %v316
        %v861 = vpop.f32.mrf.mxu0
        %v862 = vadd.f32 0.0, %v861
        %863 = vmatmul.f32.gmra.mxu0 %v319
        %v864 = vpop.f32.mrf.mxu0
        %v865 = vadd.f32 0.0, %v864
        %866 = vmatmul.f32.gmra.mxu0 %v322
        %v867 = vpop.f32.mrf.mxu0
        %v868 = vadd.f32 0.0, %v867
        %869 = vmatmul.f32.gmra.mxu0 %v325
        %v870 = vpop.f32.mrf.mxu0
        %v871 = vadd.f32 0.0, %v870
        %872 = vmatmul.f32.gmra.mxu0 %v328
        %v873 = vpop.f32.mrf.mxu0
        %v874 = vadd.f32 0.0, %v873
        %875 = vmatmul.f32.gmra.mxu0 %v331
        %v876 = vpop.f32.mrf.mxu0
        %v877 = vadd.f32 0.0, %v876
        %878 = vmatmul.f32.gmra.mxu0 %v334
        %v879 = vpop.f32.mrf.mxu0
        %v880 = vadd.f32 0.0, %v879
        %881 = vmatmul.f32.gmra.mxu0 %v337
        %v882 = vpop.f32.mrf.mxu0
        %v883 = vadd.f32 0.0, %v882
        %884 = vmatmul.f32.gmra.mxu0 %v340
        %v885 = vpop.f32.mrf.mxu0
        %v886 = vadd.f32 0.0, %v885
        %887 = vmatmul.f32.gmra.mxu0 %v343
        %v888 = vpop.f32.mrf.mxu0
        %v889 = vadd.f32 0.0, %v888
        %890 = vmatmul.f32.gmra.mxu0 %v346
        %v891 = vpop.f32.mrf.mxu0
        %v892 = vadd.f32 0.0, %v891
        %893 = vmatmul.f32.gmra.mxu0 %v349
        %v894 = vpop.f32.mrf.mxu0
        %v895 = vadd.f32 0.0, %v894
        %896 = vmatmul.f32.gmra.mxu0 %v352
        %v897 = vpop.f32.mrf.mxu0
        %v898 = vadd.f32 0.0, %v897
        %899 = vmatmul.f32.gmra.mxu0 %v355
        %v900 = vpop.f32.mrf.mxu0
        %v901 = vadd.f32 0.0, %v900
        %902 = vmatmul.f32.gmra.mxu0 %v358
        %v903 = vpop.f32.mrf.mxu0
        %v904 = vadd.f32 0.0, %v903
        %905 = vmatmul.f32.gmra.mxu0 %v361
        %v906 = vpop.f32.mrf.mxu0
        %v907 = vadd.f32 0.0, %v906
        %908 = vmatmul.f32.gmra.mxu0 %v364
        %v909 = vpop.f32.mrf.mxu0
        %v910 = vadd.f32 0.0, %v909
        %911 = vmatmul.f32.gmra.mxu0 %v367
        %v912 = vpop.f32.mrf.mxu0
        %v913 = vadd.f32 0.0, %v912
        %914 = vmatmul.f32.gmra.mxu0 %v370
        %v915 = vpop.f32.mrf.mxu0
        %v916 = vadd.f32 0.0, %v915
        %917 = vmatmul.f32.gmra.mxu0 %v373
        %v918 = vpop.f32.mrf.mxu0
        %v919 = vadd.f32 0.0, %v918
        %920 = vdwg.mxu0
        %921 = vmatpush.msra.mxu0 %v655
        %922 = vmatpush.msra.mxu0 %v646
        %923 = vmatpush.msra.mxu0 %v637
        %924 = vmatpush.msra.mxu0 %v628
        %925 = vmatpush.msra.mxu0 %v619
        %926 = vmatpush.msra.mxu0 %v610
        %927 = vmatpush.msra.mxu0 %v601
        %928 = vmatpush.msra.mxu0 %v592
        %929 = vmatpush.msra.mxu0 %v583
        %930 = vmatpush.msra.mxu0 %v574
        %931 = vmatpush.msra.mxu0 %v565
        %932 = vmatpush.msra.mxu0 %v556
        %933 = vmatpush.msra.mxu0 %v547
        %934 = vmatpush.msra.mxu0 %v538
        %935 = vmatpush.msra.mxu0 %v529
        %936 = vmatpush.msra.mxu0 %v520
        %937 = vmatmul.f32.gmra.mxu0 %v281
        %v938 = vpop.f32.mrf.mxu0
        %v939 = vadd.f32 %v826, %v938
        %940 = vmatmul.f32.gmra.mxu0 %v284
        %v941 = vpop.f32.mrf.mxu0
        %v942 = vadd.f32 %v829, %v941
        %943 = vmatmul.f32.gmra.mxu0 %v287
        %v944 = vpop.f32.mrf.mxu0
        %v945 = vadd.f32 %v832, %v944
        %946 = vmatmul.f32.gmra.mxu0 %v290
        %v947 = vpop.f32.mrf.mxu0
        %v948 = vadd.f32 %v835, %v947
        %949 = vmatmul.f32.gmra.mxu0 %v293
        %v950 = vpop.f32.mrf.mxu0
        %v951 = vadd.f32 %v838, %v950
        %952 = vmatmul.f32.gmra.mxu0 %v296
        %v953 = vpop.f32.mrf.mxu0
        %v954 = vadd.f32 %v841, %v953
        %955 = vmatmul.f32.gmra.mxu0 %v299
        %v956 = vpop.f32.mrf.mxu0
        %v957 = vadd.f32 %v844, %v956
        %958 = vmatmul.f32.gmra.mxu0 %v302
        %v959 = vpop.f32.mrf.mxu0
        %v960 = vadd.f32 %v847, %v959
        %961 = vmatmul.f32.gmra.mxu0 %v305
        %v962 = vpop.f32.mrf.mxu0
        %v963 = vadd.f32 %v850, %v962
        %964 = vmatmul.f32.gmra.mxu0 %v308
        %v965 = vpop.f32.mrf.mxu0
        %v966 = vadd.f32 %v853, %v965
        %967 = vmatmul.f32.gmra.mxu0 %v311
        %v968 = vpop.f32.mrf.mxu0
        %v969 = vadd.f32 %v856, %v968
        %970 = vmatmul.f32.gmra.mxu0 %v314
        %v971 = vpop.f32.mrf.mxu0
        %v972 = vadd.f32 %v859, %v971
        %973 = vmatmul.f32.gmra.mxu0 %v317
        %v974 = vpop.f32.mrf.mxu0
        %v975 = vadd.f32 %v862, %v974
        %976 = vmatmul.f32.gmra.mxu0 %v320
        %v977 = vpop.f32.mrf.mxu0
        %v978 = vadd.f32 %v865, %v977
        %979 = vmatmul.f32.gmra.mxu0 %v323
        %v980 = vpop.f32.mrf.mxu0
        %v981 = vadd.f32 %v868, %v980
        %982 = vmatmul.f32.gmra.mxu0 %v326
        %v983 = vpop.f32.mrf.mxu0
        %v984 = vadd.f32 %v871, %v983
        %985 = vmatmul.f32.gmra.mxu0 %v329
        %v986 = vpop.f32.mrf.mxu0
        %v987 = vadd.f32 %v874, %v986
        %988 = vmatmul.f32.gmra.mxu0 %v332
        %v989 = vpop.f32.mrf.mxu0
        %v990 = vadd.f32 %v877, %v989
        %991 = vmatmul.f32.gmra.mxu0 %v335
        %v992 = vpop.f32.mrf.mxu0
        %v993 = vadd.f32 %v880, %v992
        %994 = vmatmul.f32.gmra.mxu0 %v338
        %v995 = vpop.f32.mrf.mxu0
        %v996 = vadd.f32 %v883, %v995
        %997 = vmatmul.f32.gmra.mxu0 %v341
        %v998 = vpop.f32.mrf.mxu0
        %v999 = vadd.f32 %v886, %v998
        %1000 = vmatmul.f32.gmra.mxu0 %v344
        %v1001 = vpop.f32.mrf.mxu0
        %v1002 = vadd.f32 %v889, %v1001
        %1003 = vmatmul.f32.gmra.mxu0 %v347
        %v1004 = vpop.f32.mrf.mxu0
        %v1005 = vadd.f32 %v892, %v1004
        %1006 = vmatmul.f32.gmra.mxu0 %v350
        %v1007 = vpop.f32.mrf.mxu0
        %v1008 = vadd.f32 %v895, %v1007
        %1009 = vmatmul.f32.gmra.mxu0 %v353
        %v1010 = vpop.f32.mrf.mxu0
        %v1011 = vadd.f32 %v898, %v1010
        %1012 = vmatmul.f32.gmra.mxu0 %v356
        %v1013 = vpop.f32.mrf.mxu0
        %v1014 = vadd.f32 %v901, %v1013
        %1015 = vmatmul.f32.gmra.mxu0 %v359
        %v1016 = vpop.f32.mrf.mxu0
        %v1017 = vadd.f32 %v904, %v1016
        %1018 = vmatmul.f32.gmra.mxu0 %v362
        %v1019 = vpop.f32.mrf.mxu0
        %v1020 = vadd.f32 %v907, %v1019
        %1021 = vmatmul.f32.gmra.mxu0 %v365
        %v1022 = vpop.f32.mrf.mxu0
        %v1023 = vadd.f32 %v910, %v1022
        %1024 = vmatmul.f32.gmra.mxu0 %v368
        %v1025 = vpop.f32.mrf.mxu0
        %v1026 = vadd.f32 %v913, %v1025
        %1027 = vmatmul.f32.gmra.mxu0 %v371
        %v1028 = vpop.f32.mrf.mxu0
        %v1029 = vadd.f32 %v916, %v1028
        %1030 = vmatmul.f32.gmra.mxu0 %v374
        %v1031 = vpop.f32.mrf.mxu0
        %v1032 = vadd.f32 %v919, %v1031
        %1033 = vdwg.mxu0
        %1034 = vmatpush.msra.mxu0 %v799
        %1035 = vmatpush.msra.mxu0 %v790
        %1036 = vmatpush.msra.mxu0 %v781
        %1037 = vmatpush.msra.mxu0 %v772
        %1038 = vmatpush.msra.mxu0 %v763
        %1039 = vmatpush.msra.mxu0 %v754
        %1040 = vmatpush.msra.mxu0 %v745
        %1041 = vmatpush.msra.mxu0 %v736
        %1042 = vmatpush.msra.mxu0 %v727
        %1043 = vmatpush.msra.mxu0 %v718
        %1044 = vmatpush.msra.mxu0 %v709
        %1045 = vmatpush.msra.mxu0 %v700
        %1046 = vmatpush.msra.mxu0 %v691
        %1047 = vmatpush.msra.mxu0 %v682
        %1048 = vmatpush.msra.mxu0 %v673
        %1049 = vmatpush.msra.mxu0 %v664
        %1050 = vmatmul.f32.gmra.mxu0 %v282
        %v1051 = vpop.f32.mrf.mxu0
        %v1052 = vadd.f32 %v939, %v1051
        %1053 = vmatmul.f32.gmra.mxu0 %v285
        %v1054 = vpop.f32.mrf.mxu0
        %v1055 = vadd.f32 %v942, %v1054
        %1056 = vmatmul.f32.gmra.mxu0 %v288
        %v1057 = vpop.f32.mrf.mxu0
        %v1058 = vadd.f32 %v945, %v1057
        %1059 = vmatmul.f32.gmra.mxu0 %v291
        %v1060 = vpop.f32.mrf.mxu0
        %v1061 = vadd.f32 %v948, %v1060
        %1062 = vmatmul.f32.gmra.mxu0 %v294
        %v1063 = vpop.f32.mrf.mxu0
        %v1064 = vadd.f32 %v951, %v1063
        %1065 = vmatmul.f32.gmra.mxu0 %v297
        %v1066 = vpop.f32.mrf.mxu0
        %v1067 = vadd.f32 %v954, %v1066
        %1068 = vmatmul.f32.gmra.mxu0 %v300
        %v1069 = vpop.f32.mrf.mxu0
        %v1070 = vadd.f32 %v957, %v1069
        %1071 = vmatmul.f32.gmra.mxu0 %v303
        %v1072 = vpop.f32.mrf.mxu0
        %v1073 = vadd.f32 %v960, %v1072
        %1074 = vmatmul.f32.gmra.mxu0 %v306
        %v1075 = vpop.f32.mrf.mxu0
        %v1076 = vadd.f32 %v963, %v1075
        %1077 = vmatmul.f32.gmra.mxu0 %v309
        %v1078 = vpop.f32.mrf.mxu0
        %v1079 = vadd.f32 %v966, %v1078
        %1080 = vmatmul.f32.gmra.mxu0 %v312
        %v1081 = vpop.f32.mrf.mxu0
        %v1082 = vadd.f32 %v969, %v1081
        %1083 = vmatmul.f32.gmra.mxu0 %v315
        %v1084 = vpop.f32.mrf.mxu0
        %v1085 = vadd.f32 %v972, %v1084
        %1086 = vmatmul.f32.gmra.mxu0 %v318
        %v1087 = vpop.f32.mrf.mxu0
        %v1088 = vadd.f32 %v975, %v1087
        %1089 = vmatmul.f32.gmra.mxu0 %v321
        %v1090 = vpop.f32.mrf.mxu0
        %v1091 = vadd.f32 %v978, %v1090
        %1092 = vmatmul.f32.gmra.mxu0 %v324
        %v1093 = vpop.f32.mrf.mxu0
        %v1094 = vadd.f32 %v981, %v1093
        %1095 = vmatmul.f32.gmra.mxu0 %v327
        %v1096 = vpop.f32.mrf.mxu0
        %v1097 = vadd.f32 %v984, %v1096
        %1098 = vmatmul.f32.gmra.mxu0 %v330
        %v1099 = vpop.f32.mrf.mxu0
        %v1100 = vadd.f32 %v987, %v1099
        %1101 = vmatmul.f32.gmra.mxu0 %v333
        %v1102 = vpop.f32.mrf.mxu0
        %v1103 = vadd.f32 %v990, %v1102
        %1104 = vmatmul.f32.gmra.mxu0 %v336
        %v1105 = vpop.f32.mrf.mxu0
        %v1106 = vadd.f32 %v993, %v1105
        %1107 = vmatmul.f32.gmra.mxu0 %v339
        %v1108 = vpop.f32.mrf.mxu0
        %v1109 = vadd.f32 %v996, %v1108
        %1110 = vmatmul.f32.gmra.mxu0 %v342
        %v1111 = vpop.f32.mrf.mxu0
        %v1112 = vadd.f32 %v999, %v1111
        %1113 = vmatmul.f32.gmra.mxu0 %v345
        %v1114 = vpop.f32.mrf.mxu0
        %v1115 = vadd.f32 %v1002, %v1114
        %1116 = vmatmul.f32.gmra.mxu0 %v348
        %v1117 = vpop.f32.mrf.mxu0
        %v1118 = vadd.f32 %v1005, %v1117
        %1119 = vmatmul.f32.gmra.mxu0 %v351
        %v1120 = vpop.f32.mrf.mxu0
        %v1121 = vadd.f32 %v1008, %v1120
        %1122 = vmatmul.f32.gmra.mxu0 %v354
        %v1123 = vpop.f32.mrf.mxu0
        %v1124 = vadd.f32 %v1011, %v1123
        %1125 = vmatmul.f32.gmra.mxu0 %v357
        %v1126 = vpop.f32.mrf.mxu0
        %v1127 = vadd.f32 %v1014, %v1126
        %1128 = vmatmul.f32.gmra.mxu0 %v360
        %v1129 = vpop.f32.mrf.mxu0
        %v1130 = vadd.f32 %v1017, %v1129
        %1131 = vmatmul.f32.gmra.mxu0 %v363
        %v1132 = vpop.f32.mrf.mxu0
        %v1133 = vadd.f32 %v1020, %v1132
        %1134 = vmatmul.f32.gmra.mxu0 %v366
        %v1135 = vpop.f32.mrf.mxu0
        %v1136 = vadd.f32 %v1023, %v1135
        %1137 = vmatmul.f32.gmra.mxu0 %v369
        %v1138 = vpop.f32.mrf.mxu0
        %v1139 = vadd.f32 %v1026, %v1138
        %1140 = vmatmul.f32.gmra.mxu0 %v372
        %v1141 = vpop.f32.mrf.mxu0
        %v1142 = vadd.f32 %v1029, %v1141
        %1143 = vmatmul.f32.gmra.mxu0 %v375
        %v1144 = vpop.f32.mrf.mxu0
        %v1145 = vadd.f32 %v1032, %v1144
        %1146 = vdwg.mxu0
        %1147 = vmatpush.msra.mxu0 %v512
        %1148 = vmatpush.msra.mxu0 %v503
        %1149 = vmatpush.msra.mxu0 %v494
        %1150 = vmatpush.msra.mxu0 %v485
        %1151 = vmatpush.msra.mxu0 %v476
        %1152 = vmatpush.msra.mxu0 %v467
        %1153 = vmatpush.msra.mxu0 %v458
        %1154 = vmatpush.msra.mxu0 %v449
        %1155 = vmatpush.msra.mxu0 %v440
        %1156 = vmatpush.msra.mxu0 %v431
        %1157 = vmatpush.msra.mxu0 %v422
        %1158 = vmatpush.msra.mxu0 %v413
        %1159 = vmatpush.msra.mxu0 %v404
        %1160 = vmatpush.msra.mxu0 %v395
        %1161 = vmatpush.msra.mxu0 %v386
        %1162 = vmatpush.msra.mxu0 %v377
        %1163 = vmatmul.f32.gmra.mxu0 %v280
        %v1164 = vpop.f32.mrf.mxu0
        %v1165 = vadd.f32 0.0, %v1164
        %1166 = vmatmul.f32.gmra.mxu0 %v283
        %v1167 = vpop.f32.mrf.mxu0
        %v1168 = vadd.f32 0.0, %v1167
        %1169 = vmatmul.f32.gmra.mxu0 %v286
        %v1170 = vpop.f32.mrf.mxu0
        %v1171 = vadd.f32 0.0, %v1170
        %1172 = vmatmul.f32.gmra.mxu0 %v289
        %v1173 = vpop.f32.mrf.mxu0
        %v1174 = vadd.f32 0.0, %v1173
        %1175 = vmatmul.f32.gmra.mxu0 %v292
        %v1176 = vpop.f32.mrf.mxu0
        %v1177 = vadd.f32 0.0, %v1176
        %1178 = vmatmul.f32.gmra.mxu0 %v295
        %v1179 = vpop.f32.mrf.mxu0
        %v1180 = vadd.f32 0.0, %v1179
        %1181 = vmatmul.f32.gmra.mxu0 %v298
        %v1182 = vpop.f32.mrf.mxu0
        %v1183 = vadd.f32 0.0, %v1182
        %1184 = vmatmul.f32.gmra.mxu0 %v301
        %v1185 = vpop.f32.mrf.mxu0
        %v1186 = vadd.f32 0.0, %v1185
        %1187 = vmatmul.f32.gmra.mxu0 %v304
        %v1188 = vpop.f32.mrf.mxu0
        %v1189 = vadd.f32 0.0, %v1188
        %1190 = vmatmul.f32.gmra.mxu0 %v307
        %v1191 = vpop.f32.mrf.mxu0
        %v1192 = vadd.f32 0.0, %v1191
        %1193 = vmatmul.f32.gmra.mxu0 %v310
        %v1194 = vpop.f32.mrf.mxu0
        %v1195 = vadd.f32 0.0, %v1194
        %1196 = vmatmul.f32.gmra.mxu0 %v313
        %v1197 = vpop.f32.mrf.mxu0
        %v1198 = vadd.f32 0.0, %v1197
        %1199 = vmatmul.f32.gmra.mxu0 %v316
        %v1200 = vpop.f32.mrf.mxu0
        %v1201 = vadd.f32 0.0, %v1200
        %1202 = vmatmul.f32.gmra.mxu0 %v319
        %v1203 = vpop.f32.mrf.mxu0
        %v1204 = vadd.f32 0.0, %v1203
        %1205 = vmatmul.f32.gmra.mxu0 %v322
        %v1206 = vpop.f32.mrf.mxu0
        %v1207 = vadd.f32 0.0, %v1206
        %1208 = vmatmul.f32.gmra.mxu0 %v325
        %v1209 = vpop.f32.mrf.mxu0
        %v1210 = vadd.f32 0.0, %v1209
        %1211 = vmatmul.f32.gmra.mxu0 %v328
        %v1212 = vpop.f32.mrf.mxu0
        %v1213 = vadd.f32 0.0, %v1212
        %1214 = vmatmul.f32.gmra.mxu0 %v331
        %v1215 = vpop.f32.mrf.mxu0
        %v1216 = vadd.f32 0.0, %v1215
        %1217 = vmatmul.f32.gmra.mxu0 %v334
        %v1218 = vpop.f32.mrf.mxu0
        %v1219 = vadd.f32 0.0, %v1218
        %1220 = vmatmul.f32.gmra.mxu0 %v337
        %v1221 = vpop.f32.mrf.mxu0
        %v1222 = vadd.f32 0.0, %v1221
        %1223 = vmatmul.f32.gmra.mxu0 %v340
        %v1224 = vpop.f32.mrf.mxu0
        %v1225 = vadd.f32 0.0, %v1224
        %1226 = vmatmul.f32.gmra.mxu0 %v343
        %v1227 = vpop.f32.mrf.mxu0
        %v1228 = vadd.f32 0.0, %v1227
        %1229 = vmatmul.f32.gmra.mxu0 %v346
        %v1230 = vpop.f32.mrf.mxu0
        %v1231 = vadd.f32 0.0, %v1230
        %1232 = vmatmul.f32.gmra.mxu0 %v349
        %v1233 = vpop.f32.mrf.mxu0
        %v1234 = vadd.f32 0.0, %v1233
        %1235 = vmatmul.f32.gmra.mxu0 %v352
        %v1236 = vpop.f32.mrf.mxu0
        %v1237 = vadd.f32 0.0, %v1236
        %1238 = vmatmul.f32.gmra.mxu0 %v355
        %v1239 = vpop.f32.mrf.mxu0
        %v1240 = vadd.f32 0.0, %v1239
        %1241 = vmatmul.f32.gmra.mxu0 %v358
        %v1242 = vpop.f32.mrf.mxu0
        %v1243 = vadd.f32 0.0, %v1242
        %1244 = vmatmul.f32.gmra.mxu0 %v361
        %v1245 = vpop.f32.mrf.mxu0
        %v1246 = vadd.f32 0.0, %v1245
        %1247 = vmatmul.f32.gmra.mxu0 %v364
        %v1248 = vpop.f32.mrf.mxu0
        %v1249 = vadd.f32 0.0, %v1248
        %1250 = vmatmul.f32.gmra.mxu0 %v367
        %v1251 = vpop.f32.mrf.mxu0
        %v1252 = vadd.f32 0.0, %v1251
        %1253 = vmatmul.f32.gmra.mxu0 %v370
        %v1254 = vpop.f32.mrf.mxu0
        %v1255 = vadd.f32 0.0, %v1254
        %1256 = vmatmul.f32.gmra.mxu0 %v373
        %v1257 = vpop.f32.mrf.mxu0
        %v1258 = vadd.f32 0.0, %v1257
        %1259 = vdwg.mxu0
        %1260 = vmatpush.msra.mxu0 %v656
        %1261 = vmatpush.msra.mxu0 %v647
        %1262 = vmatpush.msra.mxu0 %v638
        %1263 = vmatpush.msra.mxu0 %v629
        %1264 = vmatpush.msra.mxu0 %v620
        %1265 = vmatpush.msra.mxu0 %v611
        %1266 = vmatpush.msra.mxu0 %v602
        %1267 = vmatpush.msra.mxu0 %v593
        %1268 = vmatpush.msra.mxu0 %v584
        %1269 = vmatpush.msra.mxu0 %v575
        %1270 = vmatpush.msra.mxu0 %v566
        %1271 = vmatpush.msra.mxu0 %v557
        %1272 = vmatpush.msra.mxu0 %v548
        %1273 = vmatpush.msra.mxu0 %v539
        %1274 = vmatpush.msra.mxu0 %v530
        %1275 = vmatpush.msra.mxu0 %v521
        %1276 = vmatmul.f32.gmra.mxu0 %v281
        %v1277 = vpop.f32.mrf.mxu0
        %v1278 = vadd.f32 %v1165, %v1277
        %1279 = vmatmul.f32.gmra.mxu0 %v284
        %v1280 = vpop.f32.mrf.mxu0
        %v1281 = vadd.f32 %v1168, %v1280
        %1282 = vmatmul.f32.gmra.mxu0 %v287
        %v1283 = vpop.f32.mrf.mxu0
        %v1284 = vadd.f32 %v1171, %v1283
        %1285 = vmatmul.f32.gmra.mxu0 %v290
        %v1286 = vpop.f32.mrf.mxu0
        %v1287 = vadd.f32 %v1174, %v1286
        %1288 = vmatmul.f32.gmra.mxu0 %v293
        %v1289 = vpop.f32.mrf.mxu0
        %v1290 = vadd.f32 %v1177, %v1289
        %1291 = vmatmul.f32.gmra.mxu0 %v296
        %v1292 = vpop.f32.mrf.mxu0
        %v1293 = vadd.f32 %v1180, %v1292
        %1294 = vmatmul.f32.gmra.mxu0 %v299
        %v1295 = vpop.f32.mrf.mxu0
        %v1296 = vadd.f32 %v1183, %v1295
        %1297 = vmatmul.f32.gmra.mxu0 %v302
        %v1298 = vpop.f32.mrf.mxu0
        %v1299 = vadd.f32 %v1186, %v1298
        %1300 = vmatmul.f32.gmra.mxu0 %v305
        %v1301 = vpop.f32.mrf.mxu0
        %v1302 = vadd.f32 %v1189, %v1301
        %1303 = vmatmul.f32.gmra.mxu0 %v308
        %v1304 = vpop.f32.mrf.mxu0
        %v1305 = vadd.f32 %v1192, %v1304
        %1306 = vmatmul.f32.gmra.mxu0 %v311
        %v1307 = vpop.f32.mrf.mxu0
        %v1308 = vadd.f32 %v1195, %v1307
        %1309 = vmatmul.f32.gmra.mxu0 %v314
        %v1310 = vpop.f32.mrf.mxu0
        %v1311 = vadd.f32 %v1198, %v1310
        %1312 = vmatmul.f32.gmra.mxu0 %v317
        %v1313 = vpop.f32.mrf.mxu0
        %v1314 = vadd.f32 %v1201, %v1313
        %1315 = vmatmul.f32.gmra.mxu0 %v320
        %v1316 = vpop.f32.mrf.mxu0
        %v1317 = vadd.f32 %v1204, %v1316
        %1318 = vmatmul.f32.gmra.mxu0 %v323
        %v1319 = vpop.f32.mrf.mxu0
        %v1320 = vadd.f32 %v1207, %v1319
        %1321 = vmatmul.f32.gmra.mxu0 %v326
        %v1322 = vpop.f32.mrf.mxu0
        %v1323 = vadd.f32 %v1210, %v1322
        %1324 = vmatmul.f32.gmra.mxu0 %v329
        %v1325 = vpop.f32.mrf.mxu0
        %v1326 = vadd.f32 %v1213, %v1325
        %1327 = vmatmul.f32.gmra.mxu0 %v332
        %v1328 = vpop.f32.mrf.mxu0
        %v1329 = vadd.f32 %v1216, %v1328
        %1330 = vmatmul.f32.gmra.mxu0 %v335
        %v1331 = vpop.f32.mrf.mxu0
        %v1332 = vadd.f32 %v1219, %v1331
        %1333 = vmatmul.f32.gmra.mxu0 %v338
        %v1334 = vpop.f32.mrf.mxu0
        %v1335 = vadd.f32 %v1222, %v1334
        %1336 = vmatmul.f32.gmra.mxu0 %v341
        %v1337 = vpop.f32.mrf.mxu0
        %v1338 = vadd.f32 %v1225, %v1337
        %1339 = vmatmul.f32.gmra.mxu0 %v344
        %v1340 = vpop.f32.mrf.mxu0
        %v1341 = vadd.f32 %v1228, %v1340
        %1342 = vmatmul.f32.gmra.mxu0 %v347
        %v1343 = vpop.f32.mrf.mxu0
        %v1344 = vadd.f32 %v1231, %v1343
        %1345 = vmatmul.f32.gmra.mxu0 %v350
        %v1346 = vpop.f32.mrf.mxu0
        %v1347 = vadd.f32 %v1234, %v1346
        %1348 = vmatmul.f32.gmra.mxu0 %v353
        %v1349 = vpop.f32.mrf.mxu0
        %v1350 = vadd.f32 %v1237, %v1349
        %1351 = vmatmul.f32.gmra.mxu0 %v356
        %v1352 = vpop.f32.mrf.mxu0
        %v1353 = vadd.f32 %v1240, %v1352
        %1354 = vmatmul.f32.gmra.mxu0 %v359
        %v1355 = vpop.f32.mrf.mxu0
        %v1356 = vadd.f32 %v1243, %v1355
        %1357 = vmatmul.f32.gmra.mxu0 %v362
        %v1358 = vpop.f32.mrf.mxu0
        %v1359 = vadd.f32 %v1246, %v1358
        %1360 = vmatmul.f32.gmra.mxu0 %v365
        %v1361 = vpop.f32.mrf.mxu0
        %v1362 = vadd.f32 %v1249, %v1361
        %1363 = vmatmul.f32.gmra.mxu0 %v368
        %v1364 = vpop.f32.mrf.mxu0
        %v1365 = vadd.f32 %v1252, %v1364
        %1366 = vmatmul.f32.gmra.mxu0 %v371
        %v1367 = vpop.f32.mrf.mxu0
        %v1368 = vadd.f32 %v1255, %v1367
        %1369 = vmatmul.f32.gmra.mxu0 %v374
        %v1370 = vpop.f32.mrf.mxu0
        %v1371 = vadd.f32 %v1258, %v1370
        %1372 = vdwg.mxu0
        %1373 = vmatpush.msra.mxu0 %v800
        %1374 = vmatpush.msra.mxu0 %v791
        %1375 = vmatpush.msra.mxu0 %v782
        %1376 = vmatpush.msra.mxu0 %v773
        %1377 = vmatpush.msra.mxu0 %v764
        %1378 = vmatpush.msra.mxu0 %v755
        %1379 = vmatpush.msra.mxu0 %v746
        %1380 = vmatpush.msra.mxu0 %v737
        %1381 = vmatpush.msra.mxu0 %v728
        %1382 = vmatpush.msra.mxu0 %v719
        %1383 = vmatpush.msra.mxu0 %v710
        %1384 = vmatpush.msra.mxu0 %v701
        %1385 = vmatpush.msra.mxu0 %v692
        %1386 = vmatpush.msra.mxu0 %v683
        %1387 = vmatpush.msra.mxu0 %v674
        %1388 = vmatpush.msra.mxu0 %v665
        %1389 = vmatmul.f32.gmra.mxu0 %v282
        %v1390 = vpop.f32.mrf.mxu0
        %v1391 = vadd.f32 %v1278, %v1390
        %1392 = vmatmul.f32.gmra.mxu0 %v285
        %v1393 = vpop.f32.mrf.mxu0
        %v1394 = vadd.f32 %v1281, %v1393
        %1395 = vmatmul.f32.gmra.mxu0 %v288
        %v1396 = vpop.f32.mrf.mxu0
        %v1397 = vadd.f32 %v1284, %v1396
        %1398 = vmatmul.f32.gmra.mxu0 %v291
        %v1399 = vpop.f32.mrf.mxu0
        %v1400 = vadd.f32 %v1287, %v1399
        %1401 = vmatmul.f32.gmra.mxu0 %v294
        %v1402 = vpop.f32.mrf.mxu0
        %v1403 = vadd.f32 %v1290, %v1402
        %1404 = vmatmul.f32.gmra.mxu0 %v297
        %v1405 = vpop.f32.mrf.mxu0
        %v1406 = vadd.f32 %v1293, %v1405
        %1407 = vmatmul.f32.gmra.mxu0 %v300
        %v1408 = vpop.f32.mrf.mxu0
        %v1409 = vadd.f32 %v1296, %v1408
        %1410 = vmatmul.f32.gmra.mxu0 %v303
        %v1411 = vpop.f32.mrf.mxu0
        %v1412 = vadd.f32 %v1299, %v1411
        %1413 = vmatmul.f32.gmra.mxu0 %v306
        %v1414 = vpop.f32.mrf.mxu0
        %v1415 = vadd.f32 %v1302, %v1414
        %1416 = vmatmul.f32.gmra.mxu0 %v309
        %v1417 = vpop.f32.mrf.mxu0
        %v1418 = vadd.f32 %v1305, %v1417
        %1419 = vmatmul.f32.gmra.mxu0 %v312
        %v1420 = vpop.f32.mrf.mxu0
        %v1421 = vadd.f32 %v1308, %v1420
        %1422 = vmatmul.f32.gmra.mxu0 %v315
        %v1423 = vpop.f32.mrf.mxu0
        %v1424 = vadd.f32 %v1311, %v1423
        %1425 = vmatmul.f32.gmra.mxu0 %v318
        %v1426 = vpop.f32.mrf.mxu0
        %v1427 = vadd.f32 %v1314, %v1426
        %1428 = vmatmul.f32.gmra.mxu0 %v321
        %v1429 = vpop.f32.mrf.mxu0
        %v1430 = vadd.f32 %v1317, %v1429
        %1431 = vmatmul.f32.gmra.mxu0 %v324
        %v1432 = vpop.f32.mrf.mxu0
        %v1433 = vadd.f32 %v1320, %v1432
        %1434 = vmatmul.f32.gmra.mxu0 %v327
        %v1435 = vpop.f32.mrf.mxu0
        %v1436 = vadd.f32 %v1323, %v1435
        %1437 = vmatmul.f32.gmra.mxu0 %v330
        %v1438 = vpop.f32.mrf.mxu0
        %v1439 = vadd.f32 %v1326, %v1438
        %1440 = vmatmul.f32.gmra.mxu0 %v333
        %v1441 = vpop.f32.mrf.mxu0
        %v1442 = vadd.f32 %v1329, %v1441
        %1443 = vmatmul.f32.gmra.mxu0 %v336
        %v1444 = vpop.f32.mrf.mxu0
        %v1445 = vadd.f32 %v1332, %v1444
        %1446 = vmatmul.f32.gmra.mxu0 %v339
        %v1447 = vpop.f32.mrf.mxu0
        %v1448 = vadd.f32 %v1335, %v1447
        %1449 = vmatmul.f32.gmra.mxu0 %v342
        %v1450 = vpop.f32.mrf.mxu0
        %v1451 = vadd.f32 %v1338, %v1450
        %1452 = vmatmul.f32.gmra.mxu0 %v345
        %v1453 = vpop.f32.mrf.mxu0
        %v1454 = vadd.f32 %v1341, %v1453
        %1455 = vmatmul.f32.gmra.mxu0 %v348
        %v1456 = vpop.f32.mrf.mxu0
        %v1457 = vadd.f32 %v1344, %v1456
        %1458 = vmatmul.f32.gmra.mxu0 %v351
        %v1459 = vpop.f32.mrf.mxu0
        %v1460 = vadd.f32 %v1347, %v1459
        %1461 = vmatmul.f32.gmra.mxu0 %v354
        %v1462 = vpop.f32.mrf.mxu0
        %v1463 = vadd.f32 %v1350, %v1462
        %1464 = vmatmul.f32.gmra.mxu0 %v357
        %v1465 = vpop.f32.mrf.mxu0
        %v1466 = vadd.f32 %v1353, %v1465
        %1467 = vmatmul.f32.gmra.mxu0 %v360
        %v1468 = vpop.f32.mrf.mxu0
        %v1469 = vadd.f32 %v1356, %v1468
        %1470 = vmatmul.f32.gmra.mxu0 %v363
        %v1471 = vpop.f32.mrf.mxu0
        %v1472 = vadd.f32 %v1359, %v1471
        %1473 = vmatmul.f32.gmra.mxu0 %v366
        %v1474 = vpop.f32.mrf.mxu0
        %v1475 = vadd.f32 %v1362, %v1474
        %1476 = vmatmul.f32.gmra.mxu0 %v369
        %v1477 = vpop.f32.mrf.mxu0
        %v1478 = vadd.f32 %v1365, %v1477
        %1479 = vmatmul.f32.gmra.mxu0 %v372
        %v1480 = vpop.f32.mrf.mxu0
        %v1481 = vadd.f32 %v1368, %v1480
        %1482 = vmatmul.f32.gmra.mxu0 %v375
        %v1483 = vpop.f32.mrf.mxu0
        %v1484 = vadd.f32 %v1371, %v1483
        %1485 = vdwg.mxu0
        %1486 = vmatpush.msra.mxu0 %v513
        %1487 = vmatpush.msra.mxu0 %v504
        %1488 = vmatpush.msra.mxu0 %v495
        %1489 = vmatpush.msra.mxu0 %v486
        %1490 = vmatpush.msra.mxu0 %v477
        %1491 = vmatpush.msra.mxu0 %v468
        %1492 = vmatpush.msra.mxu0 %v459
        %1493 = vmatpush.msra.mxu0 %v450
        %1494 = vmatpush.msra.mxu0 %v441
        %1495 = vmatpush.msra.mxu0 %v432
        %1496 = vmatpush.msra.mxu0 %v423
        %1497 = vmatpush.msra.mxu0 %v414
        %1498 = vmatpush.msra.mxu0 %v405
        %1499 = vmatpush.msra.mxu0 %v396
        %1500 = vmatpush.msra.mxu0 %v387
        %1501 = vmatpush.msra.mxu0 %v378
        %1502 = vmatmul.f32.gmra.mxu0 %v280
        %v1503 = vpop.f32.mrf.mxu0
        %v1504 = vadd.f32 0.0, %v1503
        %1505 = vmatmul.f32.gmra.mxu0 %v283
        %v1506 = vpop.f32.mrf.mxu0
        %v1507 = vadd.f32 0.0, %v1506
        %1508 = vmatmul.f32.gmra.mxu0 %v286
        %v1509 = vpop.f32.mrf.mxu0
        %v1510 = vadd.f32 0.0, %v1509
        %1511 = vmatmul.f32.gmra.mxu0 %v289
        %v1512 = vpop.f32.mrf.mxu0
        %v1513 = vadd.f32 0.0, %v1512
        %1514 = vmatmul.f32.gmra.mxu0 %v292
        %v1515 = vpop.f32.mrf.mxu0
        %v1516 = vadd.f32 0.0, %v1515
        %1517 = vmatmul.f32.gmra.mxu0 %v295
        %v1518 = vpop.f32.mrf.mxu0
        %v1519 = vadd.f32 0.0, %v1518
        %1520 = vmatmul.f32.gmra.mxu0 %v298
        %v1521 = vpop.f32.mrf.mxu0
        %v1522 = vadd.f32 0.0, %v1521
        %1523 = vmatmul.f32.gmra.mxu0 %v301
        %v1524 = vpop.f32.mrf.mxu0
        %v1525 = vadd.f32 0.0, %v1524
        %1526 = vmatmul.f32.gmra.mxu0 %v304
        %v1527 = vpop.f32.mrf.mxu0
        %v1528 = vadd.f32 0.0, %v1527
        %1529 = vmatmul.f32.gmra.mxu0 %v307
        %v1530 = vpop.f32.mrf.mxu0
        %v1531 = vadd.f32 0.0, %v1530
        %1532 = vmatmul.f32.gmra.mxu0 %v310
        %v1533 = vpop.f32.mrf.mxu0
        %v1534 = vadd.f32 0.0, %v1533
        %1535 = vmatmul.f32.gmra.mxu0 %v313
        %v1536 = vpop.f32.mrf.mxu0
        %v1537 = vadd.f32 0.0, %v1536
        %1538 = vmatmul.f32.gmra.mxu0 %v316
        %v1539 = vpop.f32.mrf.mxu0
        %v1540 = vadd.f32 0.0, %v1539
        %1541 = vmatmul.f32.gmra.mxu0 %v319
        %v1542 = vpop.f32.mrf.mxu0
        %v1543 = vadd.f32 0.0, %v1542
        %1544 = vmatmul.f32.gmra.mxu0 %v322
        %v1545 = vpop.f32.mrf.mxu0
        %v1546 = vadd.f32 0.0, %v1545
        %1547 = vmatmul.f32.gmra.mxu0 %v325
        %v1548 = vpop.f32.mrf.mxu0
        %v1549 = vadd.f32 0.0, %v1548
        %1550 = vmatmul.f32.gmra.mxu0 %v328
        %v1551 = vpop.f32.mrf.mxu0
        %v1552 = vadd.f32 0.0, %v1551
        %1553 = vmatmul.f32.gmra.mxu0 %v331
        %v1554 = vpop.f32.mrf.mxu0
        %v1555 = vadd.f32 0.0, %v1554
        %1556 = vmatmul.f32.gmra.mxu0 %v334
        %v1557 = vpop.f32.mrf.mxu0
        %v1558 = vadd.f32 0.0, %v1557
        %1559 = vmatmul.f32.gmra.mxu0 %v337
        %v1560 = vpop.f32.mrf.mxu0
        %v1561 = vadd.f32 0.0, %v1560
        %1562 = vmatmul.f32.gmra.mxu0 %v340
        %v1563 = vpop.f32.mrf.mxu0
        %v1564 = vadd.f32 0.0, %v1563
        %1565 = vmatmul.f32.gmra.mxu0 %v343
        %v1566 = vpop.f32.mrf.mxu0
        %v1567 = vadd.f32 0.0, %v1566
        %1568 = vmatmul.f32.gmra.mxu0 %v346
        %v1569 = vpop.f32.mrf.mxu0
        %v1570 = vadd.f32 0.0, %v1569
        %1571 = vmatmul.f32.gmra.mxu0 %v349
        %v1572 = vpop.f32.mrf.mxu0
        %v1573 = vadd.f32 0.0, %v1572
        %1574 = vmatmul.f32.gmra.mxu0 %v352
        %v1575 = vpop.f32.mrf.mxu0
        %v1576 = vadd.f32 0.0, %v1575
        %1577 = vmatmul.f32.gmra.mxu0 %v355
        %v1578 = vpop.f32.mrf.mxu0
        %v1579 = vadd.f32 0.0, %v1578
        %1580 = vmatmul.f32.gmra.mxu0 %v358
        %v1581 = vpop.f32.mrf.mxu0
        %v1582 = vadd.f32 0.0, %v1581
        %1583 = vmatmul.f32.gmra.mxu0 %v361
        %v1584 = vpop.f32.mrf.mxu0
        %v1585 = vadd.f32 0.0, %v1584
        %1586 = vmatmul.f32.gmra.mxu0 %v364
        %v1587 = vpop.f32.mrf.mxu0
        %v1588 = vadd.f32 0.0, %v1587
        %1589 = vmatmul.f32.gmra.mxu0 %v367
        %v1590 = vpop.f32.mrf.mxu0
        %v1591 = vadd.f32 0.0, %v1590
        %1592 = vmatmul.f32.gmra.mxu0 %v370
        %v1593 = vpop.f32.mrf.mxu0
        %v1594 = vadd.f32 0.0, %v1593
        %1595 = vmatmul.f32.gmra.mxu0 %v373
        %v1596 = vpop.f32.mrf.mxu0
        %v1597 = vadd.f32 0.0, %v1596
        %1598 = vdwg.mxu0
        %1599 = vmatpush.msra.mxu0 %v657
        %1600 = vmatpush.msra.mxu0 %v648
        %1601 = vmatpush.msra.mxu0 %v639
        %1602 = vmatpush.msra.mxu0 %v630
        %1603 = vmatpush.msra.mxu0 %v621
        %1604 = vmatpush.msra.mxu0 %v612
        %1605 = vmatpush.msra.mxu0 %v603
        %1606 = vmatpush.msra.mxu0 %v594
        %1607 = vmatpush.msra.mxu0 %v585
        %1608 = vmatpush.msra.mxu0 %v576
        %1609 = vmatpush.msra.mxu0 %v567
        %1610 = vmatpush.msra.mxu0 %v558
        %1611 = vmatpush.msra.mxu0 %v549
        %1612 = vmatpush.msra.mxu0 %v540
        %1613 = vmatpush.msra.mxu0 %v531
        %1614 = vmatpush.msra.mxu0 %v522
        %1615 = vmatmul.f32.gmra.mxu0 %v281
        %v1616 = vpop.f32.mrf.mxu0
        %v1617 = vadd.f32 %v1504, %v1616
        %1618 = vmatmul.f32.gmra.mxu0 %v284
        %v1619 = vpop.f32.mrf.mxu0
        %v1620 = vadd.f32 %v1507, %v1619
        %1621 = vmatmul.f32.gmra.mxu0 %v287
        %v1622 = vpop.f32.mrf.mxu0
        %v1623 = vadd.f32 %v1510, %v1622
        %1624 = vmatmul.f32.gmra.mxu0 %v290
        %v1625 = vpop.f32.mrf.mxu0
        %v1626 = vadd.f32 %v1513, %v1625
        %1627 = vmatmul.f32.gmra.mxu0 %v293
        %v1628 = vpop.f32.mrf.mxu0
        %v1629 = vadd.f32 %v1516, %v1628
        %1630 = vmatmul.f32.gmra.mxu0 %v296
        %v1631 = vpop.f32.mrf.mxu0
        %v1632 = vadd.f32 %v1519, %v1631
        %1633 = vmatmul.f32.gmra.mxu0 %v299
        %v1634 = vpop.f32.mrf.mxu0
        %v1635 = vadd.f32 %v1522, %v1634
        %1636 = vmatmul.f32.gmra.mxu0 %v302
        %v1637 = vpop.f32.mrf.mxu0
        %v1638 = vadd.f32 %v1525, %v1637
        %1639 = vmatmul.f32.gmra.mxu0 %v305
        %v1640 = vpop.f32.mrf.mxu0
        %v1641 = vadd.f32 %v1528, %v1640
        %1642 = vmatmul.f32.gmra.mxu0 %v308
        %v1643 = vpop.f32.mrf.mxu0
        %v1644 = vadd.f32 %v1531, %v1643
        %1645 = vmatmul.f32.gmra.mxu0 %v311
        %v1646 = vpop.f32.mrf.mxu0
        %v1647 = vadd.f32 %v1534, %v1646
        %1648 = vmatmul.f32.gmra.mxu0 %v314
        %v1649 = vpop.f32.mrf.mxu0
        %v1650 = vadd.f32 %v1537, %v1649
        %1651 = vmatmul.f32.gmra.mxu0 %v317
        %v1652 = vpop.f32.mrf.mxu0
        %v1653 = vadd.f32 %v1540, %v1652
        %1654 = vmatmul.f32.gmra.mxu0 %v320
        %v1655 = vpop.f32.mrf.mxu0
        %v1656 = vadd.f32 %v1543, %v1655
        %1657 = vmatmul.f32.gmra.mxu0 %v323
        %v1658 = vpop.f32.mrf.mxu0
        %v1659 = vadd.f32 %v1546, %v1658
        %1660 = vmatmul.f32.gmra.mxu0 %v326
        %v1661 = vpop.f32.mrf.mxu0
        %v1662 = vadd.f32 %v1549, %v1661
        %1663 = vmatmul.f32.gmra.mxu0 %v329
        %v1664 = vpop.f32.mrf.mxu0
        %v1665 = vadd.f32 %v1552, %v1664
        %1666 = vmatmul.f32.gmra.mxu0 %v332
        %v1667 = vpop.f32.mrf.mxu0
        %v1668 = vadd.f32 %v1555, %v1667
        %1669 = vmatmul.f32.gmra.mxu0 %v335
        %v1670 = vpop.f32.mrf.mxu0
        %v1671 = vadd.f32 %v1558, %v1670
        %1672 = vmatmul.f32.gmra.mxu0 %v338
        %v1673 = vpop.f32.mrf.mxu0
        %v1674 = vadd.f32 %v1561, %v1673
        %1675 = vmatmul.f32.gmra.mxu0 %v341
        %v1676 = vpop.f32.mrf.mxu0
        %v1677 = vadd.f32 %v1564, %v1676
        %1678 = vmatmul.f32.gmra.mxu0 %v344
        %v1679 = vpop.f32.mrf.mxu0
        %v1680 = vadd.f32 %v1567, %v1679
        %1681 = vmatmul.f32.gmra.mxu0 %v347
        %v1682 = vpop.f32.mrf.mxu0
        %v1683 = vadd.f32 %v1570, %v1682
        %1684 = vmatmul.f32.gmra.mxu0 %v350
        %v1685 = vpop.f32.mrf.mxu0
        %v1686 = vadd.f32 %v1573, %v1685
        %1687 = vmatmul.f32.gmra.mxu0 %v353
        %v1688 = vpop.f32.mrf.mxu0
        %v1689 = vadd.f32 %v1576, %v1688
        %1690 = vmatmul.f32.gmra.mxu0 %v356
        %v1691 = vpop.f32.mrf.mxu0
        %v1692 = vadd.f32 %v1579, %v1691
        %1693 = vmatmul.f32.gmra.mxu0 %v359
        %v1694 = vpop.f32.mrf.mxu0
        %v1695 = vadd.f32 %v1582, %v1694
        %1696 = vmatmul.f32.gmra.mxu0 %v362
        %v1697 = vpop.f32.mrf.mxu0
        %v1698 = vadd.f32 %v1585, %v1697
        %1699 = vmatmul.f32.gmra.mxu0 %v365
        %v1700 = vpop.f32.mrf.mxu0
        %v1701 = vadd.f32 %v1588, %v1700
        %1702 = vmatmul.f32.gmra.mxu0 %v368
        %v1703 = vpop.f32.mrf.mxu0
        %v1704 = vadd.f32 %v1591, %v1703
        %1705 = vmatmul.f32.gmra.mxu0 %v371
        %v1706 = vpop.f32.mrf.mxu0
        %v1707 = vadd.f32 %v1594, %v1706
        %1708 = vmatmul.f32.gmra.mxu0 %v374
        %v1709 = vpop.f32.mrf.mxu0
        %v1710 = vadd.f32 %v1597, %v1709
        %1711 = vdwg.mxu0
        %1712 = vmatpush.msra.mxu0 %v801
        %1713 = vmatpush.msra.mxu0 %v792
        %1714 = vmatpush.msra.mxu0 %v783
        %1715 = vmatpush.msra.mxu0 %v774
        %1716 = vmatpush.msra.mxu0 %v765
        %1717 = vmatpush.msra.mxu0 %v756
        %1718 = vmatpush.msra.mxu0 %v747
        %1719 = vmatpush.msra.mxu0 %v738
        %1720 = vmatpush.msra.mxu0 %v729
        %1721 = vmatpush.msra.mxu0 %v720
        %1722 = vmatpush.msra.mxu0 %v711
        %1723 = vmatpush.msra.mxu0 %v702
        %1724 = vmatpush.msra.mxu0 %v693
        %1725 = vmatpush.msra.mxu0 %v684
        %1726 = vmatpush.msra.mxu0 %v675
        %1727 = vmatpush.msra.mxu0 %v666
        %1728 = vmatmul.f32.gmra.mxu0 %v282
        %v1729 = vpop.f32.mrf.mxu0
        %v1730 = vadd.f32 %v1617, %v1729
        %1731 = vmatmul.f32.gmra.mxu0 %v285
        %v1732 = vpop.f32.mrf.mxu0
        %v1733 = vadd.f32 %v1620, %v1732
        %1734 = vmatmul.f32.gmra.mxu0 %v288
        %v1735 = vpop.f32.mrf.mxu0
        %v1736 = vadd.f32 %v1623, %v1735
        %1737 = vmatmul.f32.gmra.mxu0 %v291
        %v1738 = vpop.f32.mrf.mxu0
        %v1739 = vadd.f32 %v1626, %v1738
        %1740 = vmatmul.f32.gmra.mxu0 %v294
        %v1741 = vpop.f32.mrf.mxu0
        %v1742 = vadd.f32 %v1629, %v1741
        %1743 = vmatmul.f32.gmra.mxu0 %v297
        %v1744 = vpop.f32.mrf.mxu0
        %v1745 = vadd.f32 %v1632, %v1744
        %1746 = vmatmul.f32.gmra.mxu0 %v300
        %v1747 = vpop.f32.mrf.mxu0
        %v1748 = vadd.f32 %v1635, %v1747
        %1749 = vmatmul.f32.gmra.mxu0 %v303
        %v1750 = vpop.f32.mrf.mxu0
        %v1751 = vadd.f32 %v1638, %v1750
        %1752 = vmatmul.f32.gmra.mxu0 %v306
        %v1753 = vpop.f32.mrf.mxu0
        %v1754 = vadd.f32 %v1641, %v1753
        %1755 = vmatmul.f32.gmra.mxu0 %v309
        %v1756 = vpop.f32.mrf.mxu0
        %v1757 = vadd.f32 %v1644, %v1756
        %1758 = vmatmul.f32.gmra.mxu0 %v312
        %v1759 = vpop.f32.mrf.mxu0
        %v1760 = vadd.f32 %v1647, %v1759
        %1761 = vmatmul.f32.gmra.mxu0 %v315
        %v1762 = vpop.f32.mrf.mxu0
        %v1763 = vadd.f32 %v1650, %v1762
        %1764 = vmatmul.f32.gmra.mxu0 %v318
        %v1765 = vpop.f32.mrf.mxu0
        %v1766 = vadd.f32 %v1653, %v1765
        %1767 = vmatmul.f32.gmra.mxu0 %v321
        %v1768 = vpop.f32.mrf.mxu0
        %v1769 = vadd.f32 %v1656, %v1768
        %1770 = vmatmul.f32.gmra.mxu0 %v324
        %v1771 = vpop.f32.mrf.mxu0
        %v1772 = vadd.f32 %v1659, %v1771
        %1773 = vmatmul.f32.gmra.mxu0 %v327
        %v1774 = vpop.f32.mrf.mxu0
        %v1775 = vadd.f32 %v1662, %v1774
        %1776 = vmatmul.f32.gmra.mxu0 %v330
        %v1777 = vpop.f32.mrf.mxu0
        %v1778 = vadd.f32 %v1665, %v1777
        %1779 = vmatmul.f32.gmra.mxu0 %v333
        %v1780 = vpop.f32.mrf.mxu0
        %v1781 = vadd.f32 %v1668, %v1780
        %1782 = vmatmul.f32.gmra.mxu0 %v336
        %v1783 = vpop.f32.mrf.mxu0
        %v1784 = vadd.f32 %v1671, %v1783
        %1785 = vmatmul.f32.gmra.mxu0 %v339
        %v1786 = vpop.f32.mrf.mxu0
        %v1787 = vadd.f32 %v1674, %v1786
        %1788 = vmatmul.f32.gmra.mxu0 %v342
        %v1789 = vpop.f32.mrf.mxu0
        %v1790 = vadd.f32 %v1677, %v1789
        %1791 = vmatmul.f32.gmra.mxu0 %v345
        %v1792 = vpop.f32.mrf.mxu0
        %v1793 = vadd.f32 %v1680, %v1792
        %1794 = vmatmul.f32.gmra.mxu0 %v348
        %v1795 = vpop.f32.mrf.mxu0
        %v1796 = vadd.f32 %v1683, %v1795
        %1797 = vmatmul.f32.gmra.mxu0 %v351
        %v1798 = vpop.f32.mrf.mxu0
        %v1799 = vadd.f32 %v1686, %v1798
        %1800 = vmatmul.f32.gmra.mxu0 %v354
        %v1801 = vpop.f32.mrf.mxu0
        %v1802 = vadd.f32 %v1689, %v1801
        %1803 = vmatmul.f32.gmra.mxu0 %v357
        %v1804 = vpop.f32.mrf.mxu0
        %v1805 = vadd.f32 %v1692, %v1804
        %1806 = vmatmul.f32.gmra.mxu0 %v360
        %v1807 = vpop.f32.mrf.mxu0
        %v1808 = vadd.f32 %v1695, %v1807
        %1809 = vmatmul.f32.gmra.mxu0 %v363
        %v1810 = vpop.f32.mrf.mxu0
        %v1811 = vadd.f32 %v1698, %v1810
        %1812 = vmatmul.f32.gmra.mxu0 %v366
        %v1813 = vpop.f32.mrf.mxu0
        %v1814 = vadd.f32 %v1701, %v1813
        %1815 = vmatmul.f32.gmra.mxu0 %v369
        %v1816 = vpop.f32.mrf.mxu0
        %v1817 = vadd.f32 %v1704, %v1816
        %1818 = vmatmul.f32.gmra.mxu0 %v372
        %v1819 = vpop.f32.mrf.mxu0
        %v1820 = vadd.f32 %v1707, %v1819
        %1821 = vmatmul.f32.gmra.mxu0 %v375
        %v1822 = vpop.f32.mrf.mxu0
        %v1823 = vadd.f32 %v1710, %v1822
        %1824 = vdwg.mxu0
        %1825 = vmatpush.msra.mxu0 %v514
        %1826 = vmatpush.msra.mxu0 %v505
        %1827 = vmatpush.msra.mxu0 %v496
        %1828 = vmatpush.msra.mxu0 %v487
        %1829 = vmatpush.msra.mxu0 %v478
        %1830 = vmatpush.msra.mxu0 %v469
        %1831 = vmatpush.msra.mxu0 %v460
        %1832 = vmatpush.msra.mxu0 %v451
        %1833 = vmatpush.msra.mxu0 %v442
        %1834 = vmatpush.msra.mxu0 %v433
        %1835 = vmatpush.msra.mxu0 %v424
        %1836 = vmatpush.msra.mxu0 %v415
        %1837 = vmatpush.msra.mxu0 %v406
        %1838 = vmatpush.msra.mxu0 %v397
        %1839 = vmatpush.msra.mxu0 %v388
        %1840 = vmatpush.msra.mxu0 %v379
        %1841 = vmatmul.f32.gmra.mxu0 %v280
        %v1842 = vpop.f32.mrf.mxu0
        %v1843 = vadd.f32 0.0, %v1842
        %1844 = vmatmul.f32.gmra.mxu0 %v283
        %v1845 = vpop.f32.mrf.mxu0
        %v1846 = vadd.f32 0.0, %v1845
        %1847 = vmatmul.f32.gmra.mxu0 %v286
        %v1848 = vpop.f32.mrf.mxu0
        %v1849 = vadd.f32 0.0, %v1848
        %1850 = vmatmul.f32.gmra.mxu0 %v289
        %v1851 = vpop.f32.mrf.mxu0
        %v1852 = vadd.f32 0.0, %v1851
        %1853 = vmatmul.f32.gmra.mxu0 %v292
        %v1854 = vpop.f32.mrf.mxu0
        %v1855 = vadd.f32 0.0, %v1854
        %1856 = vmatmul.f32.gmra.mxu0 %v295
        %v1857 = vpop.f32.mrf.mxu0
        %v1858 = vadd.f32 0.0, %v1857
        %1859 = vmatmul.f32.gmra.mxu0 %v298
        %v1860 = vpop.f32.mrf.mxu0
        %v1861 = vadd.f32 0.0, %v1860
        %1862 = vmatmul.f32.gmra.mxu0 %v301
        %v1863 = vpop.f32.mrf.mxu0
        %v1864 = vadd.f32 0.0, %v1863
        %1865 = vmatmul.f32.gmra.mxu0 %v304
        %v1866 = vpop.f32.mrf.mxu0
        %v1867 = vadd.f32 0.0, %v1866
        %1868 = vmatmul.f32.gmra.mxu0 %v307
        %v1869 = vpop.f32.mrf.mxu0
        %v1870 = vadd.f32 0.0, %v1869
        %1871 = vmatmul.f32.gmra.mxu0 %v310
        %v1872 = vpop.f32.mrf.mxu0
        %v1873 = vadd.f32 0.0, %v1872
        %1874 = vmatmul.f32.gmra.mxu0 %v313
        %v1875 = vpop.f32.mrf.mxu0
        %v1876 = vadd.f32 0.0, %v1875
        %1877 = vmatmul.f32.gmra.mxu0 %v316
        %v1878 = vpop.f32.mrf.mxu0
        %v1879 = vadd.f32 0.0, %v1878
        %1880 = vmatmul.f32.gmra.mxu0 %v319
        %v1881 = vpop.f32.mrf.mxu0
        %v1882 = vadd.f32 0.0, %v1881
        %1883 = vmatmul.f32.gmra.mxu0 %v322
        %v1884 = vpop.f32.mrf.mxu0
        %v1885 = vadd.f32 0.0, %v1884
        %1886 = vmatmul.f32.gmra.mxu0 %v325
        %v1887 = vpop.f32.mrf.mxu0
        %v1888 = vadd.f32 0.0, %v1887
        %1889 = vmatmul.f32.gmra.mxu0 %v328
        %v1890 = vpop.f32.mrf.mxu0
        %v1891 = vadd.f32 0.0, %v1890
        %1892 = vmatmul.f32.gmra.mxu0 %v331
        %v1893 = vpop.f32.mrf.mxu0
        %v1894 = vadd.f32 0.0, %v1893
        %1895 = vmatmul.f32.gmra.mxu0 %v334
        %v1896 = vpop.f32.mrf.mxu0
        %v1897 = vadd.f32 0.0, %v1896
        %1898 = vmatmul.f32.gmra.mxu0 %v337
        %v1899 = vpop.f32.mrf.mxu0
        %v1900 = vadd.f32 0.0, %v1899
        %1901 = vmatmul.f32.gmra.mxu0 %v340
        %v1902 = vpop.f32.mrf.mxu0
        %v1903 = vadd.f32 0.0, %v1902
        %1904 = vmatmul.f32.gmra.mxu0 %v343
        %v1905 = vpop.f32.mrf.mxu0
        %v1906 = vadd.f32 0.0, %v1905
        %1907 = vmatmul.f32.gmra.mxu0 %v346
        %v1908 = vpop.f32.mrf.mxu0
        %v1909 = vadd.f32 0.0, %v1908
        %1910 = vmatmul.f32.gmra.mxu0 %v349
        %v1911 = vpop.f32.mrf.mxu0
        %v1912 = vadd.f32 0.0, %v1911
        %1913 = vmatmul.f32.gmra.mxu0 %v352
        %v1914 = vpop.f32.mrf.mxu0
        %v1915 = vadd.f32 0.0, %v1914
        %1916 = vmatmul.f32.gmra.mxu0 %v355
        %v1917 = vpop.f32.mrf.mxu0
        %v1918 = vadd.f32 0.0, %v1917
        %1919 = vmatmul.f32.gmra.mxu0 %v358
        %v1920 = vpop.f32.mrf.mxu0
        %v1921 = vadd.f32 0.0, %v1920
        %1922 = vmatmul.f32.gmra.mxu0 %v361
        %v1923 = vpop.f32.mrf.mxu0
        %v1924 = vadd.f32 0.0, %v1923
        %1925 = vmatmul.f32.gmra.mxu0 %v364
        %v1926 = vpop.f32.mrf.mxu0
        %v1927 = vadd.f32 0.0, %v1926
        %1928 = vmatmul.f32.gmra.mxu0 %v367
        %v1929 = vpop.f32.mrf.mxu0
        %v1930 = vadd.f32 0.0, %v1929
        %1931 = vmatmul.f32.gmra.mxu0 %v370
        %v1932 = vpop.f32.mrf.mxu0
        %v1933 = vadd.f32 0.0, %v1932
        %1934 = vmatmul.f32.gmra.mxu0 %v373
        %v1935 = vpop.f32.mrf.mxu0
        %v1936 = vadd.f32 0.0, %v1935
        %1937 = vdwg.mxu0
        %1938 = vmatpush.msra.mxu0 %v658
        %1939 = vmatpush.msra.mxu0 %v649
        %1940 = vmatpush.msra.mxu0 %v640
        %1941 = vmatpush.msra.mxu0 %v631
        %1942 = vmatpush.msra.mxu0 %v622
        %1943 = vmatpush.msra.mxu0 %v613
        %1944 = vmatpush.msra.mxu0 %v604
        %1945 = vmatpush.msra.mxu0 %v595
        %1946 = vmatpush.msra.mxu0 %v586
        %1947 = vmatpush.msra.mxu0 %v577
        %1948 = vmatpush.msra.mxu0 %v568
        %1949 = vmatpush.msra.mxu0 %v559
        %1950 = vmatpush.msra.mxu0 %v550
        %1951 = vmatpush.msra.mxu0 %v541
        %1952 = vmatpush.msra.mxu0 %v532
        %1953 = vmatpush.msra.mxu0 %v523
        %1954 = vmatmul.f32.gmra.mxu0 %v281
        %v1955 = vpop.f32.mrf.mxu0
        %v1956 = vadd.f32 %v1843, %v1955
        %1957 = vmatmul.f32.gmra.mxu0 %v284
        %v1958 = vpop.f32.mrf.mxu0
        %v1959 = vadd.f32 %v1846, %v1958
        %1960 = vmatmul.f32.gmra.mxu0 %v287
        %v1961 = vpop.f32.mrf.mxu0
        %v1962 = vadd.f32 %v1849, %v1961
        %1963 = vmatmul.f32.gmra.mxu0 %v290
        %v1964 = vpop.f32.mrf.mxu0
        %v1965 = vadd.f32 %v1852, %v1964
        %1966 = vmatmul.f32.gmra.mxu0 %v293
        %v1967 = vpop.f32.mrf.mxu0
        %v1968 = vadd.f32 %v1855, %v1967
        %1969 = vmatmul.f32.gmra.mxu0 %v296
        %v1970 = vpop.f32.mrf.mxu0
        %v1971 = vadd.f32 %v1858, %v1970
        %1972 = vmatmul.f32.gmra.mxu0 %v299
        %v1973 = vpop.f32.mrf.mxu0
        %v1974 = vadd.f32 %v1861, %v1973
        %1975 = vmatmul.f32.gmra.mxu0 %v302
        %v1976 = vpop.f32.mrf.mxu0
        %v1977 = vadd.f32 %v1864, %v1976
        %1978 = vmatmul.f32.gmra.mxu0 %v305
        %v1979 = vpop.f32.mrf.mxu0
        %v1980 = vadd.f32 %v1867, %v1979
        %1981 = vmatmul.f32.gmra.mxu0 %v308
        %v1982 = vpop.f32.mrf.mxu0
        %v1983 = vadd.f32 %v1870, %v1982
        %1984 = vmatmul.f32.gmra.mxu0 %v311
        %v1985 = vpop.f32.mrf.mxu0
        %v1986 = vadd.f32 %v1873, %v1985
        %1987 = vmatmul.f32.gmra.mxu0 %v314
        %v1988 = vpop.f32.mrf.mxu0
        %v1989 = vadd.f32 %v1876, %v1988
        %1990 = vmatmul.f32.gmra.mxu0 %v317
        %v1991 = vpop.f32.mrf.mxu0
        %v1992 = vadd.f32 %v1879, %v1991
        %1993 = vmatmul.f32.gmra.mxu0 %v320
        %v1994 = vpop.f32.mrf.mxu0
        %v1995 = vadd.f32 %v1882, %v1994
        %1996 = vmatmul.f32.gmra.mxu0 %v323
        %v1997 = vpop.f32.mrf.mxu0
        %v1998 = vadd.f32 %v1885, %v1997
        %1999 = vmatmul.f32.gmra.mxu0 %v326
        %v2000 = vpop.f32.mrf.mxu0
        %v2001 = vadd.f32 %v1888, %v2000
        %2002 = vmatmul.f32.gmra.mxu0 %v329
        %v2003 = vpop.f32.mrf.mxu0
        %v2004 = vadd.f32 %v1891, %v2003
        %2005 = vmatmul.f32.gmra.mxu0 %v332
        %v2006 = vpop.f32.mrf.mxu0
        %v2007 = vadd.f32 %v1894, %v2006
        %2008 = vmatmul.f32.gmra.mxu0 %v335
        %v2009 = vpop.f32.mrf.mxu0
        %v2010 = vadd.f32 %v1897, %v2009
        %2011 = vmatmul.f32.gmra.mxu0 %v338
        %v2012 = vpop.f32.mrf.mxu0
        %v2013 = vadd.f32 %v1900, %v2012
        %2014 = vmatmul.f32.gmra.mxu0 %v341
        %v2015 = vpop.f32.mrf.mxu0
        %v2016 = vadd.f32 %v1903, %v2015
        %2017 = vmatmul.f32.gmra.mxu0 %v344
        %v2018 = vpop.f32.mrf.mxu0
        %v2019 = vadd.f32 %v1906, %v2018
        %2020 = vmatmul.f32.gmra.mxu0 %v347
        %v2021 = vpop.f32.mrf.mxu0
        %v2022 = vadd.f32 %v1909, %v2021
        %2023 = vmatmul.f32.gmra.mxu0 %v350
        %v2024 = vpop.f32.mrf.mxu0
        %v2025 = vadd.f32 %v1912, %v2024
        %2026 = vmatmul.f32.gmra.mxu0 %v353
        %v2027 = vpop.f32.mrf.mxu0
        %v2028 = vadd.f32 %v1915, %v2027
        %2029 = vmatmul.f32.gmra.mxu0 %v356
        %v2030 = vpop.f32.mrf.mxu0
        %v2031 = vadd.f32 %v1918, %v2030
        %2032 = vmatmul.f32.gmra.mxu0 %v359
        %v2033 = vpop.f32.mrf.mxu0
        %v2034 = vadd.f32 %v1921, %v2033
        %2035 = vmatmul.f32.gmra.mxu0 %v362
        %v2036 = vpop.f32.mrf.mxu0
        %v2037 = vadd.f32 %v1924, %v2036
        %2038 = vmatmul.f32.gmra.mxu0 %v365
        %v2039 = vpop.f32.mrf.mxu0
        %v2040 = vadd.f32 %v1927, %v2039
        %2041 = vmatmul.f32.gmra.mxu0 %v368
        %v2042 = vpop.f32.mrf.mxu0
        %v2043 = vadd.f32 %v1930, %v2042
        %2044 = vmatmul.f32.gmra.mxu0 %v371
        %v2045 = vpop.f32.mrf.mxu0
        %v2046 = vadd.f32 %v1933, %v2045
        %2047 = vmatmul.f32.gmra.mxu0 %v374
        %v2048 = vpop.f32.mrf.mxu0
        %v2049 = vadd.f32 %v1936, %v2048
        %2050 = vdwg.mxu0
        %2051 = vmatpush.msra.mxu0 %v802
        %2052 = vmatpush.msra.mxu0 %v793
        %2053 = vmatpush.msra.mxu0 %v784
        %2054 = vmatpush.msra.mxu0 %v775
        %2055 = vmatpush.msra.mxu0 %v766
        %2056 = vmatpush.msra.mxu0 %v757
        %2057 = vmatpush.msra.mxu0 %v748
        %2058 = vmatpush.msra.mxu0 %v739
        %2059 = vmatpush.msra.mxu0 %v730
        %2060 = vmatpush.msra.mxu0 %v721
        %2061 = vmatpush.msra.mxu0 %v712
        %2062 = vmatpush.msra.mxu0 %v703
        %2063 = vmatpush.msra.mxu0 %v694
        %2064 = vmatpush.msra.mxu0 %v685
        %2065 = vmatpush.msra.mxu0 %v676
        %2066 = vmatpush.msra.mxu0 %v667
        %2067 = vmatmul.f32.gmra.mxu0 %v282
        %v2068 = vpop.f32.mrf.mxu0
        %v2069 = vadd.f32 %v1956, %v2068
        %2070 = vmatmul.f32.gmra.mxu0 %v285
        %v2071 = vpop.f32.mrf.mxu0
        %v2072 = vadd.f32 %v1959, %v2071
        %2073 = vmatmul.f32.gmra.mxu0 %v288
        %v2074 = vpop.f32.mrf.mxu0
        %v2075 = vadd.f32 %v1962, %v2074
        %2076 = vmatmul.f32.gmra.mxu0 %v291
        %v2077 = vpop.f32.mrf.mxu0
        %v2078 = vadd.f32 %v1965, %v2077
        %2079 = vmatmul.f32.gmra.mxu0 %v294
        %v2080 = vpop.f32.mrf.mxu0
        %v2081 = vadd.f32 %v1968, %v2080
        %2082 = vmatmul.f32.gmra.mxu0 %v297
        %v2083 = vpop.f32.mrf.mxu0
        %v2084 = vadd.f32 %v1971, %v2083
        %2085 = vmatmul.f32.gmra.mxu0 %v300
        %v2086 = vpop.f32.mrf.mxu0
        %v2087 = vadd.f32 %v1974, %v2086
        %2088 = vmatmul.f32.gmra.mxu0 %v303
        %v2089 = vpop.f32.mrf.mxu0
        %v2090 = vadd.f32 %v1977, %v2089
        %2091 = vmatmul.f32.gmra.mxu0 %v306
        %v2092 = vpop.f32.mrf.mxu0
        %v2093 = vadd.f32 %v1980, %v2092
        %2094 = vmatmul.f32.gmra.mxu0 %v309
        %v2095 = vpop.f32.mrf.mxu0
        %v2096 = vadd.f32 %v1983, %v2095
        %2097 = vmatmul.f32.gmra.mxu0 %v312
        %v2098 = vpop.f32.mrf.mxu0
        %v2099 = vadd.f32 %v1986, %v2098
        %2100 = vmatmul.f32.gmra.mxu0 %v315
        %v2101 = vpop.f32.mrf.mxu0
        %v2102 = vadd.f32 %v1989, %v2101
        %2103 = vmatmul.f32.gmra.mxu0 %v318
        %v2104 = vpop.f32.mrf.mxu0
        %v2105 = vadd.f32 %v1992, %v2104
        %2106 = vmatmul.f32.gmra.mxu0 %v321
        %v2107 = vpop.f32.mrf.mxu0
        %v2108 = vadd.f32 %v1995, %v2107
        %2109 = vmatmul.f32.gmra.mxu0 %v324
        %v2110 = vpop.f32.mrf.mxu0
        %v2111 = vadd.f32 %v1998, %v2110
        %2112 = vmatmul.f32.gmra.mxu0 %v327
        %v2113 = vpop.f32.mrf.mxu0
        %v2114 = vadd.f32 %v2001, %v2113
        %2115 = vmatmul.f32.gmra.mxu0 %v330
        %v2116 = vpop.f32.mrf.mxu0
        %v2117 = vadd.f32 %v2004, %v2116
        %2118 = vmatmul.f32.gmra.mxu0 %v333
        %v2119 = vpop.f32.mrf.mxu0
        %v2120 = vadd.f32 %v2007, %v2119
        %2121 = vmatmul.f32.gmra.mxu0 %v336
        %v2122 = vpop.f32.mrf.mxu0
        %v2123 = vadd.f32 %v2010, %v2122
        %2124 = vmatmul.f32.gmra.mxu0 %v339
        %v2125 = vpop.f32.mrf.mxu0
        %v2126 = vadd.f32 %v2013, %v2125
        %2127 = vmatmul.f32.gmra.mxu0 %v342
        %v2128 = vpop.f32.mrf.mxu0
        %v2129 = vadd.f32 %v2016, %v2128
        %2130 = vmatmul.f32.gmra.mxu0 %v345
        %v2131 = vpop.f32.mrf.mxu0
        %v2132 = vadd.f32 %v2019, %v2131
        %2133 = vmatmul.f32.gmra.mxu0 %v348
        %v2134 = vpop.f32.mrf.mxu0
        %v2135 = vadd.f32 %v2022, %v2134
        %2136 = vmatmul.f32.gmra.mxu0 %v351
        %v2137 = vpop.f32.mrf.mxu0
        %v2138 = vadd.f32 %v2025, %v2137
        %2139 = vmatmul.f32.gmra.mxu0 %v354
        %v2140 = vpop.f32.mrf.mxu0
        %v2141 = vadd.f32 %v2028, %v2140
        %2142 = vmatmul.f32.gmra.mxu0 %v357
        %v2143 = vpop.f32.mrf.mxu0
        %v2144 = vadd.f32 %v2031, %v2143
        %2145 = vmatmul.f32.gmra.mxu0 %v360
        %v2146 = vpop.f32.mrf.mxu0
        %v2147 = vadd.f32 %v2034, %v2146
        %2148 = vmatmul.f32.gmra.mxu0 %v363
        %v2149 = vpop.f32.mrf.mxu0
        %v2150 = vadd.f32 %v2037, %v2149
        %2151 = vmatmul.f32.gmra.mxu0 %v366
        %v2152 = vpop.f32.mrf.mxu0
        %v2153 = vadd.f32 %v2040, %v2152
        %2154 = vmatmul.f32.gmra.mxu0 %v369
        %v2155 = vpop.f32.mrf.mxu0
        %v2156 = vadd.f32 %v2043, %v2155
        %2157 = vmatmul.f32.gmra.mxu0 %v372
        %v2158 = vpop.f32.mrf.mxu0
        %v2159 = vadd.f32 %v2046, %v2158
        %2160 = vmatmul.f32.gmra.mxu0 %v375
        %v2161 = vpop.f32.mrf.mxu0
        %v2162 = vadd.f32 %v2049, %v2161
        %2163 = vdwg.mxu0
        %2164 = vmatpush.msra.mxu0 %v515
        %2165 = vmatpush.msra.mxu0 %v506
        %2166 = vmatpush.msra.mxu0 %v497
        %2167 = vmatpush.msra.mxu0 %v488
        %2168 = vmatpush.msra.mxu0 %v479
        %2169 = vmatpush.msra.mxu0 %v470
        %2170 = vmatpush.msra.mxu0 %v461
        %2171 = vmatpush.msra.mxu0 %v452
        %2172 = vmatpush.msra.mxu0 %v443
        %2173 = vmatpush.msra.mxu0 %v434
        %2174 = vmatpush.msra.mxu0 %v425
        %2175 = vmatpush.msra.mxu0 %v416
        %2176 = vmatpush.msra.mxu0 %v407
        %2177 = vmatpush.msra.mxu0 %v398
        %2178 = vmatpush.msra.mxu0 %v389
        %2179 = vmatpush.msra.mxu0 %v380
        %2180 = vmatmul.f32.gmra.mxu0 %v280
        %v2181 = vpop.f32.mrf.mxu0
        %v2182 = vadd.f32 0.0, %v2181
        %2183 = vmatmul.f32.gmra.mxu0 %v283
        %v2184 = vpop.f32.mrf.mxu0
        %v2185 = vadd.f32 0.0, %v2184
        %2186 = vmatmul.f32.gmra.mxu0 %v286
        %v2187 = vpop.f32.mrf.mxu0
        %v2188 = vadd.f32 0.0, %v2187
        %2189 = vmatmul.f32.gmra.mxu0 %v289
        %v2190 = vpop.f32.mrf.mxu0
        %v2191 = vadd.f32 0.0, %v2190
        %2192 = vmatmul.f32.gmra.mxu0 %v292
        %v2193 = vpop.f32.mrf.mxu0
        %v2194 = vadd.f32 0.0, %v2193
        %2195 = vmatmul.f32.gmra.mxu0 %v295
        %v2196 = vpop.f32.mrf.mxu0
        %v2197 = vadd.f32 0.0, %v2196
        %2198 = vmatmul.f32.gmra.mxu0 %v298
        %v2199 = vpop.f32.mrf.mxu0
        %v2200 = vadd.f32 0.0, %v2199
        %2201 = vmatmul.f32.gmra.mxu0 %v301
        %v2202 = vpop.f32.mrf.mxu0
        %v2203 = vadd.f32 0.0, %v2202
        %2204 = vmatmul.f32.gmra.mxu0 %v304
        %v2205 = vpop.f32.mrf.mxu0
        %v2206 = vadd.f32 0.0, %v2205
        %2207 = vmatmul.f32.gmra.mxu0 %v307
        %v2208 = vpop.f32.mrf.mxu0
        %v2209 = vadd.f32 0.0, %v2208
        %2210 = vmatmul.f32.gmra.mxu0 %v310
        %v2211 = vpop.f32.mrf.mxu0
        %v2212 = vadd.f32 0.0, %v2211
        %2213 = vmatmul.f32.gmra.mxu0 %v313
        %v2214 = vpop.f32.mrf.mxu0
        %v2215 = vadd.f32 0.0, %v2214
        %2216 = vmatmul.f32.gmra.mxu0 %v316
        %v2217 = vpop.f32.mrf.mxu0
        %v2218 = vadd.f32 0.0, %v2217
        %2219 = vmatmul.f32.gmra.mxu0 %v319
        %v2220 = vpop.f32.mrf.mxu0
        %v2221 = vadd.f32 0.0, %v2220
        %2222 = vmatmul.f32.gmra.mxu0 %v322
        %v2223 = vpop.f32.mrf.mxu0
        %v2224 = vadd.f32 0.0, %v2223
        %2225 = vmatmul.f32.gmra.mxu0 %v325
        %v2226 = vpop.f32.mrf.mxu0
        %v2227 = vadd.f32 0.0, %v2226
        %2228 = vmatmul.f32.gmra.mxu0 %v328
        %v2229 = vpop.f32.mrf.mxu0
        %v2230 = vadd.f32 0.0, %v2229
        %2231 = vmatmul.f32.gmra.mxu0 %v331
        %v2232 = vpop.f32.mrf.mxu0
        %v2233 = vadd.f32 0.0, %v2232
        %2234 = vmatmul.f32.gmra.mxu0 %v334
        %v2235 = vpop.f32.mrf.mxu0
        %v2236 = vadd.f32 0.0, %v2235
        %2237 = vmatmul.f32.gmra.mxu0 %v337
        %v2238 = vpop.f32.mrf.mxu0
        %v2239 = vadd.f32 0.0, %v2238
        %2240 = vmatmul.f32.gmra.mxu0 %v340
        %v2241 = vpop.f32.mrf.mxu0
        %v2242 = vadd.f32 0.0, %v2241
        %2243 = vmatmul.f32.gmra.mxu0 %v343
        %v2244 = vpop.f32.mrf.mxu0
        %v2245 = vadd.f32 0.0, %v2244
        %2246 = vmatmul.f32.gmra.mxu0 %v346
        %v2247 = vpop.f32.mrf.mxu0
        %v2248 = vadd.f32 0.0, %v2247
        %2249 = vmatmul.f32.gmra.mxu0 %v349
        %v2250 = vpop.f32.mrf.mxu0
        %v2251 = vadd.f32 0.0, %v2250
        %2252 = vmatmul.f32.gmra.mxu0 %v352
        %v2253 = vpop.f32.mrf.mxu0
        %v2254 = vadd.f32 0.0, %v2253
        %2255 = vmatmul.f32.gmra.mxu0 %v355
        %v2256 = vpop.f32.mrf.mxu0
        %v2257 = vadd.f32 0.0, %v2256
        %2258 = vmatmul.f32.gmra.mxu0 %v358
        %v2259 = vpop.f32.mrf.mxu0
        %v2260 = vadd.f32 0.0, %v2259
        %2261 = vmatmul.f32.gmra.mxu0 %v361
        %v2262 = vpop.f32.mrf.mxu0
        %v2263 = vadd.f32 0.0, %v2262
        %2264 = vmatmul.f32.gmra.mxu0 %v364
        %v2265 = vpop.f32.mrf.mxu0
        %v2266 = vadd.f32 0.0, %v2265
        %2267 = vmatmul.f32.gmra.mxu0 %v367
        %v2268 = vpop.f32.mrf.mxu0
        %v2269 = vadd.f32 0.0, %v2268
        %2270 = vmatmul.f32.gmra.mxu0 %v370
        %v2271 = vpop.f32.mrf.mxu0
        %v2272 = vadd.f32 0.0, %v2271
        %2273 = vmatmul.f32.gmra.mxu0 %v373
        %v2274 = vpop.f32.mrf.mxu0
        %v2275 = vadd.f32 0.0, %v2274
        %2276 = vdwg.mxu0
        %2277 = vmatpush.msra.mxu0 %v659
        %2278 = vmatpush.msra.mxu0 %v650
        %2279 = vmatpush.msra.mxu0 %v641
        %2280 = vmatpush.msra.mxu0 %v632
        %2281 = vmatpush.msra.mxu0 %v623
        %2282 = vmatpush.msra.mxu0 %v614
        %2283 = vmatpush.msra.mxu0 %v605
        %2284 = vmatpush.msra.mxu0 %v596
        %2285 = vmatpush.msra.mxu0 %v587
        %2286 = vmatpush.msra.mxu0 %v578
        %2287 = vmatpush.msra.mxu0 %v569
        %2288 = vmatpush.msra.mxu0 %v560
        %2289 = vmatpush.msra.mxu0 %v551
        %2290 = vmatpush.msra.mxu0 %v542
        %2291 = vmatpush.msra.mxu0 %v533
        %2292 = vmatpush.msra.mxu0 %v524
        %2293 = vmatmul.f32.gmra.mxu0 %v281
        %v2294 = vpop.f32.mrf.mxu0
        %v2295 = vadd.f32 %v2182, %v2294
        %2296 = vmatmul.f32.gmra.mxu0 %v284
        %v2297 = vpop.f32.mrf.mxu0
        %v2298 = vadd.f32 %v2185, %v2297
        %2299 = vmatmul.f32.gmra.mxu0 %v287
        %v2300 = vpop.f32.mrf.mxu0
        %v2301 = vadd.f32 %v2188, %v2300
        %2302 = vmatmul.f32.gmra.mxu0 %v290
        %v2303 = vpop.f32.mrf.mxu0
        %v2304 = vadd.f32 %v2191, %v2303
        %2305 = vmatmul.f32.gmra.mxu0 %v293
        %v2306 = vpop.f32.mrf.mxu0
        %v2307 = vadd.f32 %v2194, %v2306
        %2308 = vmatmul.f32.gmra.mxu0 %v296
        %v2309 = vpop.f32.mrf.mxu0
        %v2310 = vadd.f32 %v2197, %v2309
        %2311 = vmatmul.f32.gmra.mxu0 %v299
        %v2312 = vpop.f32.mrf.mxu0
        %v2313 = vadd.f32 %v2200, %v2312
        %2314 = vmatmul.f32.gmra.mxu0 %v302
        %v2315 = vpop.f32.mrf.mxu0
        %v2316 = vadd.f32 %v2203, %v2315
        %2317 = vmatmul.f32.gmra.mxu0 %v305
        %v2318 = vpop.f32.mrf.mxu0
        %v2319 = vadd.f32 %v2206, %v2318
        %2320 = vmatmul.f32.gmra.mxu0 %v308
        %v2321 = vpop.f32.mrf.mxu0
        %v2322 = vadd.f32 %v2209, %v2321
        %2323 = vmatmul.f32.gmra.mxu0 %v311
        %v2324 = vpop.f32.mrf.mxu0
        %v2325 = vadd.f32 %v2212, %v2324
        %2326 = vmatmul.f32.gmra.mxu0 %v314
        %v2327 = vpop.f32.mrf.mxu0
        %v2328 = vadd.f32 %v2215, %v2327
        %2329 = vmatmul.f32.gmra.mxu0 %v317
        %v2330 = vpop.f32.mrf.mxu0
        %v2331 = vadd.f32 %v2218, %v2330
        %2332 = vmatmul.f32.gmra.mxu0 %v320
        %v2333 = vpop.f32.mrf.mxu0
        %v2334 = vadd.f32 %v2221, %v2333
        %2335 = vmatmul.f32.gmra.mxu0 %v323
        %v2336 = vpop.f32.mrf.mxu0
        %v2337 = vadd.f32 %v2224, %v2336
        %2338 = vmatmul.f32.gmra.mxu0 %v326
        %v2339 = vpop.f32.mrf.mxu0
        %v2340 = vadd.f32 %v2227, %v2339
        %2341 = vmatmul.f32.gmra.mxu0 %v329
        %v2342 = vpop.f32.mrf.mxu0
        %v2343 = vadd.f32 %v2230, %v2342
        %2344 = vmatmul.f32.gmra.mxu0 %v332
        %v2345 = vpop.f32.mrf.mxu0
        %v2346 = vadd.f32 %v2233, %v2345
        %2347 = vmatmul.f32.gmra.mxu0 %v335
        %v2348 = vpop.f32.mrf.mxu0
        %v2349 = vadd.f32 %v2236, %v2348
        %2350 = vmatmul.f32.gmra.mxu0 %v338
        %v2351 = vpop.f32.mrf.mxu0
        %v2352 = vadd.f32 %v2239, %v2351
        %2353 = vmatmul.f32.gmra.mxu0 %v341
        %v2354 = vpop.f32.mrf.mxu0
        %v2355 = vadd.f32 %v2242, %v2354
        %2356 = vmatmul.f32.gmra.mxu0 %v344
        %v2357 = vpop.f32.mrf.mxu0
        %v2358 = vadd.f32 %v2245, %v2357
        %2359 = vmatmul.f32.gmra.mxu0 %v347
        %v2360 = vpop.f32.mrf.mxu0
        %v2361 = vadd.f32 %v2248, %v2360
        %2362 = vmatmul.f32.gmra.mxu0 %v350
        %v2363 = vpop.f32.mrf.mxu0
        %v2364 = vadd.f32 %v2251, %v2363
        %2365 = vmatmul.f32.gmra.mxu0 %v353
        %v2366 = vpop.f32.mrf.mxu0
        %v2367 = vadd.f32 %v2254, %v2366
        %2368 = vmatmul.f32.gmra.mxu0 %v356
        %v2369 = vpop.f32.mrf.mxu0
        %v2370 = vadd.f32 %v2257, %v2369
        %2371 = vmatmul.f32.gmra.mxu0 %v359
        %v2372 = vpop.f32.mrf.mxu0
        %v2373 = vadd.f32 %v2260, %v2372
        %2374 = vmatmul.f32.gmra.mxu0 %v362
        %v2375 = vpop.f32.mrf.mxu0
        %v2376 = vadd.f32 %v2263, %v2375
        %2377 = vmatmul.f32.gmra.mxu0 %v365
        %v2378 = vpop.f32.mrf.mxu0
        %v2379 = vadd.f32 %v2266, %v2378
        %2380 = vmatmul.f32.gmra.mxu0 %v368
        %v2381 = vpop.f32.mrf.mxu0
        %v2382 = vadd.f32 %v2269, %v2381
        %2383 = vmatmul.f32.gmra.mxu0 %v371
        %v2384 = vpop.f32.mrf.mxu0
        %v2385 = vadd.f32 %v2272, %v2384
        %2386 = vmatmul.f32.gmra.mxu0 %v374
        %v2387 = vpop.f32.mrf.mxu0
        %v2388 = vadd.f32 %v2275, %v2387
        %2389 = vdwg.mxu0
        %2390 = vmatpush.msra.mxu0 %v803
        %2391 = vmatpush.msra.mxu0 %v794
        %2392 = vmatpush.msra.mxu0 %v785
        %2393 = vmatpush.msra.mxu0 %v776
        %2394 = vmatpush.msra.mxu0 %v767
        %2395 = vmatpush.msra.mxu0 %v758
        %2396 = vmatpush.msra.mxu0 %v749
        %2397 = vmatpush.msra.mxu0 %v740
        %2398 = vmatpush.msra.mxu0 %v731
        %2399 = vmatpush.msra.mxu0 %v722
        %2400 = vmatpush.msra.mxu0 %v713
        %2401 = vmatpush.msra.mxu0 %v704
        %2402 = vmatpush.msra.mxu0 %v695
        %2403 = vmatpush.msra.mxu0 %v686
        %2404 = vmatpush.msra.mxu0 %v677
        %2405 = vmatpush.msra.mxu0 %v668
        %2406 = vmatmul.f32.gmra.mxu0 %v282
        %v2407 = vpop.f32.mrf.mxu0
        %v2408 = vadd.f32 %v2295, %v2407
        %2409 = vmatmul.f32.gmra.mxu0 %v285
        %v2410 = vpop.f32.mrf.mxu0
        %v2411 = vadd.f32 %v2298, %v2410
        %2412 = vmatmul.f32.gmra.mxu0 %v288
        %v2413 = vpop.f32.mrf.mxu0
        %v2414 = vadd.f32 %v2301, %v2413
        %2415 = vmatmul.f32.gmra.mxu0 %v291
        %v2416 = vpop.f32.mrf.mxu0
        %v2417 = vadd.f32 %v2304, %v2416
        %2418 = vmatmul.f32.gmra.mxu0 %v294
        %v2419 = vpop.f32.mrf.mxu0
        %v2420 = vadd.f32 %v2307, %v2419
        %2421 = vmatmul.f32.gmra.mxu0 %v297
        %v2422 = vpop.f32.mrf.mxu0
        %v2423 = vadd.f32 %v2310, %v2422
        %2424 = vmatmul.f32.gmra.mxu0 %v300
        %v2425 = vpop.f32.mrf.mxu0
        %v2426 = vadd.f32 %v2313, %v2425
        %2427 = vmatmul.f32.gmra.mxu0 %v303
        %v2428 = vpop.f32.mrf.mxu0
        %v2429 = vadd.f32 %v2316, %v2428
        %2430 = vmatmul.f32.gmra.mxu0 %v306
        %v2431 = vpop.f32.mrf.mxu0
        %v2432 = vadd.f32 %v2319, %v2431
        %2433 = vmatmul.f32.gmra.mxu0 %v309
        %v2434 = vpop.f32.mrf.mxu0
        %v2435 = vadd.f32 %v2322, %v2434
        %2436 = vmatmul.f32.gmra.mxu0 %v312
        %v2437 = vpop.f32.mrf.mxu0
        %v2438 = vadd.f32 %v2325, %v2437
        %2439 = vmatmul.f32.gmra.mxu0 %v315
        %v2440 = vpop.f32.mrf.mxu0
        %v2441 = vadd.f32 %v2328, %v2440
        %2442 = vmatmul.f32.gmra.mxu0 %v318
        %v2443 = vpop.f32.mrf.mxu0
        %v2444 = vadd.f32 %v2331, %v2443
        %2445 = vmatmul.f32.gmra.mxu0 %v321
        %v2446 = vpop.f32.mrf.mxu0
        %v2447 = vadd.f32 %v2334, %v2446
        %2448 = vmatmul.f32.gmra.mxu0 %v324
        %v2449 = vpop.f32.mrf.mxu0
        %v2450 = vadd.f32 %v2337, %v2449
        %2451 = vmatmul.f32.gmra.mxu0 %v327
        %v2452 = vpop.f32.mrf.mxu0
        %v2453 = vadd.f32 %v2340, %v2452
        %2454 = vmatmul.f32.gmra.mxu0 %v330
        %v2455 = vpop.f32.mrf.mxu0
        %v2456 = vadd.f32 %v2343, %v2455
        %2457 = vmatmul.f32.gmra.mxu0 %v333
        %v2458 = vpop.f32.mrf.mxu0
        %v2459 = vadd.f32 %v2346, %v2458
        %2460 = vmatmul.f32.gmra.mxu0 %v336
        %v2461 = vpop.f32.mrf.mxu0
        %v2462 = vadd.f32 %v2349, %v2461
        %2463 = vmatmul.f32.gmra.mxu0 %v339
        %v2464 = vpop.f32.mrf.mxu0
        %v2465 = vadd.f32 %v2352, %v2464
        %2466 = vmatmul.f32.gmra.mxu0 %v342
        %v2467 = vpop.f32.mrf.mxu0
        %v2468 = vadd.f32 %v2355, %v2467
        %2469 = vmatmul.f32.gmra.mxu0 %v345
        %v2470 = vpop.f32.mrf.mxu0
        %v2471 = vadd.f32 %v2358, %v2470
        %2472 = vmatmul.f32.gmra.mxu0 %v348
        %v2473 = vpop.f32.mrf.mxu0
        %v2474 = vadd.f32 %v2361, %v2473
        %2475 = vmatmul.f32.gmra.mxu0 %v351
        %v2476 = vpop.f32.mrf.mxu0
        %v2477 = vadd.f32 %v2364, %v2476
        %2478 = vmatmul.f32.gmra.mxu0 %v354
        %v2479 = vpop.f32.mrf.mxu0
        %v2480 = vadd.f32 %v2367, %v2479
        %2481 = vmatmul.f32.gmra.mxu0 %v357
        %v2482 = vpop.f32.mrf.mxu0
        %v2483 = vadd.f32 %v2370, %v2482
        %2484 = vmatmul.f32.gmra.mxu0 %v360
        %v2485 = vpop.f32.mrf.mxu0
        %v2486 = vadd.f32 %v2373, %v2485
        %2487 = vmatmul.f32.gmra.mxu0 %v363
        %v2488 = vpop.f32.mrf.mxu0
        %v2489 = vadd.f32 %v2376, %v2488
        %2490 = vmatmul.f32.gmra.mxu0 %v366
        %v2491 = vpop.f32.mrf.mxu0
        %v2492 = vadd.f32 %v2379, %v2491
        %2493 = vmatmul.f32.gmra.mxu0 %v369
        %v2494 = vpop.f32.mrf.mxu0
        %v2495 = vadd.f32 %v2382, %v2494
        %2496 = vmatmul.f32.gmra.mxu0 %v372
        %v2497 = vpop.f32.mrf.mxu0
        %v2498 = vadd.f32 %v2385, %v2497
        %2499 = vmatmul.f32.gmra.mxu0 %v375
        %v2500 = vpop.f32.mrf.mxu0
        %v2501 = vadd.f32 %v2388, %v2500
        %2502 = vdwg.mxu0
        %2503 = vmatpush.msra.mxu0 %v516
        %2504 = vmatpush.msra.mxu0 %v507
        %2505 = vmatpush.msra.mxu0 %v498
        %2506 = vmatpush.msra.mxu0 %v489
        %2507 = vmatpush.msra.mxu0 %v480
        %2508 = vmatpush.msra.mxu0 %v471
        %2509 = vmatpush.msra.mxu0 %v462
        %2510 = vmatpush.msra.mxu0 %v453
        %2511 = vmatpush.msra.mxu0 %v444
        %2512 = vmatpush.msra.mxu0 %v435
        %2513 = vmatpush.msra.mxu0 %v426
        %2514 = vmatpush.msra.mxu0 %v417
        %2515 = vmatpush.msra.mxu0 %v408
        %2516 = vmatpush.msra.mxu0 %v399
        %2517 = vmatpush.msra.mxu0 %v390
        %2518 = vmatpush.msra.mxu0 %v381
        %2519 = vmatmul.f32.gmra.mxu0 %v280
        %v2520 = vpop.f32.mrf.mxu0
        %v2521 = vadd.f32 0.0, %v2520
        %2522 = vmatmul.f32.gmra.mxu0 %v283
        %v2523 = vpop.f32.mrf.mxu0
        %v2524 = vadd.f32 0.0, %v2523
        %2525 = vmatmul.f32.gmra.mxu0 %v286
        %v2526 = vpop.f32.mrf.mxu0
        %v2527 = vadd.f32 0.0, %v2526
        %2528 = vmatmul.f32.gmra.mxu0 %v289
        %v2529 = vpop.f32.mrf.mxu0
        %v2530 = vadd.f32 0.0, %v2529
        %2531 = vmatmul.f32.gmra.mxu0 %v292
        %v2532 = vpop.f32.mrf.mxu0
        %v2533 = vadd.f32 0.0, %v2532
        %2534 = vmatmul.f32.gmra.mxu0 %v295
        %v2535 = vpop.f32.mrf.mxu0
        %v2536 = vadd.f32 0.0, %v2535
        %2537 = vmatmul.f32.gmra.mxu0 %v298
        %v2538 = vpop.f32.mrf.mxu0
        %v2539 = vadd.f32 0.0, %v2538
        %2540 = vmatmul.f32.gmra.mxu0 %v301
        %v2541 = vpop.f32.mrf.mxu0
        %v2542 = vadd.f32 0.0, %v2541
        %2543 = vmatmul.f32.gmra.mxu0 %v304
        %v2544 = vpop.f32.mrf.mxu0
        %v2545 = vadd.f32 0.0, %v2544
        %2546 = vmatmul.f32.gmra.mxu0 %v307
        %v2547 = vpop.f32.mrf.mxu0
        %v2548 = vadd.f32 0.0, %v2547
        %2549 = vmatmul.f32.gmra.mxu0 %v310
        %v2550 = vpop.f32.mrf.mxu0
        %v2551 = vadd.f32 0.0, %v2550
        %2552 = vmatmul.f32.gmra.mxu0 %v313
        %v2553 = vpop.f32.mrf.mxu0
        %v2554 = vadd.f32 0.0, %v2553
        %2555 = vmatmul.f32.gmra.mxu0 %v316
        %v2556 = vpop.f32.mrf.mxu0
        %v2557 = vadd.f32 0.0, %v2556
        %2558 = vmatmul.f32.gmra.mxu0 %v319
        %v2559 = vpop.f32.mrf.mxu0
        %v2560 = vadd.f32 0.0, %v2559
        %2561 = vmatmul.f32.gmra.mxu0 %v322
        %v2562 = vpop.f32.mrf.mxu0
        %v2563 = vadd.f32 0.0, %v2562
        %2564 = vmatmul.f32.gmra.mxu0 %v325
        %v2565 = vpop.f32.mrf.mxu0
        %v2566 = vadd.f32 0.0, %v2565
        %2567 = vmatmul.f32.gmra.mxu0 %v328
        %v2568 = vpop.f32.mrf.mxu0
        %v2569 = vadd.f32 0.0, %v2568
        %2570 = vmatmul.f32.gmra.mxu0 %v331
        %v2571 = vpop.f32.mrf.mxu0
        %v2572 = vadd.f32 0.0, %v2571
        %2573 = vmatmul.f32.gmra.mxu0 %v334
        %v2574 = vpop.f32.mrf.mxu0
        %v2575 = vadd.f32 0.0, %v2574
        %2576 = vmatmul.f32.gmra.mxu0 %v337
        %v2577 = vpop.f32.mrf.mxu0
        %v2578 = vadd.f32 0.0, %v2577
        %2579 = vmatmul.f32.gmra.mxu0 %v340
        %v2580 = vpop.f32.mrf.mxu0
        %v2581 = vadd.f32 0.0, %v2580
        %2582 = vmatmul.f32.gmra.mxu0 %v343
        %v2583 = vpop.f32.mrf.mxu0
        %v2584 = vadd.f32 0.0, %v2583
        %2585 = vmatmul.f32.gmra.mxu0 %v346
        %v2586 = vpop.f32.mrf.mxu0
        %v2587 = vadd.f32 0.0, %v2586
        %2588 = vmatmul.f32.gmra.mxu0 %v349
        %v2589 = vpop.f32.mrf.mxu0
        %v2590 = vadd.f32 0.0, %v2589
        %2591 = vmatmul.f32.gmra.mxu0 %v352
        %v2592 = vpop.f32.mrf.mxu0
        %v2593 = vadd.f32 0.0, %v2592
        %2594 = vmatmul.f32.gmra.mxu0 %v355
        %v2595 = vpop.f32.mrf.mxu0
        %v2596 = vadd.f32 0.0, %v2595
        %2597 = vmatmul.f32.gmra.mxu0 %v358
        %v2598 = vpop.f32.mrf.mxu0
        %v2599 = vadd.f32 0.0, %v2598
        %2600 = vmatmul.f32.gmra.mxu0 %v361
        %v2601 = vpop.f32.mrf.mxu0
        %v2602 = vadd.f32 0.0, %v2601
        %2603 = vmatmul.f32.gmra.mxu0 %v364
        %v2604 = vpop.f32.mrf.mxu0
        %v2605 = vadd.f32 0.0, %v2604
        %2606 = vmatmul.f32.gmra.mxu0 %v367
        %v2607 = vpop.f32.mrf.mxu0
        %v2608 = vadd.f32 0.0, %v2607
        %2609 = vmatmul.f32.gmra.mxu0 %v370
        %v2610 = vpop.f32.mrf.mxu0
        %v2611 = vadd.f32 0.0, %v2610
        %2612 = vmatmul.f32.gmra.mxu0 %v373
        %v2613 = vpop.f32.mrf.mxu0
        %v2614 = vadd.f32 0.0, %v2613
        %2615 = vdwg.mxu0
        %2616 = vmatpush.msra.mxu0 %v660
        %2617 = vmatpush.msra.mxu0 %v651
        %2618 = vmatpush.msra.mxu0 %v642
        %2619 = vmatpush.msra.mxu0 %v633
        %2620 = vmatpush.msra.mxu0 %v624
        %2621 = vmatpush.msra.mxu0 %v615
        %2622 = vmatpush.msra.mxu0 %v606
        %2623 = vmatpush.msra.mxu0 %v597
        %2624 = vmatpush.msra.mxu0 %v588
        %2625 = vmatpush.msra.mxu0 %v579
        %2626 = vmatpush.msra.mxu0 %v570
        %2627 = vmatpush.msra.mxu0 %v561
        %2628 = vmatpush.msra.mxu0 %v552
        %2629 = vmatpush.msra.mxu0 %v543
        %2630 = vmatpush.msra.mxu0 %v534
        %2631 = vmatpush.msra.mxu0 %v525
        %2632 = vmatmul.f32.gmra.mxu0 %v281
        %v2633 = vpop.f32.mrf.mxu0
        %v2634 = vadd.f32 %v2521, %v2633
        %2635 = vmatmul.f32.gmra.mxu0 %v284
        %v2636 = vpop.f32.mrf.mxu0
        %v2637 = vadd.f32 %v2524, %v2636
        %2638 = vmatmul.f32.gmra.mxu0 %v287
        %v2639 = vpop.f32.mrf.mxu0
        %v2640 = vadd.f32 %v2527, %v2639
        %2641 = vmatmul.f32.gmra.mxu0 %v290
        %v2642 = vpop.f32.mrf.mxu0
        %v2643 = vadd.f32 %v2530, %v2642
        %2644 = vmatmul.f32.gmra.mxu0 %v293
        %v2645 = vpop.f32.mrf.mxu0
        %v2646 = vadd.f32 %v2533, %v2645
        %2647 = vmatmul.f32.gmra.mxu0 %v296
        %v2648 = vpop.f32.mrf.mxu0
        %v2649 = vadd.f32 %v2536, %v2648
        %2650 = vmatmul.f32.gmra.mxu0 %v299
        %v2651 = vpop.f32.mrf.mxu0
        %v2652 = vadd.f32 %v2539, %v2651
        %2653 = vmatmul.f32.gmra.mxu0 %v302
        %v2654 = vpop.f32.mrf.mxu0
        %v2655 = vadd.f32 %v2542, %v2654
        %2656 = vmatmul.f32.gmra.mxu0 %v305
        %v2657 = vpop.f32.mrf.mxu0
        %v2658 = vadd.f32 %v2545, %v2657
        %2659 = vmatmul.f32.gmra.mxu0 %v308
        %v2660 = vpop.f32.mrf.mxu0
        %v2661 = vadd.f32 %v2548, %v2660
        %2662 = vmatmul.f32.gmra.mxu0 %v311
        %v2663 = vpop.f32.mrf.mxu0
        %v2664 = vadd.f32 %v2551, %v2663
        %2665 = vmatmul.f32.gmra.mxu0 %v314
        %v2666 = vpop.f32.mrf.mxu0
        %v2667 = vadd.f32 %v2554, %v2666
        %2668 = vmatmul.f32.gmra.mxu0 %v317
        %v2669 = vpop.f32.mrf.mxu0
        %v2670 = vadd.f32 %v2557, %v2669
        %2671 = vmatmul.f32.gmra.mxu0 %v320
        %v2672 = vpop.f32.mrf.mxu0
        %v2673 = vadd.f32 %v2560, %v2672
        %2674 = vmatmul.f32.gmra.mxu0 %v323
        %v2675 = vpop.f32.mrf.mxu0
        %v2676 = vadd.f32 %v2563, %v2675
        %2677 = vmatmul.f32.gmra.mxu0 %v326
        %v2678 = vpop.f32.mrf.mxu0
        %v2679 = vadd.f32 %v2566, %v2678
        %2680 = vmatmul.f32.gmra.mxu0 %v329
        %v2681 = vpop.f32.mrf.mxu0
        %v2682 = vadd.f32 %v2569, %v2681
        %2683 = vmatmul.f32.gmra.mxu0 %v332
        %v2684 = vpop.f32.mrf.mxu0
        %v2685 = vadd.f32 %v2572, %v2684
        %2686 = vmatmul.f32.gmra.mxu0 %v335
        %v2687 = vpop.f32.mrf.mxu0
        %v2688 = vadd.f32 %v2575, %v2687
        %2689 = vmatmul.f32.gmra.mxu0 %v338
        %v2690 = vpop.f32.mrf.mxu0
        %v2691 = vadd.f32 %v2578, %v2690
        %2692 = vmatmul.f32.gmra.mxu0 %v341
        %v2693 = vpop.f32.mrf.mxu0
        %v2694 = vadd.f32 %v2581, %v2693
        %2695 = vmatmul.f32.gmra.mxu0 %v344
        %v2696 = vpop.f32.mrf.mxu0
        %v2697 = vadd.f32 %v2584, %v2696
        %2698 = vmatmul.f32.gmra.mxu0 %v347
        %v2699 = vpop.f32.mrf.mxu0
        %v2700 = vadd.f32 %v2587, %v2699
        %2701 = vmatmul.f32.gmra.mxu0 %v350
        %v2702 = vpop.f32.mrf.mxu0
        %v2703 = vadd.f32 %v2590, %v2702
        %2704 = vmatmul.f32.gmra.mxu0 %v353
        %v2705 = vpop.f32.mrf.mxu0
        %v2706 = vadd.f32 %v2593, %v2705
        %2707 = vmatmul.f32.gmra.mxu0 %v356
        %v2708 = vpop.f32.mrf.mxu0
        %v2709 = vadd.f32 %v2596, %v2708
        %2710 = vmatmul.f32.gmra.mxu0 %v359
        %v2711 = vpop.f32.mrf.mxu0
        %v2712 = vadd.f32 %v2599, %v2711
        %2713 = vmatmul.f32.gmra.mxu0 %v362
        %v2714 = vpop.f32.mrf.mxu0
        %v2715 = vadd.f32 %v2602, %v2714
        %2716 = vmatmul.f32.gmra.mxu0 %v365
        %v2717 = vpop.f32.mrf.mxu0
        %v2718 = vadd.f32 %v2605, %v2717
        %2719 = vmatmul.f32.gmra.mxu0 %v368
        %v2720 = vpop.f32.mrf.mxu0
        %v2721 = vadd.f32 %v2608, %v2720
        %2722 = vmatmul.f32.gmra.mxu0 %v371
        %v2723 = vpop.f32.mrf.mxu0
        %v2724 = vadd.f32 %v2611, %v2723
        %2725 = vmatmul.f32.gmra.mxu0 %v374
        %v2726 = vpop.f32.mrf.mxu0
        %v2727 = vadd.f32 %v2614, %v2726
        %2728 = vdwg.mxu0
        %2729 = vmatpush.msra.mxu0 %v804
        %2730 = vmatpush.msra.mxu0 %v795
        %2731 = vmatpush.msra.mxu0 %v786
        %2732 = vmatpush.msra.mxu0 %v777
        %2733 = vmatpush.msra.mxu0 %v768
        %2734 = vmatpush.msra.mxu0 %v759
        %2735 = vmatpush.msra.mxu0 %v750
        %2736 = vmatpush.msra.mxu0 %v741
        %2737 = vmatpush.msra.mxu0 %v732
        %2738 = vmatpush.msra.mxu0 %v723
        %2739 = vmatpush.msra.mxu0 %v714
        %2740 = vmatpush.msra.mxu0 %v705
        %2741 = vmatpush.msra.mxu0 %v696
        %2742 = vmatpush.msra.mxu0 %v687
        %2743 = vmatpush.msra.mxu0 %v678
        %2744 = vmatpush.msra.mxu0 %v669
        %2745 = vmatmul.f32.gmra.mxu0 %v282
        %v2746 = vpop.f32.mrf.mxu0
        %v2747 = vadd.f32 %v2634, %v2746
        %2748 = vmatmul.f32.gmra.mxu0 %v285
        %v2749 = vpop.f32.mrf.mxu0
        %v2750 = vadd.f32 %v2637, %v2749
        %2751 = vmatmul.f32.gmra.mxu0 %v288
        %v2752 = vpop.f32.mrf.mxu0
        %v2753 = vadd.f32 %v2640, %v2752
        %2754 = vmatmul.f32.gmra.mxu0 %v291
        %v2755 = vpop.f32.mrf.mxu0
        %v2756 = vadd.f32 %v2643, %v2755
        %2757 = vmatmul.f32.gmra.mxu0 %v294
        %v2758 = vpop.f32.mrf.mxu0
        %v2759 = vadd.f32 %v2646, %v2758
        %2760 = vmatmul.f32.gmra.mxu0 %v297
        %v2761 = vpop.f32.mrf.mxu0
        %v2762 = vadd.f32 %v2649, %v2761
        %2763 = vmatmul.f32.gmra.mxu0 %v300
        %v2764 = vpop.f32.mrf.mxu0
        %v2765 = vadd.f32 %v2652, %v2764
        %2766 = vmatmul.f32.gmra.mxu0 %v303
        %v2767 = vpop.f32.mrf.mxu0
        %v2768 = vadd.f32 %v2655, %v2767
        %2769 = vmatmul.f32.gmra.mxu0 %v306
        %v2770 = vpop.f32.mrf.mxu0
        %v2771 = vadd.f32 %v2658, %v2770
        %2772 = vmatmul.f32.gmra.mxu0 %v309
        %v2773 = vpop.f32.mrf.mxu0
        %v2774 = vadd.f32 %v2661, %v2773
        %2775 = vmatmul.f32.gmra.mxu0 %v312
        %v2776 = vpop.f32.mrf.mxu0
        %v2777 = vadd.f32 %v2664, %v2776
        %2778 = vmatmul.f32.gmra.mxu0 %v315
        %v2779 = vpop.f32.mrf.mxu0
        %v2780 = vadd.f32 %v2667, %v2779
        %2781 = vmatmul.f32.gmra.mxu0 %v318
        %v2782 = vpop.f32.mrf.mxu0
        %v2783 = vadd.f32 %v2670, %v2782
        %2784 = vmatmul.f32.gmra.mxu0 %v321
        %v2785 = vpop.f32.mrf.mxu0
        %v2786 = vadd.f32 %v2673, %v2785
        %2787 = vmatmul.f32.gmra.mxu0 %v324
        %v2788 = vpop.f32.mrf.mxu0
        %v2789 = vadd.f32 %v2676, %v2788
        %2790 = vmatmul.f32.gmra.mxu0 %v327
        %v2791 = vpop.f32.mrf.mxu0
        %v2792 = vadd.f32 %v2679, %v2791
        %2793 = vmatmul.f32.gmra.mxu0 %v330
        %v2794 = vpop.f32.mrf.mxu0
        %v2795 = vadd.f32 %v2682, %v2794
        %2796 = vmatmul.f32.gmra.mxu0 %v333
        %v2797 = vpop.f32.mrf.mxu0
        %v2798 = vadd.f32 %v2685, %v2797
        %2799 = vmatmul.f32.gmra.mxu0 %v336
        %v2800 = vpop.f32.mrf.mxu0
        %v2801 = vadd.f32 %v2688, %v2800
        %2802 = vmatmul.f32.gmra.mxu0 %v339
        %v2803 = vpop.f32.mrf.mxu0
        %v2804 = vadd.f32 %v2691, %v2803
        %2805 = vmatmul.f32.gmra.mxu0 %v342
        %v2806 = vpop.f32.mrf.mxu0
        %v2807 = vadd.f32 %v2694, %v2806
        %2808 = vmatmul.f32.gmra.mxu0 %v345
        %v2809 = vpop.f32.mrf.mxu0
        %v2810 = vadd.f32 %v2697, %v2809
        %2811 = vmatmul.f32.gmra.mxu0 %v348
        %v2812 = vpop.f32.mrf.mxu0
        %v2813 = vadd.f32 %v2700, %v2812
        %2814 = vmatmul.f32.gmra.mxu0 %v351
        %v2815 = vpop.f32.mrf.mxu0
        %v2816 = vadd.f32 %v2703, %v2815
        %2817 = vmatmul.f32.gmra.mxu0 %v354
        %v2818 = vpop.f32.mrf.mxu0
        %v2819 = vadd.f32 %v2706, %v2818
        %2820 = vmatmul.f32.gmra.mxu0 %v357
        %v2821 = vpop.f32.mrf.mxu0
        %v2822 = vadd.f32 %v2709, %v2821
        %2823 = vmatmul.f32.gmra.mxu0 %v360
        %v2824 = vpop.f32.mrf.mxu0
        %v2825 = vadd.f32 %v2712, %v2824
        %2826 = vmatmul.f32.gmra.mxu0 %v363
        %v2827 = vpop.f32.mrf.mxu0
        %v2828 = vadd.f32 %v2715, %v2827
        %2829 = vmatmul.f32.gmra.mxu0 %v366
        %v2830 = vpop.f32.mrf.mxu0
        %v2831 = vadd.f32 %v2718, %v2830
        %2832 = vmatmul.f32.gmra.mxu0 %v369
        %v2833 = vpop.f32.mrf.mxu0
        %v2834 = vadd.f32 %v2721, %v2833
        %2835 = vmatmul.f32.gmra.mxu0 %v372
        %v2836 = vpop.f32.mrf.mxu0
        %v2837 = vadd.f32 %v2724, %v2836
        %2838 = vmatmul.f32.gmra.mxu0 %v375
        %v2839 = vpop.f32.mrf.mxu0
        %v2840 = vadd.f32 %v2727, %v2839
        %2841 = vdwg.mxu0
        %2842 = vmatpush.msra.mxu0 %v517
        %2843 = vmatpush.msra.mxu0 %v508
        %2844 = vmatpush.msra.mxu0 %v499
        %2845 = vmatpush.msra.mxu0 %v490
        %2846 = vmatpush.msra.mxu0 %v481
        %2847 = vmatpush.msra.mxu0 %v472
        %2848 = vmatpush.msra.mxu0 %v463
        %2849 = vmatpush.msra.mxu0 %v454
        %2850 = vmatpush.msra.mxu0 %v445
        %2851 = vmatpush.msra.mxu0 %v436
        %2852 = vmatpush.msra.mxu0 %v427
        %2853 = vmatpush.msra.mxu0 %v418
        %2854 = vmatpush.msra.mxu0 %v409
        %2855 = vmatpush.msra.mxu0 %v400
        %2856 = vmatpush.msra.mxu0 %v391
        %2857 = vmatpush.msra.mxu0 %v382
        %2858 = vmatmul.f32.gmra.mxu0 %v280
        %v2859 = vpop.f32.mrf.mxu0
        %v2860 = vadd.f32 0.0, %v2859
        %2861 = vmatmul.f32.gmra.mxu0 %v283
        %v2862 = vpop.f32.mrf.mxu0
        %v2863 = vadd.f32 0.0, %v2862
        %2864 = vmatmul.f32.gmra.mxu0 %v286
        %v2865 = vpop.f32.mrf.mxu0
        %v2866 = vadd.f32 0.0, %v2865
        %2867 = vmatmul.f32.gmra.mxu0 %v289
        %v2868 = vpop.f32.mrf.mxu0
        %v2869 = vadd.f32 0.0, %v2868
        %2870 = vmatmul.f32.gmra.mxu0 %v292
        %v2871 = vpop.f32.mrf.mxu0
        %v2872 = vadd.f32 0.0, %v2871
        %2873 = vmatmul.f32.gmra.mxu0 %v295
        %v2874 = vpop.f32.mrf.mxu0
        %v2875 = vadd.f32 0.0, %v2874
        %2876 = vmatmul.f32.gmra.mxu0 %v298
        %v2877 = vpop.f32.mrf.mxu0
        %v2878 = vadd.f32 0.0, %v2877
        %2879 = vmatmul.f32.gmra.mxu0 %v301
        %v2880 = vpop.f32.mrf.mxu0
        %v2881 = vadd.f32 0.0, %v2880
        %2882 = vmatmul.f32.gmra.mxu0 %v304
        %v2883 = vpop.f32.mrf.mxu0
        %v2884 = vadd.f32 0.0, %v2883
        %2885 = vmatmul.f32.gmra.mxu0 %v307
        %v2886 = vpop.f32.mrf.mxu0
        %v2887 = vadd.f32 0.0, %v2886
        %2888 = vmatmul.f32.gmra.mxu0 %v310
        %v2889 = vpop.f32.mrf.mxu0
        %v2890 = vadd.f32 0.0, %v2889
        %2891 = vmatmul.f32.gmra.mxu0 %v313
        %v2892 = vpop.f32.mrf.mxu0
        %v2893 = vadd.f32 0.0, %v2892
        %2894 = vmatmul.f32.gmra.mxu0 %v316
        %v2895 = vpop.f32.mrf.mxu0
        %v2896 = vadd.f32 0.0, %v2895
        %2897 = vmatmul.f32.gmra.mxu0 %v319
        %v2898 = vpop.f32.mrf.mxu0
        %v2899 = vadd.f32 0.0, %v2898
        %2900 = vmatmul.f32.gmra.mxu0 %v322
        %v2901 = vpop.f32.mrf.mxu0
        %v2902 = vadd.f32 0.0, %v2901
        %2903 = vmatmul.f32.gmra.mxu0 %v325
        %v2904 = vpop.f32.mrf.mxu0
        %v2905 = vadd.f32 0.0, %v2904
        %2906 = vmatmul.f32.gmra.mxu0 %v328
        %v2907 = vpop.f32.mrf.mxu0
        %v2908 = vadd.f32 0.0, %v2907
        %2909 = vmatmul.f32.gmra.mxu0 %v331
        %v2910 = vpop.f32.mrf.mxu0
        %v2911 = vadd.f32 0.0, %v2910
        %2912 = vmatmul.f32.gmra.mxu0 %v334
        %v2913 = vpop.f32.mrf.mxu0
        %v2914 = vadd.f32 0.0, %v2913
        %2915 = vmatmul.f32.gmra.mxu0 %v337
        %v2916 = vpop.f32.mrf.mxu0
        %v2917 = vadd.f32 0.0, %v2916
        %2918 = vmatmul.f32.gmra.mxu0 %v340
        %v2919 = vpop.f32.mrf.mxu0
        %v2920 = vadd.f32 0.0, %v2919
        %2921 = vmatmul.f32.gmra.mxu0 %v343
        %v2922 = vpop.f32.mrf.mxu0
        %v2923 = vadd.f32 0.0, %v2922
        %2924 = vmatmul.f32.gmra.mxu0 %v346
        %v2925 = vpop.f32.mrf.mxu0
        %v2926 = vadd.f32 0.0, %v2925
        %2927 = vmatmul.f32.gmra.mxu0 %v349
        %v2928 = vpop.f32.mrf.mxu0
        %v2929 = vadd.f32 0.0, %v2928
        %2930 = vmatmul.f32.gmra.mxu0 %v352
        %v2931 = vpop.f32.mrf.mxu0
        %v2932 = vadd.f32 0.0, %v2931
        %2933 = vmatmul.f32.gmra.mxu0 %v355
        %v2934 = vpop.f32.mrf.mxu0
        %v2935 = vadd.f32 0.0, %v2934
        %2936 = vmatmul.f32.gmra.mxu0 %v358
        %v2937 = vpop.f32.mrf.mxu0
        %v2938 = vadd.f32 0.0, %v2937
        %2939 = vmatmul.f32.gmra.mxu0 %v361
        %v2940 = vpop.f32.mrf.mxu0
        %v2941 = vadd.f32 0.0, %v2940
        %2942 = vmatmul.f32.gmra.mxu0 %v364
        %v2943 = vpop.f32.mrf.mxu0
        %v2944 = vadd.f32 0.0, %v2943
        %2945 = vmatmul.f32.gmra.mxu0 %v367
        %v2946 = vpop.f32.mrf.mxu0
        %v2947 = vadd.f32 0.0, %v2946
        %2948 = vmatmul.f32.gmra.mxu0 %v370
        %v2949 = vpop.f32.mrf.mxu0
        %v2950 = vadd.f32 0.0, %v2949
        %2951 = vmatmul.f32.gmra.mxu0 %v373
        %v2952 = vpop.f32.mrf.mxu0
        %v2953 = vadd.f32 0.0, %v2952
        %2954 = vdwg.mxu0
        %2955 = vmatpush.msra.mxu0 %v661
        %2956 = vmatpush.msra.mxu0 %v652
        %2957 = vmatpush.msra.mxu0 %v643
        %2958 = vmatpush.msra.mxu0 %v634
        %2959 = vmatpush.msra.mxu0 %v625
        %2960 = vmatpush.msra.mxu0 %v616
        %2961 = vmatpush.msra.mxu0 %v607
        %2962 = vmatpush.msra.mxu0 %v598
        %2963 = vmatpush.msra.mxu0 %v589
        %2964 = vmatpush.msra.mxu0 %v580
        %2965 = vmatpush.msra.mxu0 %v571
        %2966 = vmatpush.msra.mxu0 %v562
        %2967 = vmatpush.msra.mxu0 %v553
        %2968 = vmatpush.msra.mxu0 %v544
        %2969 = vmatpush.msra.mxu0 %v535
        %2970 = vmatpush.msra.mxu0 %v526
        %2971 = vmatmul.f32.gmra.mxu0 %v281
        %v2972 = vpop.f32.mrf.mxu0
        %v2973 = vadd.f32 %v2860, %v2972
        %2974 = vmatmul.f32.gmra.mxu0 %v284
        %v2975 = vpop.f32.mrf.mxu0
        %v2976 = vadd.f32 %v2863, %v2975
        %2977 = vmatmul.f32.gmra.mxu0 %v287
        %v2978 = vpop.f32.mrf.mxu0
        %v2979 = vadd.f32 %v2866, %v2978
        %2980 = vmatmul.f32.gmra.mxu0 %v290
        %v2981 = vpop.f32.mrf.mxu0
        %v2982 = vadd.f32 %v2869, %v2981
        %2983 = vmatmul.f32.gmra.mxu0 %v293
        %v2984 = vpop.f32.mrf.mxu0
        %v2985 = vadd.f32 %v2872, %v2984
        %2986 = vmatmul.f32.gmra.mxu0 %v296
        %v2987 = vpop.f32.mrf.mxu0
        %v2988 = vadd.f32 %v2875, %v2987
        %2989 = vmatmul.f32.gmra.mxu0 %v299
        %v2990 = vpop.f32.mrf.mxu0
        %v2991 = vadd.f32 %v2878, %v2990
        %2992 = vmatmul.f32.gmra.mxu0 %v302
        %v2993 = vpop.f32.mrf.mxu0
        %v2994 = vadd.f32 %v2881, %v2993
        %2995 = vmatmul.f32.gmra.mxu0 %v305
        %v2996 = vpop.f32.mrf.mxu0
        %v2997 = vadd.f32 %v2884, %v2996
        %2998 = vmatmul.f32.gmra.mxu0 %v308
        %v2999 = vpop.f32.mrf.mxu0
        %v3000 = vadd.f32 %v2887, %v2999
        %3001 = vmatmul.f32.gmra.mxu0 %v311
        %v3002 = vpop.f32.mrf.mxu0
        %v3003 = vadd.f32 %v2890, %v3002
        %3004 = vmatmul.f32.gmra.mxu0 %v314
        %v3005 = vpop.f32.mrf.mxu0
        %v3006 = vadd.f32 %v2893, %v3005
        %3007 = vmatmul.f32.gmra.mxu0 %v317
        %v3008 = vpop.f32.mrf.mxu0
        %v3009 = vadd.f32 %v2896, %v3008
        %3010 = vmatmul.f32.gmra.mxu0 %v320
        %v3011 = vpop.f32.mrf.mxu0
        %v3012 = vadd.f32 %v2899, %v3011
        %3013 = vmatmul.f32.gmra.mxu0 %v323
        %v3014 = vpop.f32.mrf.mxu0
        %v3015 = vadd.f32 %v2902, %v3014
        %3016 = vmatmul.f32.gmra.mxu0 %v326
        %v3017 = vpop.f32.mrf.mxu0
        %v3018 = vadd.f32 %v2905, %v3017
        %3019 = vmatmul.f32.gmra.mxu0 %v329
        %v3020 = vpop.f32.mrf.mxu0
        %v3021 = vadd.f32 %v2908, %v3020
        %3022 = vmatmul.f32.gmra.mxu0 %v332
        %v3023 = vpop.f32.mrf.mxu0
        %v3024 = vadd.f32 %v2911, %v3023
        %3025 = vmatmul.f32.gmra.mxu0 %v335
        %v3026 = vpop.f32.mrf.mxu0
        %v3027 = vadd.f32 %v2914, %v3026
        %3028 = vmatmul.f32.gmra.mxu0 %v338
        %v3029 = vpop.f32.mrf.mxu0
        %v3030 = vadd.f32 %v2917, %v3029
        %3031 = vmatmul.f32.gmra.mxu0 %v341
        %v3032 = vpop.f32.mrf.mxu0
        %v3033 = vadd.f32 %v2920, %v3032
        %3034 = vmatmul.f32.gmra.mxu0 %v344
        %v3035 = vpop.f32.mrf.mxu0
        %v3036 = vadd.f32 %v2923, %v3035
        %3037 = vmatmul.f32.gmra.mxu0 %v347
        %v3038 = vpop.f32.mrf.mxu0
        %v3039 = vadd.f32 %v2926, %v3038
        %3040 = vmatmul.f32.gmra.mxu0 %v350
        %v3041 = vpop.f32.mrf.mxu0
        %v3042 = vadd.f32 %v2929, %v3041
        %3043 = vmatmul.f32.gmra.mxu0 %v353
        %v3044 = vpop.f32.mrf.mxu0
        %v3045 = vadd.f32 %v2932, %v3044
        %3046 = vmatmul.f32.gmra.mxu0 %v356
        %v3047 = vpop.f32.mrf.mxu0
        %v3048 = vadd.f32 %v2935, %v3047
        %3049 = vmatmul.f32.gmra.mxu0 %v359
        %v3050 = vpop.f32.mrf.mxu0
        %v3051 = vadd.f32 %v2938, %v3050
        %3052 = vmatmul.f32.gmra.mxu0 %v362
        %v3053 = vpop.f32.mrf.mxu0
        %v3054 = vadd.f32 %v2941, %v3053
        %3055 = vmatmul.f32.gmra.mxu0 %v365
        %v3056 = vpop.f32.mrf.mxu0
        %v3057 = vadd.f32 %v2944, %v3056
        %3058 = vmatmul.f32.gmra.mxu0 %v368
        %v3059 = vpop.f32.mrf.mxu0
        %v3060 = vadd.f32 %v2947, %v3059
        %3061 = vmatmul.f32.gmra.mxu0 %v371
        %v3062 = vpop.f32.mrf.mxu0
        %v3063 = vadd.f32 %v2950, %v3062
        %3064 = vmatmul.f32.gmra.mxu0 %v374
        %v3065 = vpop.f32.mrf.mxu0
        %v3066 = vadd.f32 %v2953, %v3065
        %3067 = vdwg.mxu0
        %3068 = vmatpush.msra.mxu0 %v805
        %3069 = vmatpush.msra.mxu0 %v796
        %3070 = vmatpush.msra.mxu0 %v787
        %3071 = vmatpush.msra.mxu0 %v778
        %3072 = vmatpush.msra.mxu0 %v769
        %3073 = vmatpush.msra.mxu0 %v760
        %3074 = vmatpush.msra.mxu0 %v751
        %3075 = vmatpush.msra.mxu0 %v742
        %3076 = vmatpush.msra.mxu0 %v733
        %3077 = vmatpush.msra.mxu0 %v724
        %3078 = vmatpush.msra.mxu0 %v715
        %3079 = vmatpush.msra.mxu0 %v706
        %3080 = vmatpush.msra.mxu0 %v697
        %3081 = vmatpush.msra.mxu0 %v688
        %3082 = vmatpush.msra.mxu0 %v679
        %3083 = vmatpush.msra.mxu0 %v670
        %3084 = vmatmul.f32.gmra.mxu0 %v282
        %v3085 = vpop.f32.mrf.mxu0
        %v3086 = vadd.f32 %v2973, %v3085
        %3087 = vmatmul.f32.gmra.mxu0 %v285
        %v3088 = vpop.f32.mrf.mxu0
        %v3089 = vadd.f32 %v2976, %v3088
        %3090 = vmatmul.f32.gmra.mxu0 %v288
        %v3091 = vpop.f32.mrf.mxu0
        %v3092 = vadd.f32 %v2979, %v3091
        %3093 = vmatmul.f32.gmra.mxu0 %v291
        %v3094 = vpop.f32.mrf.mxu0
        %v3095 = vadd.f32 %v2982, %v3094
        %3096 = vmatmul.f32.gmra.mxu0 %v294
        %v3097 = vpop.f32.mrf.mxu0
        %v3098 = vadd.f32 %v2985, %v3097
        %3099 = vmatmul.f32.gmra.mxu0 %v297
        %v3100 = vpop.f32.mrf.mxu0
        %v3101 = vadd.f32 %v2988, %v3100
        %3102 = vmatmul.f32.gmra.mxu0 %v300
        %v3103 = vpop.f32.mrf.mxu0
        %v3104 = vadd.f32 %v2991, %v3103
        %3105 = vmatmul.f32.gmra.mxu0 %v303
        %v3106 = vpop.f32.mrf.mxu0
        %v3107 = vadd.f32 %v2994, %v3106
        %3108 = vmatmul.f32.gmra.mxu0 %v306
        %v3109 = vpop.f32.mrf.mxu0
        %v3110 = vadd.f32 %v2997, %v3109
        %3111 = vmatmul.f32.gmra.mxu0 %v309
        %v3112 = vpop.f32.mrf.mxu0
        %v3113 = vadd.f32 %v3000, %v3112
        %3114 = vmatmul.f32.gmra.mxu0 %v312
        %v3115 = vpop.f32.mrf.mxu0
        %v3116 = vadd.f32 %v3003, %v3115
        %3117 = vmatmul.f32.gmra.mxu0 %v315
        %v3118 = vpop.f32.mrf.mxu0
        %v3119 = vadd.f32 %v3006, %v3118
        %3120 = vmatmul.f32.gmra.mxu0 %v318
        %v3121 = vpop.f32.mrf.mxu0
        %v3122 = vadd.f32 %v3009, %v3121
        %3123 = vmatmul.f32.gmra.mxu0 %v321
        %v3124 = vpop.f32.mrf.mxu0
        %v3125 = vadd.f32 %v3012, %v3124
        %3126 = vmatmul.f32.gmra.mxu0 %v324
        %v3127 = vpop.f32.mrf.mxu0
        %v3128 = vadd.f32 %v3015, %v3127
        %3129 = vmatmul.f32.gmra.mxu0 %v327
        %v3130 = vpop.f32.mrf.mxu0
        %v3131 = vadd.f32 %v3018, %v3130
        %3132 = vmatmul.f32.gmra.mxu0 %v330
        %v3133 = vpop.f32.mrf.mxu0
        %v3134 = vadd.f32 %v3021, %v3133
        %3135 = vmatmul.f32.gmra.mxu0 %v333
        %v3136 = vpop.f32.mrf.mxu0
        %v3137 = vadd.f32 %v3024, %v3136
        %3138 = vmatmul.f32.gmra.mxu0 %v336
        %v3139 = vpop.f32.mrf.mxu0
        %v3140 = vadd.f32 %v3027, %v3139
        %3141 = vmatmul.f32.gmra.mxu0 %v339
        %v3142 = vpop.f32.mrf.mxu0
        %v3143 = vadd.f32 %v3030, %v3142
        %3144 = vmatmul.f32.gmra.mxu0 %v342
        %v3145 = vpop.f32.mrf.mxu0
        %v3146 = vadd.f32 %v3033, %v3145
        %3147 = vmatmul.f32.gmra.mxu0 %v345
        %v3148 = vpop.f32.mrf.mxu0
        %v3149 = vadd.f32 %v3036, %v3148
        %3150 = vmatmul.f32.gmra.mxu0 %v348
        %v3151 = vpop.f32.mrf.mxu0
        %v3152 = vadd.f32 %v3039, %v3151
        %3153 = vmatmul.f32.gmra.mxu0 %v351
        %v3154 = vpop.f32.mrf.mxu0
        %v3155 = vadd.f32 %v3042, %v3154
        %3156 = vmatmul.f32.gmra.mxu0 %v354
        %v3157 = vpop.f32.mrf.mxu0
        %v3158 = vadd.f32 %v3045, %v3157
        %3159 = vmatmul.f32.gmra.mxu0 %v357
        %v3160 = vpop.f32.mrf.mxu0
        %v3161 = vadd.f32 %v3048, %v3160
        %3162 = vmatmul.f32.gmra.mxu0 %v360
        %v3163 = vpop.f32.mrf.mxu0
        %v3164 = vadd.f32 %v3051, %v3163
        %3165 = vmatmul.f32.gmra.mxu0 %v363
        %v3166 = vpop.f32.mrf.mxu0
        %v3167 = vadd.f32 %v3054, %v3166
        %3168 = vmatmul.f32.gmra.mxu0 %v366
        %v3169 = vpop.f32.mrf.mxu0
        %v3170 = vadd.f32 %v3057, %v3169
        %3171 = vmatmul.f32.gmra.mxu0 %v369
        %v3172 = vpop.f32.mrf.mxu0
        %v3173 = vadd.f32 %v3060, %v3172
        %3174 = vmatmul.f32.gmra.mxu0 %v372
        %v3175 = vpop.f32.mrf.mxu0
        %v3176 = vadd.f32 %v3063, %v3175
        %3177 = vmatmul.f32.gmra.mxu0 %v375
        %v3178 = vpop.f32.mrf.mxu0
        %v3179 = vadd.f32 %v3066, %v3178
        %3180 = vdwg.mxu0
        %3181 = vmatpush.msra.mxu0 %v518
        %3182 = vmatpush.msra.mxu0 %v509
        %3183 = vmatpush.msra.mxu0 %v500
        %3184 = vmatpush.msra.mxu0 %v491
        %3185 = vmatpush.msra.mxu0 %v482
        %3186 = vmatpush.msra.mxu0 %v473
        %3187 = vmatpush.msra.mxu0 %v464
        %3188 = vmatpush.msra.mxu0 %v455
        %3189 = vmatpush.msra.mxu0 %v446
        %3190 = vmatpush.msra.mxu0 %v437
        %3191 = vmatpush.msra.mxu0 %v428
        %3192 = vmatpush.msra.mxu0 %v419
        %3193 = vmatpush.msra.mxu0 %v410
        %3194 = vmatpush.msra.mxu0 %v401
        %3195 = vmatpush.msra.mxu0 %v392
        %3196 = vmatpush.msra.mxu0 %v383
        %3197 = vmatmul.f32.gmra.mxu0 %v280
        %v3198 = vpop.f32.mrf.mxu0
        %v3199 = vadd.f32 0.0, %v3198
        %3200 = vmatmul.f32.gmra.mxu0 %v283
        %v3201 = vpop.f32.mrf.mxu0
        %v3202 = vadd.f32 0.0, %v3201
        %3203 = vmatmul.f32.gmra.mxu0 %v286
        %v3204 = vpop.f32.mrf.mxu0
        %v3205 = vadd.f32 0.0, %v3204
        %3206 = vmatmul.f32.gmra.mxu0 %v289
        %v3207 = vpop.f32.mrf.mxu0
        %v3208 = vadd.f32 0.0, %v3207
        %3209 = vmatmul.f32.gmra.mxu0 %v292
        %v3210 = vpop.f32.mrf.mxu0
        %v3211 = vadd.f32 0.0, %v3210
        %3212 = vmatmul.f32.gmra.mxu0 %v295
        %v3213 = vpop.f32.mrf.mxu0
        %v3214 = vadd.f32 0.0, %v3213
        %3215 = vmatmul.f32.gmra.mxu0 %v298
        %v3216 = vpop.f32.mrf.mxu0
        %v3217 = vadd.f32 0.0, %v3216
        %3218 = vmatmul.f32.gmra.mxu0 %v301
        %v3219 = vpop.f32.mrf.mxu0
        %v3220 = vadd.f32 0.0, %v3219
        %3221 = vmatmul.f32.gmra.mxu0 %v304
        %v3222 = vpop.f32.mrf.mxu0
        %v3223 = vadd.f32 0.0, %v3222
        %3224 = vmatmul.f32.gmra.mxu0 %v307
        %v3225 = vpop.f32.mrf.mxu0
        %v3226 = vadd.f32 0.0, %v3225
        %3227 = vmatmul.f32.gmra.mxu0 %v310
        %v3228 = vpop.f32.mrf.mxu0
        %v3229 = vadd.f32 0.0, %v3228
        %3230 = vmatmul.f32.gmra.mxu0 %v313
        %v3231 = vpop.f32.mrf.mxu0
        %v3232 = vadd.f32 0.0, %v3231
        %3233 = vmatmul.f32.gmra.mxu0 %v316
        %v3234 = vpop.f32.mrf.mxu0
        %v3235 = vadd.f32 0.0, %v3234
        %3236 = vmatmul.f32.gmra.mxu0 %v319
        %v3237 = vpop.f32.mrf.mxu0
        %v3238 = vadd.f32 0.0, %v3237
        %3239 = vmatmul.f32.gmra.mxu0 %v322
        %v3240 = vpop.f32.mrf.mxu0
        %v3241 = vadd.f32 0.0, %v3240
        %3242 = vmatmul.f32.gmra.mxu0 %v325
        %v3243 = vpop.f32.mrf.mxu0
        %v3244 = vadd.f32 0.0, %v3243
        %3245 = vmatmul.f32.gmra.mxu0 %v328
        %v3246 = vpop.f32.mrf.mxu0
        %v3247 = vadd.f32 0.0, %v3246
        %3248 = vmatmul.f32.gmra.mxu0 %v331
        %v3249 = vpop.f32.mrf.mxu0
        %v3250 = vadd.f32 0.0, %v3249
        %3251 = vmatmul.f32.gmra.mxu0 %v334
        %v3252 = vpop.f32.mrf.mxu0
        %v3253 = vadd.f32 0.0, %v3252
        %3254 = vmatmul.f32.gmra.mxu0 %v337
        %v3255 = vpop.f32.mrf.mxu0
        %v3256 = vadd.f32 0.0, %v3255
        %3257 = vmatmul.f32.gmra.mxu0 %v340
        %v3258 = vpop.f32.mrf.mxu0
        %v3259 = vadd.f32 0.0, %v3258
        %3260 = vmatmul.f32.gmra.mxu0 %v343
        %v3261 = vpop.f32.mrf.mxu0
        %v3262 = vadd.f32 0.0, %v3261
        %3263 = vmatmul.f32.gmra.mxu0 %v346
        %v3264 = vpop.f32.mrf.mxu0
        %v3265 = vadd.f32 0.0, %v3264
        %3266 = vmatmul.f32.gmra.mxu0 %v349
        %v3267 = vpop.f32.mrf.mxu0
        %v3268 = vadd.f32 0.0, %v3267
        %3269 = vmatmul.f32.gmra.mxu0 %v352
        %v3270 = vpop.f32.mrf.mxu0
        %v3271 = vadd.f32 0.0, %v3270
        %3272 = vmatmul.f32.gmra.mxu0 %v355
        %v3273 = vpop.f32.mrf.mxu0
        %v3274 = vadd.f32 0.0, %v3273
        %3275 = vmatmul.f32.gmra.mxu0 %v358
        %v3276 = vpop.f32.mrf.mxu0
        %v3277 = vadd.f32 0.0, %v3276
        %3278 = vmatmul.f32.gmra.mxu0 %v361
        %v3279 = vpop.f32.mrf.mxu0
        %v3280 = vadd.f32 0.0, %v3279
        %3281 = vmatmul.f32.gmra.mxu0 %v364
        %v3282 = vpop.f32.mrf.mxu0
        %v3283 = vadd.f32 0.0, %v3282
        %3284 = vmatmul.f32.gmra.mxu0 %v367
        %v3285 = vpop.f32.mrf.mxu0
        %v3286 = vadd.f32 0.0, %v3285
        %3287 = vmatmul.f32.gmra.mxu0 %v370
        %v3288 = vpop.f32.mrf.mxu0
        %v3289 = vadd.f32 0.0, %v3288
        %3290 = vmatmul.f32.gmra.mxu0 %v373
        %v3291 = vpop.f32.mrf.mxu0
        %v3292 = vadd.f32 0.0, %v3291
        %3293 = vdwg.mxu0
        %3294 = vmatpush.msra.mxu0 %v662
        %3295 = vmatpush.msra.mxu0 %v653
        %3296 = vmatpush.msra.mxu0 %v644
        %3297 = vmatpush.msra.mxu0 %v635
        %3298 = vmatpush.msra.mxu0 %v626
        %3299 = vmatpush.msra.mxu0 %v617
        %3300 = vmatpush.msra.mxu0 %v608
        %3301 = vmatpush.msra.mxu0 %v599
        %3302 = vmatpush.msra.mxu0 %v590
        %3303 = vmatpush.msra.mxu0 %v581
        %3304 = vmatpush.msra.mxu0 %v572
        %3305 = vmatpush.msra.mxu0 %v563
        %3306 = vmatpush.msra.mxu0 %v554
        %3307 = vmatpush.msra.mxu0 %v545
        %3308 = vmatpush.msra.mxu0 %v536
        %3309 = vmatpush.msra.mxu0 %v527
        %3310 = vmatmul.f32.gmra.mxu0 %v281
        %v3311 = vpop.f32.mrf.mxu0
        %v3312 = vadd.f32 %v3199, %v3311
        %3313 = vmatmul.f32.gmra.mxu0 %v284
        %v3314 = vpop.f32.mrf.mxu0
        %v3315 = vadd.f32 %v3202, %v3314
        %3316 = vmatmul.f32.gmra.mxu0 %v287
        %v3317 = vpop.f32.mrf.mxu0
        %v3318 = vadd.f32 %v3205, %v3317
        %3319 = vmatmul.f32.gmra.mxu0 %v290
        %v3320 = vpop.f32.mrf.mxu0
        %v3321 = vadd.f32 %v3208, %v3320
        %3322 = vmatmul.f32.gmra.mxu0 %v293
        %v3323 = vpop.f32.mrf.mxu0
        %v3324 = vadd.f32 %v3211, %v3323
        %3325 = vmatmul.f32.gmra.mxu0 %v296
        %v3326 = vpop.f32.mrf.mxu0
        %v3327 = vadd.f32 %v3214, %v3326
        %3328 = vmatmul.f32.gmra.mxu0 %v299
        %v3329 = vpop.f32.mrf.mxu0
        %v3330 = vadd.f32 %v3217, %v3329
        %3331 = vmatmul.f32.gmra.mxu0 %v302
        %v3332 = vpop.f32.mrf.mxu0
        %v3333 = vadd.f32 %v3220, %v3332
        %3334 = vmatmul.f32.gmra.mxu0 %v305
        %v3335 = vpop.f32.mrf.mxu0
        %v3336 = vadd.f32 %v3223, %v3335
        %3337 = vmatmul.f32.gmra.mxu0 %v308
        %v3338 = vpop.f32.mrf.mxu0
        %v3339 = vadd.f32 %v3226, %v3338
        %3340 = vmatmul.f32.gmra.mxu0 %v311
        %v3341 = vpop.f32.mrf.mxu0
        %v3342 = vadd.f32 %v3229, %v3341
        %3343 = vmatmul.f32.gmra.mxu0 %v314
        %v3344 = vpop.f32.mrf.mxu0
        %v3345 = vadd.f32 %v3232, %v3344
        %3346 = vmatmul.f32.gmra.mxu0 %v317
        %v3347 = vpop.f32.mrf.mxu0
        %v3348 = vadd.f32 %v3235, %v3347
        %3349 = vmatmul.f32.gmra.mxu0 %v320
        %v3350 = vpop.f32.mrf.mxu0
        %v3351 = vadd.f32 %v3238, %v3350
        %3352 = vmatmul.f32.gmra.mxu0 %v323
        %v3353 = vpop.f32.mrf.mxu0
        %v3354 = vadd.f32 %v3241, %v3353
        %3355 = vmatmul.f32.gmra.mxu0 %v326
        %v3356 = vpop.f32.mrf.mxu0
        %v3357 = vadd.f32 %v3244, %v3356
        %3358 = vmatmul.f32.gmra.mxu0 %v329
        %v3359 = vpop.f32.mrf.mxu0
        %v3360 = vadd.f32 %v3247, %v3359
        %3361 = vmatmul.f32.gmra.mxu0 %v332
        %v3362 = vpop.f32.mrf.mxu0
        %v3363 = vadd.f32 %v3250, %v3362
        %3364 = vmatmul.f32.gmra.mxu0 %v335
        %v3365 = vpop.f32.mrf.mxu0
        %v3366 = vadd.f32 %v3253, %v3365
        %3367 = vmatmul.f32.gmra.mxu0 %v338
        %v3368 = vpop.f32.mrf.mxu0
        %v3369 = vadd.f32 %v3256, %v3368
        %3370 = vmatmul.f32.gmra.mxu0 %v341
        %v3371 = vpop.f32.mrf.mxu0
        %v3372 = vadd.f32 %v3259, %v3371
        %3373 = vmatmul.f32.gmra.mxu0 %v344
        %v3374 = vpop.f32.mrf.mxu0
        %v3375 = vadd.f32 %v3262, %v3374
        %3376 = vmatmul.f32.gmra.mxu0 %v347
        %v3377 = vpop.f32.mrf.mxu0
        %v3378 = vadd.f32 %v3265, %v3377
        %3379 = vmatmul.f32.gmra.mxu0 %v350
        %v3380 = vpop.f32.mrf.mxu0
        %v3381 = vadd.f32 %v3268, %v3380
        %3382 = vmatmul.f32.gmra.mxu0 %v353
        %v3383 = vpop.f32.mrf.mxu0
        %v3384 = vadd.f32 %v3271, %v3383
        %3385 = vmatmul.f32.gmra.mxu0 %v356
        %v3386 = vpop.f32.mrf.mxu0
        %v3387 = vadd.f32 %v3274, %v3386
        %3388 = vmatmul.f32.gmra.mxu0 %v359
        %v3389 = vpop.f32.mrf.mxu0
        %v3390 = vadd.f32 %v3277, %v3389
        %3391 = vmatmul.f32.gmra.mxu0 %v362
        %v3392 = vpop.f32.mrf.mxu0
        %v3393 = vadd.f32 %v3280, %v3392
        %3394 = vmatmul.f32.gmra.mxu0 %v365
        %v3395 = vpop.f32.mrf.mxu0
        %v3396 = vadd.f32 %v3283, %v3395
        %3397 = vmatmul.f32.gmra.mxu0 %v368
        %v3398 = vpop.f32.mrf.mxu0
        %v3399 = vadd.f32 %v3286, %v3398
        %3400 = vmatmul.f32.gmra.mxu0 %v371
        %v3401 = vpop.f32.mrf.mxu0
        %v3402 = vadd.f32 %v3289, %v3401
        %3403 = vmatmul.f32.gmra.mxu0 %v374
        %v3404 = vpop.f32.mrf.mxu0
        %v3405 = vadd.f32 %v3292, %v3404
        %3406 = vdwg.mxu0
        %3407 = vmatpush.msra.mxu0 %v806
        %3408 = vmatpush.msra.mxu0 %v797
        %3409 = vmatpush.msra.mxu0 %v788
        %3410 = vmatpush.msra.mxu0 %v779
        %3411 = vmatpush.msra.mxu0 %v770
        %3412 = vmatpush.msra.mxu0 %v761
        %3413 = vmatpush.msra.mxu0 %v752
        %3414 = vmatpush.msra.mxu0 %v743
        %3415 = vmatpush.msra.mxu0 %v734
        %3416 = vmatpush.msra.mxu0 %v725
        %3417 = vmatpush.msra.mxu0 %v716
        %3418 = vmatpush.msra.mxu0 %v707
        %3419 = vmatpush.msra.mxu0 %v698
        %3420 = vmatpush.msra.mxu0 %v689
        %3421 = vmatpush.msra.mxu0 %v680
        %3422 = vmatpush.msra.mxu0 %v671
        %3423 = vmatmul.f32.gmra.mxu0 %v282
        %v3424 = vpop.f32.mrf.mxu0
        %v3425 = vadd.f32 %v3312, %v3424
        %3426 = vmatmul.f32.gmra.mxu0 %v285
        %v3427 = vpop.f32.mrf.mxu0
        %v3428 = vadd.f32 %v3315, %v3427
        %3429 = vmatmul.f32.gmra.mxu0 %v288
        %v3430 = vpop.f32.mrf.mxu0
        %v3431 = vadd.f32 %v3318, %v3430
        %3432 = vmatmul.f32.gmra.mxu0 %v291
        %v3433 = vpop.f32.mrf.mxu0
        %v3434 = vadd.f32 %v3321, %v3433
        %3435 = vmatmul.f32.gmra.mxu0 %v294
        %v3436 = vpop.f32.mrf.mxu0
        %v3437 = vadd.f32 %v3324, %v3436
        %3438 = vmatmul.f32.gmra.mxu0 %v297
        %v3439 = vpop.f32.mrf.mxu0
        %v3440 = vadd.f32 %v3327, %v3439
        %3441 = vmatmul.f32.gmra.mxu0 %v300
        %v3442 = vpop.f32.mrf.mxu0
        %v3443 = vadd.f32 %v3330, %v3442
        %3444 = vmatmul.f32.gmra.mxu0 %v303
        %v3445 = vpop.f32.mrf.mxu0
        %v3446 = vadd.f32 %v3333, %v3445
        %3447 = vmatmul.f32.gmra.mxu0 %v306
        %v3448 = vpop.f32.mrf.mxu0
        %v3449 = vadd.f32 %v3336, %v3448
        %3450 = vmatmul.f32.gmra.mxu0 %v309
        %v3451 = vpop.f32.mrf.mxu0
        %v3452 = vadd.f32 %v3339, %v3451
        %3453 = vmatmul.f32.gmra.mxu0 %v312
        %v3454 = vpop.f32.mrf.mxu0
        %v3455 = vadd.f32 %v3342, %v3454
        %3456 = vmatmul.f32.gmra.mxu0 %v315
        %v3457 = vpop.f32.mrf.mxu0
        %v3458 = vadd.f32 %v3345, %v3457
        %3459 = vmatmul.f32.gmra.mxu0 %v318
        %v3460 = vpop.f32.mrf.mxu0
        %v3461 = vadd.f32 %v3348, %v3460
        %3462 = vmatmul.f32.gmra.mxu0 %v321
        %v3463 = vpop.f32.mrf.mxu0
        %v3464 = vadd.f32 %v3351, %v3463
        %3465 = vmatmul.f32.gmra.mxu0 %v324
        %v3466 = vpop.f32.mrf.mxu0
        %v3467 = vadd.f32 %v3354, %v3466
        %3468 = vmatmul.f32.gmra.mxu0 %v327
        %v3469 = vpop.f32.mrf.mxu0
        %v3470 = vadd.f32 %v3357, %v3469
        %3471 = vmatmul.f32.gmra.mxu0 %v330
        %v3472 = vpop.f32.mrf.mxu0
        %v3473 = vadd.f32 %v3360, %v3472
        %3474 = vmatmul.f32.gmra.mxu0 %v333
        %v3475 = vpop.f32.mrf.mxu0
        %v3476 = vadd.f32 %v3363, %v3475
        %3477 = vmatmul.f32.gmra.mxu0 %v336
        %v3478 = vpop.f32.mrf.mxu0
        %v3479 = vadd.f32 %v3366, %v3478
        %3480 = vmatmul.f32.gmra.mxu0 %v339
        %v3481 = vpop.f32.mrf.mxu0
        %v3482 = vadd.f32 %v3369, %v3481
        %3483 = vmatmul.f32.gmra.mxu0 %v342
        %v3484 = vpop.f32.mrf.mxu0
        %v3485 = vadd.f32 %v3372, %v3484
        %3486 = vmatmul.f32.gmra.mxu0 %v345
        %v3487 = vpop.f32.mrf.mxu0
        %v3488 = vadd.f32 %v3375, %v3487
        %3489 = vmatmul.f32.gmra.mxu0 %v348
        %v3490 = vpop.f32.mrf.mxu0
        %v3491 = vadd.f32 %v3378, %v3490
        %3492 = vmatmul.f32.gmra.mxu0 %v351
        %v3493 = vpop.f32.mrf.mxu0
        %v3494 = vadd.f32 %v3381, %v3493
        %3495 = vmatmul.f32.gmra.mxu0 %v354
        %v3496 = vpop.f32.mrf.mxu0
        %v3497 = vadd.f32 %v3384, %v3496
        %3498 = vmatmul.f32.gmra.mxu0 %v357
        %v3499 = vpop.f32.mrf.mxu0
        %v3500 = vadd.f32 %v3387, %v3499
        %3501 = vmatmul.f32.gmra.mxu0 %v360
        %v3502 = vpop.f32.mrf.mxu0
        %v3503 = vadd.f32 %v3390, %v3502
        %3504 = vmatmul.f32.gmra.mxu0 %v363
        %v3505 = vpop.f32.mrf.mxu0
        %v3506 = vadd.f32 %v3393, %v3505
        %3507 = vmatmul.f32.gmra.mxu0 %v366
        %v3508 = vpop.f32.mrf.mxu0
        %v3509 = vadd.f32 %v3396, %v3508
        %3510 = vmatmul.f32.gmra.mxu0 %v369
        %v3511 = vpop.f32.mrf.mxu0
        %v3512 = vadd.f32 %v3399, %v3511
        %3513 = vmatmul.f32.gmra.mxu0 %v372
        %v3514 = vpop.f32.mrf.mxu0
        %v3515 = vadd.f32 %v3402, %v3514
        %3516 = vmatmul.f32.gmra.mxu0 %v375
        %v3517 = vpop.f32.mrf.mxu0
        %v3518 = vadd.f32 %v3405, %v3517
        %3519 = vdwg.mxu0
        %3520 = vmatpush.msra.mxu0 %v519
        %3521 = vmatpush.msra.mxu0 %v510
        %3522 = vmatpush.msra.mxu0 %v501
        %3523 = vmatpush.msra.mxu0 %v492
        %3524 = vmatpush.msra.mxu0 %v483
        %3525 = vmatpush.msra.mxu0 %v474
        %3526 = vmatpush.msra.mxu0 %v465
        %3527 = vmatpush.msra.mxu0 %v456
        %3528 = vmatpush.msra.mxu0 %v447
        %3529 = vmatpush.msra.mxu0 %v438
        %3530 = vmatpush.msra.mxu0 %v429
        %3531 = vmatpush.msra.mxu0 %v420
        %3532 = vmatpush.msra.mxu0 %v411
        %3533 = vmatpush.msra.mxu0 %v402
        %3534 = vmatpush.msra.mxu0 %v393
        %3535 = vmatpush.msra.mxu0 %v384
        %3536 = vmatmul.f32.gmra.mxu0 %v280
        %v3537 = vpop.f32.mrf.mxu0
        %v3538 = vadd.f32 0.0, %v3537
        %3539 = vmatmul.f32.gmra.mxu0 %v283
        %v3540 = vpop.f32.mrf.mxu0
        %v3541 = vadd.f32 0.0, %v3540
        %3542 = vmatmul.f32.gmra.mxu0 %v286
        %v3543 = vpop.f32.mrf.mxu0
        %v3544 = vadd.f32 0.0, %v3543
        %3545 = vmatmul.f32.gmra.mxu0 %v289
        %v3546 = vpop.f32.mrf.mxu0
        %v3547 = vadd.f32 0.0, %v3546
        %3548 = vmatmul.f32.gmra.mxu0 %v292
        %v3549 = vpop.f32.mrf.mxu0
        %v3550 = vadd.f32 0.0, %v3549
        %3551 = vmatmul.f32.gmra.mxu0 %v295
        %v3552 = vpop.f32.mrf.mxu0
        %v3553 = vadd.f32 0.0, %v3552
        %3554 = vmatmul.f32.gmra.mxu0 %v298
        %v3555 = vpop.f32.mrf.mxu0
        %v3556 = vadd.f32 0.0, %v3555
        %3557 = vmatmul.f32.gmra.mxu0 %v301
        %v3558 = vpop.f32.mrf.mxu0
        %v3559 = vadd.f32 0.0, %v3558
        %3560 = vmatmul.f32.gmra.mxu0 %v304
        %v3561 = vpop.f32.mrf.mxu0
        %v3562 = vadd.f32 0.0, %v3561
        %3563 = vmatmul.f32.gmra.mxu0 %v307
        %v3564 = vpop.f32.mrf.mxu0
        %v3565 = vadd.f32 0.0, %v3564
        %3566 = vmatmul.f32.gmra.mxu0 %v310
        %v3567 = vpop.f32.mrf.mxu0
        %v3568 = vadd.f32 0.0, %v3567
        %3569 = vmatmul.f32.gmra.mxu0 %v313
        %v3570 = vpop.f32.mrf.mxu0
        %v3571 = vadd.f32 0.0, %v3570
        %3572 = vmatmul.f32.gmra.mxu0 %v316
        %v3573 = vpop.f32.mrf.mxu0
        %v3574 = vadd.f32 0.0, %v3573
        %3575 = vmatmul.f32.gmra.mxu0 %v319
        %v3576 = vpop.f32.mrf.mxu0
        %v3577 = vadd.f32 0.0, %v3576
        %3578 = vmatmul.f32.gmra.mxu0 %v322
        %v3579 = vpop.f32.mrf.mxu0
        %v3580 = vadd.f32 0.0, %v3579
        %3581 = vmatmul.f32.gmra.mxu0 %v325
        %v3582 = vpop.f32.mrf.mxu0
        %v3583 = vadd.f32 0.0, %v3582
        %3584 = vmatmul.f32.gmra.mxu0 %v328
        %v3585 = vpop.f32.mrf.mxu0
        %v3586 = vadd.f32 0.0, %v3585
        %3587 = vmatmul.f32.gmra.mxu0 %v331
        %v3588 = vpop.f32.mrf.mxu0
        %v3589 = vadd.f32 0.0, %v3588
        %3590 = vmatmul.f32.gmra.mxu0 %v334
        %v3591 = vpop.f32.mrf.mxu0
        %v3592 = vadd.f32 0.0, %v3591
        %3593 = vmatmul.f32.gmra.mxu0 %v337
        %v3594 = vpop.f32.mrf.mxu0
        %v3595 = vadd.f32 0.0, %v3594
        %3596 = vmatmul.f32.gmra.mxu0 %v340
        %v3597 = vpop.f32.mrf.mxu0
        %v3598 = vadd.f32 0.0, %v3597
        %3599 = vmatmul.f32.gmra.mxu0 %v343
        %v3600 = vpop.f32.mrf.mxu0
        %v3601 = vadd.f32 0.0, %v3600
        %3602 = vmatmul.f32.gmra.mxu0 %v346
        %v3603 = vpop.f32.mrf.mxu0
        %v3604 = vadd.f32 0.0, %v3603
        %3605 = vmatmul.f32.gmra.mxu0 %v349
        %v3606 = vpop.f32.mrf.mxu0
        %v3607 = vadd.f32 0.0, %v3606
        %3608 = vmatmul.f32.gmra.mxu0 %v352
        %v3609 = vpop.f32.mrf.mxu0
        %v3610 = vadd.f32 0.0, %v3609
        %3611 = vmatmul.f32.gmra.mxu0 %v355
        %v3612 = vpop.f32.mrf.mxu0
        %v3613 = vadd.f32 0.0, %v3612
        %3614 = vmatmul.f32.gmra.mxu0 %v358
        %v3615 = vpop.f32.mrf.mxu0
        %v3616 = vadd.f32 0.0, %v3615
        %3617 = vmatmul.f32.gmra.mxu0 %v361
        %v3618 = vpop.f32.mrf.mxu0
        %v3619 = vadd.f32 0.0, %v3618
        %3620 = vmatmul.f32.gmra.mxu0 %v364
        %v3621 = vpop.f32.mrf.mxu0
        %v3622 = vadd.f32 0.0, %v3621
        %3623 = vmatmul.f32.gmra.mxu0 %v367
        %v3624 = vpop.f32.mrf.mxu0
        %v3625 = vadd.f32 0.0, %v3624
        %3626 = vmatmul.f32.gmra.mxu0 %v370
        %v3627 = vpop.f32.mrf.mxu0
        %v3628 = vadd.f32 0.0, %v3627
        %3629 = vmatmul.f32.gmra.mxu0 %v373
        %v3630 = vpop.f32.mrf.mxu0
        %v3631 = vadd.f32 0.0, %v3630
        %3632 = vdwg.mxu0
        %3633 = vmatpush.msra.mxu0 %v663
        %3634 = vmatpush.msra.mxu0 %v654
        %3635 = vmatpush.msra.mxu0 %v645
        %3636 = vmatpush.msra.mxu0 %v636
        %3637 = vmatpush.msra.mxu0 %v627
        %3638 = vmatpush.msra.mxu0 %v618
        %3639 = vmatpush.msra.mxu0 %v609
        %3640 = vmatpush.msra.mxu0 %v600
        %3641 = vmatpush.msra.mxu0 %v591
        %3642 = vmatpush.msra.mxu0 %v582
        %3643 = vmatpush.msra.mxu0 %v573
        %3644 = vmatpush.msra.mxu0 %v564
        %3645 = vmatpush.msra.mxu0 %v555
        %3646 = vmatpush.msra.mxu0 %v546
        %3647 = vmatpush.msra.mxu0 %v537
        %3648 = vmatpush.msra.mxu0 %v528
        %3649 = vmatmul.f32.gmra.mxu0 %v281
        %v3650 = vpop.f32.mrf.mxu0
        %v3651 = vadd.f32 %v3538, %v3650
        %3652 = vmatmul.f32.gmra.mxu0 %v284
        %v3653 = vpop.f32.mrf.mxu0
        %v3654 = vadd.f32 %v3541, %v3653
        %3655 = vmatmul.f32.gmra.mxu0 %v287
        %v3656 = vpop.f32.mrf.mxu0
        %v3657 = vadd.f32 %v3544, %v3656
        %3658 = vmatmul.f32.gmra.mxu0 %v290
        %v3659 = vpop.f32.mrf.mxu0
        %v3660 = vadd.f32 %v3547, %v3659
        %3661 = vmatmul.f32.gmra.mxu0 %v293
        %v3662 = vpop.f32.mrf.mxu0
        %v3663 = vadd.f32 %v3550, %v3662
        %3664 = vmatmul.f32.gmra.mxu0 %v296
        %v3665 = vpop.f32.mrf.mxu0
        %v3666 = vadd.f32 %v3553, %v3665
        %3667 = vmatmul.f32.gmra.mxu0 %v299
        %v3668 = vpop.f32.mrf.mxu0
        %v3669 = vadd.f32 %v3556, %v3668
        %3670 = vmatmul.f32.gmra.mxu0 %v302
        %v3671 = vpop.f32.mrf.mxu0
        %v3672 = vadd.f32 %v3559, %v3671
        %3673 = vmatmul.f32.gmra.mxu0 %v305
        %v3674 = vpop.f32.mrf.mxu0
        %v3675 = vadd.f32 %v3562, %v3674
        %3676 = vmatmul.f32.gmra.mxu0 %v308
        %v3677 = vpop.f32.mrf.mxu0
        %v3678 = vadd.f32 %v3565, %v3677
        %3679 = vmatmul.f32.gmra.mxu0 %v311
        %v3680 = vpop.f32.mrf.mxu0
        %v3681 = vadd.f32 %v3568, %v3680
        %3682 = vmatmul.f32.gmra.mxu0 %v314
        %v3683 = vpop.f32.mrf.mxu0
        %v3684 = vadd.f32 %v3571, %v3683
        %3685 = vmatmul.f32.gmra.mxu0 %v317
        %v3686 = vpop.f32.mrf.mxu0
        %v3687 = vadd.f32 %v3574, %v3686
        %3688 = vmatmul.f32.gmra.mxu0 %v320
        %v3689 = vpop.f32.mrf.mxu0
        %v3690 = vadd.f32 %v3577, %v3689
        %3691 = vmatmul.f32.gmra.mxu0 %v323
        %v3692 = vpop.f32.mrf.mxu0
        %v3693 = vadd.f32 %v3580, %v3692
        %3694 = vmatmul.f32.gmra.mxu0 %v326
        %v3695 = vpop.f32.mrf.mxu0
        %v3696 = vadd.f32 %v3583, %v3695
        %3697 = vmatmul.f32.gmra.mxu0 %v329
        %v3698 = vpop.f32.mrf.mxu0
        %v3699 = vadd.f32 %v3586, %v3698
        %3700 = vmatmul.f32.gmra.mxu0 %v332
        %v3701 = vpop.f32.mrf.mxu0
        %v3702 = vadd.f32 %v3589, %v3701
        %3703 = vmatmul.f32.gmra.mxu0 %v335
        %v3704 = vpop.f32.mrf.mxu0
        %v3705 = vadd.f32 %v3592, %v3704
        %3706 = vmatmul.f32.gmra.mxu0 %v338
        %v3707 = vpop.f32.mrf.mxu0
        %v3708 = vadd.f32 %v3595, %v3707
        %3709 = vmatmul.f32.gmra.mxu0 %v341
        %v3710 = vpop.f32.mrf.mxu0
        %v3711 = vadd.f32 %v3598, %v3710
        %3712 = vmatmul.f32.gmra.mxu0 %v344
        %v3713 = vpop.f32.mrf.mxu0
        %v3714 = vadd.f32 %v3601, %v3713
        %3715 = vmatmul.f32.gmra.mxu0 %v347
        %v3716 = vpop.f32.mrf.mxu0
        %v3717 = vadd.f32 %v3604, %v3716
        %3718 = vmatmul.f32.gmra.mxu0 %v350
        %v3719 = vpop.f32.mrf.mxu0
        %v3720 = vadd.f32 %v3607, %v3719
        %3721 = vmatmul.f32.gmra.mxu0 %v353
        %v3722 = vpop.f32.mrf.mxu0
        %v3723 = vadd.f32 %v3610, %v3722
        %3724 = vmatmul.f32.gmra.mxu0 %v356
        %v3725 = vpop.f32.mrf.mxu0
        %v3726 = vadd.f32 %v3613, %v3725
        %3727 = vmatmul.f32.gmra.mxu0 %v359
        %v3728 = vpop.f32.mrf.mxu0
        %v3729 = vadd.f32 %v3616, %v3728
        %3730 = vmatmul.f32.gmra.mxu0 %v362
        %v3731 = vpop.f32.mrf.mxu0
        %v3732 = vadd.f32 %v3619, %v3731
        %3733 = vmatmul.f32.gmra.mxu0 %v365
        %v3734 = vpop.f32.mrf.mxu0
        %v3735 = vadd.f32 %v3622, %v3734
        %3736 = vmatmul.f32.gmra.mxu0 %v368
        %v3737 = vpop.f32.mrf.mxu0
        %v3738 = vadd.f32 %v3625, %v3737
        %3739 = vmatmul.f32.gmra.mxu0 %v371
        %v3740 = vpop.f32.mrf.mxu0
        %v3741 = vadd.f32 %v3628, %v3740
        %3742 = vmatmul.f32.gmra.mxu0 %v374
        %v3743 = vpop.f32.mrf.mxu0
        %v3744 = vadd.f32 %v3631, %v3743
        %3745 = vdwg.mxu0
        %3746 = vmatpush.msra.mxu0 %v807
        %3747 = vmatpush.msra.mxu0 %v798
        %3748 = vmatpush.msra.mxu0 %v789
        %3749 = vmatpush.msra.mxu0 %v780
        %3750 = vmatpush.msra.mxu0 %v771
        %3751 = vmatpush.msra.mxu0 %v762
        %3752 = vmatpush.msra.mxu0 %v753
        %3753 = vmatpush.msra.mxu0 %v744
        %3754 = vmatpush.msra.mxu0 %v735
        %3755 = vmatpush.msra.mxu0 %v726
        %3756 = vmatpush.msra.mxu0 %v717
        %3757 = vmatpush.msra.mxu0 %v708
        %3758 = vmatpush.msra.mxu0 %v699
        %3759 = vmatpush.msra.mxu0 %v690
        %3760 = vmatpush.msra.mxu0 %v681
        %3761 = vmatpush.msra.mxu0 %v672
        %3762 = vmatmul.f32.gmra.mxu0 %v282
        %v3763 = vpop.f32.mrf.mxu0
        %v3764 = vadd.f32 %v3651, %v3763
        %3765 = vmatmul.f32.gmra.mxu0 %v285
        %v3766 = vpop.f32.mrf.mxu0
        %v3767 = vadd.f32 %v3654, %v3766
        %3768 = vmatmul.f32.gmra.mxu0 %v288
        %v3769 = vpop.f32.mrf.mxu0
        %v3770 = vadd.f32 %v3657, %v3769
        %3771 = vmatmul.f32.gmra.mxu0 %v291
        %v3772 = vpop.f32.mrf.mxu0
        %v3773 = vadd.f32 %v3660, %v3772
        %3774 = vmatmul.f32.gmra.mxu0 %v294
        %v3775 = vpop.f32.mrf.mxu0
        %v3776 = vadd.f32 %v3663, %v3775
        %3777 = vmatmul.f32.gmra.mxu0 %v297
        %v3778 = vpop.f32.mrf.mxu0
        %v3779 = vadd.f32 %v3666, %v3778
        %3780 = vmatmul.f32.gmra.mxu0 %v300
        %v3781 = vpop.f32.mrf.mxu0
        %v3782 = vadd.f32 %v3669, %v3781
        %3783 = vmatmul.f32.gmra.mxu0 %v303
        %v3784 = vpop.f32.mrf.mxu0
        %v3785 = vadd.f32 %v3672, %v3784
        %3786 = vmatmul.f32.gmra.mxu0 %v306
        %v3787 = vpop.f32.mrf.mxu0
        %v3788 = vadd.f32 %v3675, %v3787
        %3789 = vmatmul.f32.gmra.mxu0 %v309
        %v3790 = vpop.f32.mrf.mxu0
        %v3791 = vadd.f32 %v3678, %v3790
        %3792 = vmatmul.f32.gmra.mxu0 %v312
        %v3793 = vpop.f32.mrf.mxu0
        %v3794 = vadd.f32 %v3681, %v3793
        %3795 = vmatmul.f32.gmra.mxu0 %v315
        %v3796 = vpop.f32.mrf.mxu0
        %v3797 = vadd.f32 %v3684, %v3796
        %3798 = vmatmul.f32.gmra.mxu0 %v318
        %v3799 = vpop.f32.mrf.mxu0
        %v3800 = vadd.f32 %v3687, %v3799
        %3801 = vmatmul.f32.gmra.mxu0 %v321
        %v3802 = vpop.f32.mrf.mxu0
        %v3803 = vadd.f32 %v3690, %v3802
        %3804 = vmatmul.f32.gmra.mxu0 %v324
        %v3805 = vpop.f32.mrf.mxu0
        %v3806 = vadd.f32 %v3693, %v3805
        %3807 = vmatmul.f32.gmra.mxu0 %v327
        %v3808 = vpop.f32.mrf.mxu0
        %v3809 = vadd.f32 %v3696, %v3808
        %3810 = vmatmul.f32.gmra.mxu0 %v330
        %v3811 = vpop.f32.mrf.mxu0
        %v3812 = vadd.f32 %v3699, %v3811
        %3813 = vmatmul.f32.gmra.mxu0 %v333
        %v3814 = vpop.f32.mrf.mxu0
        %v3815 = vadd.f32 %v3702, %v3814
        %3816 = vmatmul.f32.gmra.mxu0 %v336
        %v3817 = vpop.f32.mrf.mxu0
        %v3818 = vadd.f32 %v3705, %v3817
        %3819 = vmatmul.f32.gmra.mxu0 %v339
        %v3820 = vpop.f32.mrf.mxu0
        %v3821 = vadd.f32 %v3708, %v3820
        %3822 = vmatmul.f32.gmra.mxu0 %v342
        %v3823 = vpop.f32.mrf.mxu0
        %v3824 = vadd.f32 %v3711, %v3823
        %3825 = vmatmul.f32.gmra.mxu0 %v345
        %v3826 = vpop.f32.mrf.mxu0
        %v3827 = vadd.f32 %v3714, %v3826
        %3828 = vmatmul.f32.gmra.mxu0 %v348
        %v3829 = vpop.f32.mrf.mxu0
        %v3830 = vadd.f32 %v3717, %v3829
        %3831 = vmatmul.f32.gmra.mxu0 %v351
        %v3832 = vpop.f32.mrf.mxu0
        %v3833 = vadd.f32 %v3720, %v3832
        %3834 = vmatmul.f32.gmra.mxu0 %v354
        %v3835 = vpop.f32.mrf.mxu0
        %v3836 = vadd.f32 %v3723, %v3835
        %3837 = vmatmul.f32.gmra.mxu0 %v357
        %v3838 = vpop.f32.mrf.mxu0
        %v3839 = vadd.f32 %v3726, %v3838
        %3840 = vmatmul.f32.gmra.mxu0 %v360
        %v3841 = vpop.f32.mrf.mxu0
        %v3842 = vadd.f32 %v3729, %v3841
        %3843 = vmatmul.f32.gmra.mxu0 %v363
        %v3844 = vpop.f32.mrf.mxu0
        %v3845 = vadd.f32 %v3732, %v3844
        %3846 = vmatmul.f32.gmra.mxu0 %v366
        %v3847 = vpop.f32.mrf.mxu0
        %v3848 = vadd.f32 %v3735, %v3847
        %3849 = vmatmul.f32.gmra.mxu0 %v369
        %v3850 = vpop.f32.mrf.mxu0
        %v3851 = vadd.f32 %v3738, %v3850
        %3852 = vmatmul.f32.gmra.mxu0 %v372
        %v3853 = vpop.f32.mrf.mxu0
        %v3854 = vadd.f32 %v3741, %v3853
        %3855 = vmatmul.f32.gmra.mxu0 %v375
        %v3856 = vpop.f32.mrf.mxu0
        %v3857 = vadd.f32 %v3744, %v3856
        %3858 = vdwg.mxu0
        %3859 = vst [vmem:[%s261] sm:$0xff] %v1052
        %3860 = vst [vmem:[%s261 + $0x8] sm:$0xff] %v1391
        %3861 = vst [vmem:[%s261 + $0x10] sm:$0xff] %v1730
        %3862 = vst [vmem:[%s261 + $0x18] sm:$0xff] %v1055
        %3863 = vst [vmem:[%s261 + $0x20] sm:$0xff] %v1394
        %3864 = vst [vmem:[%s261 + $0x28] sm:$0xff] %v1733
        %3865 = vst [vmem:[%s261 + $0x30] sm:$0xff] %v1058
        %3866 = vst [vmem:[%s261 + $0x38] sm:$0xff] %v1397
        %3867 = vst [vmem:[%s261 + $0x40] sm:$0xff] %v1736
        %3868 = vst [vmem:[%s261 + $0x48] sm:$0xff] %v1061
        %3869 = vst [vmem:[%s261 + $0x50] sm:$0xff] %v1400
        %3870 = vst [vmem:[%s261 + $0x58] sm:$0xff] %v1739
        %3871 = vst [vmem:[%s261 + $0x60] sm:$0xff] %v1064
        %3872 = vst [vmem:[%s261 + $0x68] sm:$0xff] %v1403
        %3873 = vst [vmem:[%s261 + $0x70] sm:$0xff] %v1742
        %3874 = vst [vmem:[%s261 + $0x78] sm:$0xff] %v1067
        %3875 = vst [vmem:[%s261 + $0x80] sm:$0xff] %v1406
        %3876 = vst [vmem:[%s261 + $0x88] sm:$0xff] %v1745
        %3877 = vst [vmem:[%s261 + $0x90] sm:$0xff] %v1070
        %3878 = vst [vmem:[%s261 + $0x98] sm:$0xff] %v1409
        %3879 = vst [vmem:[%s261 + $0xa0] sm:$0xff] %v1748
        %3880 = vst [vmem:[%s261 + $0xa8] sm:$0xff] %v1073
        %3881 = vst [vmem:[%s261 + $0xb0] sm:$0xff] %v1412
        %3882 = vst [vmem:[%s261 + $0xb8] sm:$0xff] %v1751
        %3883 = vst [vmem:[%s261 + $0xc0] sm:$0xff] %v1076
        %3884 = vst [vmem:[%s261 + $0xc8] sm:$0xff] %v1415
        %3885 = vst [vmem:[%s261 + $0xd0] sm:$0xff] %v1754
        %3886 = vst [vmem:[%s261 + $0xd8] sm:$0xff] %v1079
        %3887 = vst [vmem:[%s261 + $0xe0] sm:$0xff] %v1418
        %3888 = vst [vmem:[%s261 + $0xe8] sm:$0xff] %v1757
        %3889 = vst [vmem:[%s261 + $0xf0] sm:$0xff] %v1082
        %3890 = vst [vmem:[%s261 + $0xf8] sm:$0xff] %v1421
        %3891 = vst [vmem:[%s261 + $0x100] sm:$0xff] %v1760
        %3892 = vst [vmem:[%s261 + $0x108] sm:$0xff] %v1085
        %3893 = vst [vmem:[%s261 + $0x110] sm:$0xff] %v1424
        %3894 = vst [vmem:[%s261 + $0x118] sm:$0xff] %v1763
        %3895 = vst [vmem:[%s261 + $0x120] sm:$0xff] %v1088
        %3896 = vst [vmem:[%s261 + $0x128] sm:$0xff] %v1427
        %3897 = vst [vmem:[%s261 + $0x130] sm:$0xff] %v1766
        %3898 = vst [vmem:[%s261 + $0x138] sm:$0xff] %v1091
        %3899 = vst [vmem:[%s261 + $0x140] sm:$0xff] %v1430
        %3900 = vst [vmem:[%s261 + $0x148] sm:$0xff] %v1769
        %3901 = vst [vmem:[%s261 + $0x150] sm:$0xff] %v1094
        %3902 = vst [vmem:[%s261 + $0x158] sm:$0xff] %v1433
        %3903 = vst [vmem:[%s261 + $0x160] sm:$0xff] %v1772
        %3904 = vst [vmem:[%s261 + $0x168] sm:$0xff] %v1097
        %3905 = vst [vmem:[%s261 + $0x170] sm:$0xff] %v1436
        %3906 = vst [vmem:[%s261 + $0x178] sm:$0xff] %v1775
        %3907 = vst [vmem:[%s261 + $0x180] sm:$0xff] %v1100
        %3908 = vst [vmem:[%s261 + $0x188] sm:$0xff] %v1439
        %3909 = vst [vmem:[%s261 + $0x190] sm:$0xff] %v1778
        %3910 = vst [vmem:[%s261 + $0x198] sm:$0xff] %v1103
        %3911 = vst [vmem:[%s261 + $0x1a0] sm:$0xff] %v1442
        %3912 = vst [vmem:[%s261 + $0x1a8] sm:$0xff] %v1781
        %3913 = vst [vmem:[%s261 + $0x1b0] sm:$0xff] %v1106
        %3914 = vst [vmem:[%s261 + $0x1b8] sm:$0xff] %v1445
        %3915 = vst [vmem:[%s261 + $0x1c0] sm:$0xff] %v1784
        %3916 = vst [vmem:[%s261 + $0x1c8] sm:$0xff] %v1109
        %3917 = vst [vmem:[%s261 + $0x1d0] sm:$0xff] %v1448
        %3918 = vst [vmem:[%s261 + $0x1d8] sm:$0xff] %v1787
        %3919 = vst [vmem:[%s261 + $0x1e0] sm:$0xff] %v1112
        %3920 = vst [vmem:[%s261 + $0x1e8] sm:$0xff] %v1451
        %3921 = vst [vmem:[%s261 + $0x1f0] sm:$0xff] %v1790
        %3922 = vst [vmem:[%s261 + $0x1f8] sm:$0xff] %v1115
        %3923 = vst [vmem:[%s261 + $0x200] sm:$0xff] %v1454
        %3924 = vst [vmem:[%s261 + $0x208] sm:$0xff] %v1793
        %3925 = vst [vmem:[%s261 + $0x210] sm:$0xff] %v1118
        %3926 = vst [vmem:[%s261 + $0x218] sm:$0xff] %v1457
        %3927 = vst [vmem:[%s261 + $0x220] sm:$0xff] %v1796
        %3928 = vst [vmem:[%s261 + $0x228] sm:$0xff] %v1121
        %3929 = vst [vmem:[%s261 + $0x230] sm:$0xff] %v1460
        %3930 = vst [vmem:[%s261 + $0x238] sm:$0xff] %v1799
        %3931 = vst [vmem:[%s261 + $0x240] sm:$0xff] %v1124
        %3932 = vst [vmem:[%s261 + $0x248] sm:$0xff] %v1463
        %3933 = vst [vmem:[%s261 + $0x250] sm:$0xff] %v1802
        %3934 = vst [vmem:[%s261 + $0x258] sm:$0xff] %v1127
        %3935 = vst [vmem:[%s261 + $0x260] sm:$0xff] %v1466
        %3936 = vst [vmem:[%s261 + $0x268] sm:$0xff] %v1805
        %3937 = vst [vmem:[%s261 + $0x270] sm:$0xff] %v1130
        %3938 = vst [vmem:[%s261 + $0x278] sm:$0xff] %v1469
        %3939 = vst [vmem:[%s261 + $0x280] sm:$0xff] %v1808
        %3940 = vst [vmem:[%s261 + $0x288] sm:$0xff] %v1133
        %3941 = vst [vmem:[%s261 + $0x290] sm:$0xff] %v1472
        %3942 = vst [vmem:[%s261 + $0x298] sm:$0xff] %v1811
        %3943 = vst [vmem:[%s261 + $0x2a0] sm:$0xff] %v1136
        %3944 = vst [vmem:[%s261 + $0x2a8] sm:$0xff] %v1475
        %3945 = vst [vmem:[%s261 + $0x2b0] sm:$0xff] %v1814
        %3946 = vst [vmem:[%s261 + $0x2b8] sm:$0xff] %v1139
        %3947 = vst [vmem:[%s261 + $0x2c0] sm:$0xff] %v1478
        %3948 = vst [vmem:[%s261 + $0x2c8] sm:$0xff] %v1817
        %3949 = vst [vmem:[%s261 + $0x2d0] sm:$0xff] %v1142
        %3950 = vst [vmem:[%s261 + $0x2d8] sm:$0xff] %v1481
        %3951 = vst [vmem:[%s261 + $0x2e0] sm:$0xff] %v1820
        %3952 = vst [vmem:[%s261 + $0x2e8] sm:$0xff] %v1145
        %3953 = vst [vmem:[%s261 + $0x2f0] sm:$0xff] %v1484
        %3954 = vst [vmem:[%s261 + $0x2f8] sm:$0xff] %v1823
        %3955 = vst [vmem:[%s268] sm:$0xff] %v2069
        %3956 = vst [vmem:[%s268 + $0x8] sm:$0xff] %v2408
        %3957 = vst [vmem:[%s268 + $0x10] sm:$0xff] %v2747
        %3958 = vst [vmem:[%s268 + $0x18] sm:$0xff] %v2072
        %3959 = vst [vmem:[%s268 + $0x20] sm:$0xff] %v2411
        %3960 = vst [vmem:[%s268 + $0x28] sm:$0xff] %v2750
        %3961 = vst [vmem:[%s268 + $0x30] sm:$0xff] %v2075
        %3962 = vst [vmem:[%s268 + $0x38] sm:$0xff] %v2414
        %3963 = vst [vmem:[%s268 + $0x40] sm:$0xff] %v2753
        %3964 = vst [vmem:[%s268 + $0x48] sm:$0xff] %v2078
        %3965 = vst [vmem:[%s268 + $0x50] sm:$0xff] %v2417
        %3966 = vst [vmem:[%s268 + $0x58] sm:$0xff] %v2756
        %3967 = vst [vmem:[%s268 + $0x60] sm:$0xff] %v2081
        %3968 = vst [vmem:[%s268 + $0x68] sm:$0xff] %v2420
        %3969 = vst [vmem:[%s268 + $0x70] sm:$0xff] %v2759
        %3970 = vst [vmem:[%s268 + $0x78] sm:$0xff] %v2084
        %3971 = vst [vmem:[%s268 + $0x80] sm:$0xff] %v2423
        %3972 = vst [vmem:[%s268 + $0x88] sm:$0xff] %v2762
        %3973 = vst [vmem:[%s268 + $0x90] sm:$0xff] %v2087
        %3974 = vst [vmem:[%s268 + $0x98] sm:$0xff] %v2426
        %3975 = vst [vmem:[%s268 + $0xa0] sm:$0xff] %v2765
        %3976 = vst [vmem:[%s268 + $0xa8] sm:$0xff] %v2090
        %3977 = vst [vmem:[%s268 + $0xb0] sm:$0xff] %v2429
        %3978 = vst [vmem:[%s268 + $0xb8] sm:$0xff] %v2768
        %3979 = vst [vmem:[%s268 + $0xc0] sm:$0xff] %v2093
        %3980 = vst [vmem:[%s268 + $0xc8] sm:$0xff] %v2432
        %3981 = vst [vmem:[%s268 + $0xd0] sm:$0xff] %v2771
        %3982 = vst [vmem:[%s268 + $0xd8] sm:$0xff] %v2096
        %3983 = vst [vmem:[%s268 + $0xe0] sm:$0xff] %v2435
        %3984 = vst [vmem:[%s268 + $0xe8] sm:$0xff] %v2774
        %3985 = vst [vmem:[%s268 + $0xf0] sm:$0xff] %v2099
        %3986 = vst [vmem:[%s268 + $0xf8] sm:$0xff] %v2438
        %3987 = vst [vmem:[%s268 + $0x100] sm:$0xff] %v2777
        %3988 = vst [vmem:[%s268 + $0x108] sm:$0xff] %v2102
        %3989 = vst [vmem:[%s268 + $0x110] sm:$0xff] %v2441
        %3990 = vst [vmem:[%s268 + $0x118] sm:$0xff] %v2780
        %3991 = vst [vmem:[%s268 + $0x120] sm:$0xff] %v2105
        %3992 = vst [vmem:[%s268 + $0x128] sm:$0xff] %v2444
        %3993 = vst [vmem:[%s268 + $0x130] sm:$0xff] %v2783
        %3994 = vst [vmem:[%s268 + $0x138] sm:$0xff] %v2108
        %3995 = vst [vmem:[%s268 + $0x140] sm:$0xff] %v2447
        %3996 = vst [vmem:[%s268 + $0x148] sm:$0xff] %v2786
        %3997 = vst [vmem:[%s268 + $0x150] sm:$0xff] %v2111
        %3998 = vst [vmem:[%s268 + $0x158] sm:$0xff] %v2450
        %3999 = vst [vmem:[%s268 + $0x160] sm:$0xff] %v2789
        %4000 = vst [vmem:[%s268 + $0x168] sm:$0xff] %v2114
        %4001 = vst [vmem:[%s268 + $0x170] sm:$0xff] %v2453
        %4002 = vst [vmem:[%s268 + $0x178] sm:$0xff] %v2792
        %4003 = vst [vmem:[%s268 + $0x180] sm:$0xff] %v2117
        %4004 = vst [vmem:[%s268 + $0x188] sm:$0xff] %v2456
        %4005 = vst [vmem:[%s268 + $0x190] sm:$0xff] %v2795
        %4006 = vst [vmem:[%s268 + $0x198] sm:$0xff] %v2120
        %4007 = vst [vmem:[%s268 + $0x1a0] sm:$0xff] %v2459
        %4008 = vst [vmem:[%s268 + $0x1a8] sm:$0xff] %v2798
        %4009 = vst [vmem:[%s268 + $0x1b0] sm:$0xff] %v2123
        %4010 = vst [vmem:[%s268 + $0x1b8] sm:$0xff] %v2462
        %4011 = vst [vmem:[%s268 + $0x1c0] sm:$0xff] %v2801
        %4012 = vst [vmem:[%s268 + $0x1c8] sm:$0xff] %v2126
        %4013 = vst [vmem:[%s268 + $0x1d0] sm:$0xff] %v2465
        %4014 = vst [vmem:[%s268 + $0x1d8] sm:$0xff] %v2804
        %4015 = vst [vmem:[%s268 + $0x1e0] sm:$0xff] %v2129
        %4016 = vst [vmem:[%s268 + $0x1e8] sm:$0xff] %v2468
        %4017 = vst [vmem:[%s268 + $0x1f0] sm:$0xff] %v2807
        %4018 = vst [vmem:[%s268 + $0x1f8] sm:$0xff] %v2132
        %4019 = vst [vmem:[%s268 + $0x200] sm:$0xff] %v2471
        %4020 = vst [vmem:[%s268 + $0x208] sm:$0xff] %v2810
        %4021 = vst [vmem:[%s268 + $0x210] sm:$0xff] %v2135
        %4022 = vst [vmem:[%s268 + $0x218] sm:$0xff] %v2474
        %4023 = vst [vmem:[%s268 + $0x220] sm:$0xff] %v2813
        %4024 = vst [vmem:[%s268 + $0x228] sm:$0xff] %v2138
        %4025 = vst [vmem:[%s268 + $0x230] sm:$0xff] %v2477
        %4026 = vst [vmem:[%s268 + $0x238] sm:$0xff] %v2816
        %4027 = vst [vmem:[%s268 + $0x240] sm:$0xff] %v2141
        %4028 = vst [vmem:[%s268 + $0x248] sm:$0xff] %v2480
        %4029 = vst [vmem:[%s268 + $0x250] sm:$0xff] %v2819
        %4030 = vst [vmem:[%s268 + $0x258] sm:$0xff] %v2144
        %4031 = vst [vmem:[%s268 + $0x260] sm:$0xff] %v2483
        %4032 = vst [vmem:[%s268 + $0x268] sm:$0xff] %v2822
        %4033 = vst [vmem:[%s268 + $0x270] sm:$0xff] %v2147
        %4034 = vst [vmem:[%s268 + $0x278] sm:$0xff] %v2486
        %4035 = vst [vmem:[%s268 + $0x280] sm:$0xff] %v2825
        %4036 = vst [vmem:[%s268 + $0x288] sm:$0xff] %v2150
        %4037 = vst [vmem:[%s268 + $0x290] sm:$0xff] %v2489
        %4038 = vst [vmem:[%s268 + $0x298] sm:$0xff] %v2828
        %4039 = vst [vmem:[%s268 + $0x2a0] sm:$0xff] %v2153
        %4040 = vst [vmem:[%s268 + $0x2a8] sm:$0xff] %v2492
        %4041 = vst [vmem:[%s268 + $0x2b0] sm:$0xff] %v2831
        %4042 = vst [vmem:[%s268 + $0x2b8] sm:$0xff] %v2156
        %4043 = vst [vmem:[%s268 + $0x2c0] sm:$0xff] %v2495
        %4044 = vst [vmem:[%s268 + $0x2c8] sm:$0xff] %v2834
        %4045 = vst [vmem:[%s268 + $0x2d0] sm:$0xff] %v2159
        %4046 = vst [vmem:[%s268 + $0x2d8] sm:$0xff] %v2498
        %4047 = vst [vmem:[%s268 + $0x2e0] sm:$0xff] %v2837
        %4048 = vst [vmem:[%s268 + $0x2e8] sm:$0xff] %v2162
        %4049 = vst [vmem:[%s268 + $0x2f0] sm:$0xff] %v2501
        %4050 = vst [vmem:[%s268 + $0x2f8] sm:$0xff] %v2840
        %4051 = vst [vmem:[%s275] sm:$0xff] %v3086
        %4052 = vst [vmem:[%s275 + $0x8] sm:$0xff] %v3425
        %4053 = vst [vmem:[%s275 + $0x10] sm:$0xff] %v3764
        %4054 = vst [vmem:[%s275 + $0x18] sm:$0xff] %v3089
        %4055 = vst [vmem:[%s275 + $0x20] sm:$0xff] %v3428
        %4056 = vst [vmem:[%s275 + $0x28] sm:$0xff] %v3767
        %4057 = vst [vmem:[%s275 + $0x30] sm:$0xff] %v3092
        %4058 = vst [vmem:[%s275 + $0x38] sm:$0xff] %v3431
        %4059 = vst [vmem:[%s275 + $0x40] sm:$0xff] %v3770
        %4060 = vst [vmem:[%s275 + $0x48] sm:$0xff] %v3095
        %4061 = vst [vmem:[%s275 + $0x50] sm:$0xff] %v3434
        %4062 = vst [vmem:[%s275 + $0x58] sm:$0xff] %v3773
        %4063 = vst [vmem:[%s275 + $0x60] sm:$0xff] %v3098
        %4064 = vst [vmem:[%s275 + $0x68] sm:$0xff] %v3437
        %4065 = vst [vmem:[%s275 + $0x70] sm:$0xff] %v3776
        %4066 = vst [vmem:[%s275 + $0x78] sm:$0xff] %v3101
        %4067 = vst [vmem:[%s275 + $0x80] sm:$0xff] %v3440
        %4068 = vst [vmem:[%s275 + $0x88] sm:$0xff] %v3779
        %4069 = vst [vmem:[%s275 + $0x90] sm:$0xff] %v3104
        %4070 = vst [vmem:[%s275 + $0x98] sm:$0xff] %v3443
        %4071 = vst [vmem:[%s275 + $0xa0] sm:$0xff] %v3782
        %4072 = vst [vmem:[%s275 + $0xa8] sm:$0xff] %v3107
        %4073 = vst [vmem:[%s275 + $0xb0] sm:$0xff] %v3446
        %4074 = vst [vmem:[%s275 + $0xb8] sm:$0xff] %v3785
        %4075 = vst [vmem:[%s275 + $0xc0] sm:$0xff] %v3110
        %4076 = vst [vmem:[%s275 + $0xc8] sm:$0xff] %v3449
        %4077 = vst [vmem:[%s275 + $0xd0] sm:$0xff] %v3788
        %4078 = vst [vmem:[%s275 + $0xd8] sm:$0xff] %v3113
        %4079 = vst [vmem:[%s275 + $0xe0] sm:$0xff] %v3452
        %4080 = vst [vmem:[%s275 + $0xe8] sm:$0xff] %v3791
        %4081 = vst [vmem:[%s275 + $0xf0] sm:$0xff] %v3116
        %4082 = vst [vmem:[%s275 + $0xf8] sm:$0xff] %v3455
        %4083 = vst [vmem:[%s275 + $0x100] sm:$0xff] %v3794
        %4084 = vst [vmem:[%s275 + $0x108] sm:$0xff] %v3119
        %4085 = vst [vmem:[%s275 + $0x110] sm:$0xff] %v3458
        %4086 = vst [vmem:[%s275 + $0x118] sm:$0xff] %v3797
        %4087 = vst [vmem:[%s275 + $0x120] sm:$0xff] %v3122
        %4088 = vst [vmem:[%s275 + $0x128] sm:$0xff] %v3461
        %4089 = vst [vmem:[%s275 + $0x130] sm:$0xff] %v3800
        %4090 = vst [vmem:[%s275 + $0x138] sm:$0xff] %v3125
        %4091 = vst [vmem:[%s275 + $0x140] sm:$0xff] %v3464
        %4092 = vst [vmem:[%s275 + $0x148] sm:$0xff] %v3803
        %4093 = vst [vmem:[%s275 + $0x150] sm:$0xff] %v3128
        %4094 = vst [vmem:[%s275 + $0x158] sm:$0xff] %v3467
        %4095 = vst [vmem:[%s275 + $0x160] sm:$0xff] %v3806
        %4096 = vst [vmem:[%s275 + $0x168] sm:$0xff] %v3131
        %4097 = vst [vmem:[%s275 + $0x170] sm:$0xff] %v3470
        %4098 = vst [vmem:[%s275 + $0x178] sm:$0xff] %v3809
        %4099 = vst [vmem:[%s275 + $0x180] sm:$0xff] %v3134
        %4100 = vst [vmem:[%s275 + $0x188] sm:$0xff] %v3473
        %4101 = vst [vmem:[%s275 + $0x190] sm:$0xff] %v3812
        %4102 = vst [vmem:[%s275 + $0x198] sm:$0xff] %v3137
        %4103 = vst [vmem:[%s275 + $0x1a0] sm:$0xff] %v3476
        %4104 = vst [vmem:[%s275 + $0x1a8] sm:$0xff] %v3815
        %4105 = vst [vmem:[%s275 + $0x1b0] sm:$0xff] %v3140
        %4106 = vst [vmem:[%s275 + $0x1b8] sm:$0xff] %v3479
        %4107 = vst [vmem:[%s275 + $0x1c0] sm:$0xff] %v3818
        %4108 = vst [vmem:[%s275 + $0x1c8] sm:$0xff] %v3143
        %4109 = vst [vmem:[%s275 + $0x1d0] sm:$0xff] %v3482
        %4110 = vst [vmem:[%s275 + $0x1d8] sm:$0xff] %v3821
        %4111 = vst [vmem:[%s275 + $0x1e0] sm:$0xff] %v3146
        %4112 = vst [vmem:[%s275 + $0x1e8] sm:$0xff] %v3485
        %4113 = vst [vmem:[%s275 + $0x1f0] sm:$0xff] %v3824
        %4114 = vst [vmem:[%s275 + $0x1f8] sm:$0xff] %v3149
        %4115 = vst [vmem:[%s275 + $0x200] sm:$0xff] %v3488
        %4116 = vst [vmem:[%s275 + $0x208] sm:$0xff] %v3827
        %4117 = vst [vmem:[%s275 + $0x210] sm:$0xff] %v3152
        %4118 = vst [vmem:[%s275 + $0x218] sm:$0xff] %v3491
        %4119 = vst [vmem:[%s275 + $0x220] sm:$0xff] %v3830
        %4120 = vst [vmem:[%s275 + $0x228] sm:$0xff] %v3155
        %4121 = vst [vmem:[%s275 + $0x230] sm:$0xff] %v3494
        %4122 = vst [vmem:[%s275 + $0x238] sm:$0xff] %v3833
        %4123 = vst [vmem:[%s275 + $0x240] sm:$0xff] %v3158
        %4124 = vst [vmem:[%s275 + $0x248] sm:$0xff] %v3497
        %4125 = vst [vmem:[%s275 + $0x250] sm:$0xff] %v3836
        %4126 = vst [vmem:[%s275 + $0x258] sm:$0xff] %v3161
        %4127 = vst [vmem:[%s275 + $0x260] sm:$0xff] %v3500
        %4128 = vst [vmem:[%s275 + $0x268] sm:$0xff] %v3839
        %4129 = vst [vmem:[%s275 + $0x270] sm:$0xff] %v3164
        %4130 = vst [vmem:[%s275 + $0x278] sm:$0xff] %v3503
        %4131 = vst [vmem:[%s275 + $0x280] sm:$0xff] %v3842
        %4132 = vst [vmem:[%s275 + $0x288] sm:$0xff] %v3167
        %4133 = vst [vmem:[%s275 + $0x290] sm:$0xff] %v3506
        %4134 = vst [vmem:[%s275 + $0x298] sm:$0xff] %v3845
        %4135 = vst [vmem:[%s275 + $0x2a0] sm:$0xff] %v3170
        %4136 = vst [vmem:[%s275 + $0x2a8] sm:$0xff] %v3509
        %4137 = vst [vmem:[%s275 + $0x2b0] sm:$0xff] %v3848
        %4138 = vst [vmem:[%s275 + $0x2b8] sm:$0xff] %v3173
        %4139 = vst [vmem:[%s275 + $0x2c0] sm:$0xff] %v3512
        %4140 = vst [vmem:[%s275 + $0x2c8] sm:$0xff] %v3851
        %4141 = vst [vmem:[%s275 + $0x2d0] sm:$0xff] %v3176
        %4142 = vst [vmem:[%s275 + $0x2d8] sm:$0xff] %v3515
        %4143 = vst [vmem:[%s275 + $0x2e0] sm:$0xff] %v3854
        %4144 = vst [vmem:[%s275 + $0x2e8] sm:$0xff] %v3179
        %4145 = vst [vmem:[%s275 + $0x2f0] sm:$0xff] %v3518
        %4146 = vst [vmem:[%s275 + $0x2f8] sm:$0xff] %v3857
        %s4147 = sand.u32 %s97, 1
        %s4148 = scalar_lea.sflag [#allocation4], %s4147
        %s4149 = sand.u32 %s97, 1
        %s4150 = smul.addr %s4149, 768
        %s4151 = scalar_lea.vmem [#allocation7], %s4150
        %s4152 = sand.u32 %s26, 1
        %s4153 = scalar_lea.sflag [#allocation9], %s4152
        %s4154 = sand.u32 %s125, 1
        %s4155 = smul.addr %s4154, 768
        %s4156 = scalar_lea.vmem [#allocation8], %s4155
        %s4157 = sand.u32 %s26, 1
        %s4158 = scalar_lea.sflag [#allocation9], %s4157
        %s4159 = sand.u32 %s153, 1
        %s4160 = smul.addr %s4159, 768
        %s4161 = scalar_lea.vmem [#allocation10], %s4160
        // Predicated region
        $region37: #{tpu_custom_call.1} parent=27 // pred_check
          %p4162 = pneg %p107
        $region38: #{tpu_custom_call.1} parent=27 // pred_check_branch
          %4164 = sbr.rel (%p4162) target = $region40
        $region39: #{tpu_custom_call.1} parent=27 // pred_region
          %s4165 = smul.u32 32, %s31
          %4167 = vsyncadd %s4148, 0
          %s4168 = smul.addr %s4165, 3
          %s4169 = smul.addr %s30, 96
          %s4170 = sadd.s32 %s4168, %s4169
          %s4171 = smul.addr %s4170, 8
          %s4172 = scalar_lea.hbm %s2, %s4171
          %s4173 = sshll.u32 %s4151, 4
          %s4174 = int_to_ptr.vmem [resolvable:$true] %s4173
          %s4175 = sshll.u32 %s4172, 4
          %s4176 = int_to_ptr.hbm [resolvable:$true] %s4175
          %4181 = dma.vmem_to_hbm [thread:$0]  %s4174, 12288, %s4176, %s4148, 384, 384, 24
        $region40: #{tpu_custom_call.1} parent=27 // pred_fallthru
          _
        // Predicated region
        $region41: #{tpu_custom_call.1} parent=27 // pred_check
          %p4182 = pneg %p135
        $region42: #{tpu_custom_call.1} parent=27 // pred_check_branch
          %4184 = sbr.rel (%p4182) target = $region44
        $region43: #{tpu_custom_call.1} parent=27 // pred_region
          %s4185 = smul.u32 32, %s31
          %4187 = vsyncadd %s4153, 0
          %s4188 = smul.addr %s4185, 3
          %s4189 = smul.addr %s30, 96
          %s4190 = sadd.s32 %s4188, %s4189
          %s4191 = smul.addr %s4190, 8
          %s4192 = scalar_lea.hbm %s3, %s4191
          %s4193 = sshll.u32 %s4156, 4
          %s4194 = int_to_ptr.vmem [resolvable:$true] %s4193
          %s4195 = sshll.u32 %s4192, 4
          %s4196 = int_to_ptr.hbm [resolvable:$true] %s4195
          %4201 = dma.vmem_to_hbm [thread:$0]  %s4194, 12288, %s4196, %s4153, 384, 384, 24
        $region44: #{tpu_custom_call.1} parent=27 // pred_fallthru
          _
        // Predicated region
        $region45: #{tpu_custom_call.1} parent=27 // pred_check
          %p4202 = pneg %p163
        $region46: #{tpu_custom_call.1} parent=27 // pred_check_branch
          %4204 = sbr.rel (%p4202) target = $region48
        $region47: #{tpu_custom_call.1} parent=27 // pred_region
          %s4205 = smul.u32 32, %s31
          %4207 = vsyncadd %s4158, 0
          %s4208 = smul.addr %s4205, 3
          %s4209 = smul.addr %s30, 96
          %s4210 = sadd.s32 %s4208, %s4209
          %s4211 = smul.addr %s4210, 8
          %s4212 = scalar_lea.hbm %s4, %s4211
          %s4213 = sshll.u32 %s4161, 4
          %s4214 = int_to_ptr.vmem [resolvable:$true] %s4213
          %s4215 = sshll.u32 %s4212, 4
          %s4216 = int_to_ptr.hbm [resolvable:$true] %s4215
          %4221 = dma.vmem_to_hbm [thread:$0]  %s4214, 12288, %s4216, %s4158, 384, 384, 24
        $region48: #{tpu_custom_call.1} parent=27 // pred_fallthru
          _
      $region28: #{tpu_custom_call.1} parent=5 // pred_fallthru
        _
      %p4222 = scmp.le.s32.totalorder 2, %s21
      // Predicated region
      $region49: #{tpu_custom_call.1} parent=5 // pred_check
        %p4223 = pneg %p4222
      $region50: #{tpu_custom_call.1} parent=5 // pred_check_branch
        %4225 = sbr.rel (%p4223) target = $region52
      $region51: #{tpu_custom_call.1} parent=5 // pred_region
        %s4226 = ssub.s32 %s21, 2
        // Predicated region
        $region53: #{tpu_custom_call.1} parent=51 // pred_check
          %p4227 = pneg %p113
        $region54: #{tpu_custom_call.1} parent=51 // pred_check_branch
          %4229 = sbr.rel (%p4227) target = $region56
        $region55: #{tpu_custom_call.1} parent=51 // pred_region
          %s4230 = sand.u32 %s98, 1
          %s4231 = scalar_lea.sflag [#allocation4], %s4230
          %s4232 = sand.u32 %s98, 1
          %s4233 = smul.addr %s4232, 768
          %s4234 = scalar_lea.vmem [#allocation7], %s4233
          %4236 = dma.done %s4231, 12288
        $region56: #{tpu_custom_call.1} parent=51 // pred_fallthru
          _
        // Predicated region
        $region57: #{tpu_custom_call.1} parent=51 // pred_check
          %p4237 = pneg %p141
        $region58: #{tpu_custom_call.1} parent=51 // pred_check_branch
          %4239 = sbr.rel (%p4237) target = $region60
        $region59: #{tpu_custom_call.1} parent=51 // pred_region
          %s4240 = sand.u32 %s27, 1
          %s4241 = scalar_lea.sflag [#allocation9], %s4240
          %s4242 = sand.u32 %s126, 1
          %s4243 = smul.addr %s4242, 768
          %s4244 = scalar_lea.vmem [#allocation8], %s4243
          %4246 = dma.done %s4241, 12288
        $region60: #{tpu_custom_call.1} parent=51 // pred_fallthru
          _
        // Predicated region
        $region61: #{tpu_custom_call.1} parent=51 // pred_check
          %p4247 = pneg %p169
        $region62: #{tpu_custom_call.1} parent=51 // pred_check_branch
          %4249 = sbr.rel (%p4247) target = $region64
        $region63: #{tpu_custom_call.1} parent=51 // pred_region
          %s4250 = sand.u32 %s27, 1
          %s4251 = scalar_lea.sflag [#allocation9], %s4250
          %s4252 = sand.u32 %s154, 1
          %s4253 = smul.addr %s4252, 768
          %s4254 = scalar_lea.vmem [#allocation10], %s4253
          %4256 = dma.done %s4251, 12288
        $region64: #{tpu_custom_call.1} parent=51 // pred_fallthru
          _
      $region52: #{tpu_custom_call.1} parent=5 // pred_fallthru
        _
    $region6: #{tpu_custom_call.1} parent=1 // loop_footer
      %s25 = sadd.s32 1, %s21
    $region7: #{tpu_custom_call.1} parent=1 // loop_footer_branch
      %20 = sbr.rel target = $region3
    $region8: #{tpu_custom_call.1} parent=1 // loop_exit
      _
    %4257 = vsyncpa [#allocation3], 1
    %s4258 = scalar_lea.sflag [#allocation3], 1
    %4259 = vsyncpa %s4258, 1
    %4260 = vsyncpa [#allocation6], 1
    %4261 = vsyncpa [#allocation4], 1
    %s4262 = scalar_lea.sflag [#allocation4], 1
    %4263 = vsyncpa %s4262, 1
    %4264 = vsyncpa [#allocation9], 1
    %s4265 = scalar_lea.sflag [#allocation9], 1
    %4266 = vsyncpa %s4265, 1

</llo_original>
